<compile_context>
chip_gen: v6e
topology: v6e:2x2x1
jax: 0.10.0
libtpu: 0.0.40
codegen_flags: <defaults>
</compile_context>

<pallas_src>
import functools
import math

import jax
import jax.numpy as jnp
from jax import lax
from jax.experimental import pallas as pl
from jax.experimental.pallas import tpu as pltpu


def _memory_kernel(mi_ref, qi_ref, mo_ref, p_ref, mem_ref, *, scale, matmul_dtype):
    # mi_ref : (1, D_e, THW)      memory keys, natural lane-dense layout
    # qi_ref : (1, D_e, tile_hw)  query-key column tile
    # mo_ref : (1, D_o, THW)      memory values
    # p_ref  : (1, THW, tile_hw)  softmax weights (output)
    # mem_ref: (1, D_o, tile_hw)  read-out (output)
    mi = mi_ref[0]
    qi = qi_ref[0] * scale          # fold 1/sqrt(D_e) into the tiny query tile
    mo = mo_ref[0]

    if matmul_dtype is not None:
        mi = mi.astype(matmul_dtype)
        qi = qi.astype(matmul_dtype)
        mo = mo.astype(matmul_dtype)

    # Similarity: contract over D_e directly (transposed-LHS contraction) --
    # no explicit on-chip key transpose, no lane-sparse (THW, D_e) buffer.
    s = lax.dot_general(
        mi, qi,
        dimension_numbers=(((0,), (0,)), ((), ())),
        preferred_element_type=jnp.float32,
    )                                                  # (THW, tile_hw), f32

    # Exact softmax over the THW axis (axis 0) -- matches F.softmax(p, dim=1).
    m = jnp.max(s, axis=0, keepdims=True)              # (1, tile_hw)
    e = jnp.exp(s - m)                                 # (THW, tile_hw), in (0, 1]
    denom = jnp.sum(e, axis=0, keepdims=True)          # (1, tile_hw)
    r = pl.reciprocal(denom, approx=True)              # EUP slot (essentially free)
    r = r * (2.0 - denom * r)                          # one Newton step -> f32 accuracy

    # Read-out from the *unnormalized* exponentials, post-scaled per column:
    # mo @ (e * r) == (mo @ e) * r, so the MXU can start as soon as exp is done.
    em = e.astype(matmul_dtype) if matmul_dtype is not None else e
    mem = jnp.dot(mo, em, preferred_element_type=jnp.float32)   # (D_o, tile_hw)
    mem_ref[0] = (mem * r).astype(mem_ref.dtype)

    p_ref[0] = (e * r).astype(p_ref.dtype)


def _vmem_capacity_bytes():
    try:
        info = pltpu.get_tpu_info()
        cap = getattr(info, "vmem_capacity_bytes", None)
        if cap:
            return int(cap)
    except Exception:
        pass
    return 64 * 1024 * 1024     # conservative fallback (v7x per-TensorCore VMEM)


def _vmem_estimate_bytes(D_e, D_o, THW, tile_hw, in_isz, p_isz, out_isz):
    # Double-buffered pipeline blocks + f32 in-kernel intermediates (s, e).
    blocks = 2 * (
        D_e * THW * in_isz            # mi block
        + D_o * THW * in_isz          # mo block
        + D_e * tile_hw * in_isz      # qi block
        + THW * tile_hw * p_isz       # p output block
        + D_o * tile_hw * out_isz     # mem output block
    )
    interm = 2 * THW * tile_hw * 4    # s and e (f32)
    return blocks + interm + (2 << 20)


def memory_forward(m_in, m_out, q_in, q_out, *,
                   matmul_dtype=None, p_dtype=jnp.float32, tile_hw=None):
    """Pallas implementation of Memory.forward.

    m_in : (B, D_e, T, H, W), m_out: (B, D_o, T, H, W)
    q_in : (B, D_e, H, W),    q_out: (B, D_o, 1, H, W)
    returns (mem_out (B, 2*D_o, H, W), p (B, T*H*W, H*W))

    p_dtype=jnp.bfloat16 halves the dominant p-writeback HBM traffic (the
    kernel is HBM-bound at production sizes); default f32 keeps reference
    accuracy.  matmul_dtype=jnp.bfloat16 casts MXU operands in-kernel; pass
    bf16 input arrays to additionally halve the mi/mo DMA bytes.
    """
    B, D_e, T, H, W = m_in.shape
    _, D_o, _, _, _ = m_out.shape
    THW = T * H * W
    HW = H * W

    # Cheap reshapes only (views) -- NO host-side transpose of the big tensor.
    mi = m_in.reshape(B, D_e, THW)
    qi = q_in.reshape(B, D_e, HW)
    mo = m_out.reshape(B, D_o, THW)

    # Pad the query spatial axis to a multiple of 128 so every p / mem
    # writeback is a full-lane (unmasked) store; padded columns are sliced off.
    HW_pad = 128 * pl.cdiv(HW, 128)
    if HW_pad != HW:
        qi = jnp.pad(qi, ((0, 0), (0, 0), (0, HW_pad - HW)))

    in_isz = jnp.dtype(m_in.dtype).itemsize
    p_isz = jnp.dtype(p_dtype).itemsize
    out_isz = jnp.dtype(m_out.dtype).itemsize

    capacity = _vmem_capacity_bytes()
    budget = int(capacity * 0.85)        # leave headroom for compiler scratch

    if tile_hw is None:
        # Largest lane-dense column tile that divides HW_pad and fits VMEM
        # (256+ lanes match the v6e/v7x 256-wide MXU and amortize per-step cost).
        tile_hw = 128
        for cand in (512, 256):
            if HW_pad % cand == 0 and _vmem_estimate_bytes(
                    D_e, D_o, THW, cand, in_isz, p_isz, out_isz) <= budget:
                tile_hw = cand
                break
    n_hw = HW_pad // tile_hw

    scale = 1.0 / math.sqrt(D_e)
    kernel = functools.partial(_memory_kernel, scale=scale, matmul_dtype=matmul_dtype)

    vmem_limit = min(max(budget, 32 * 1024 * 1024), capacity)

    # Grid: batch axis outer (keeps the per-batch mi/mo fetch once per chip
    # when megacore shards on it), hw-column tiles inner.  Both independent.
    p, mem = pl.pallas_call(
        kernel,
        out_shape=(
            jax.ShapeDtypeStruct((B, THW, HW_pad), p_dtype),
            jax.ShapeDtypeStruct((B, D_o, HW_pad), m_out.dtype),
        ),
        grid_spec=pltpu.PrefetchScalarGridSpec(
            num_scalar_prefetch=0,
            grid=(B, n_hw),
            in_specs=[
                pl.BlockSpec((1, D_e, THW), lambda b, j: (b, 0, 0)),
                pl.BlockSpec((1, D_e, tile_hw), lambda b, j: (b, 0, j)),
                pl.BlockSpec((1, D_o, THW), lambda b, j: (b, 0, 0)),
            ],
            out_specs=[
                pl.BlockSpec((1, THW, tile_hw), lambda b, j: (b, 0, j)),
                pl.BlockSpec((1, D_o, tile_hw), lambda b, j: (b, 0, j)),
            ],
        ),
        compiler_params=pltpu.CompilerParams(
            dimension_semantics=("parallel", "parallel"),
            vmem_limit_bytes=int(vmem_limit),
        ),
    )(mi, qi, mo)

    if HW_pad != HW:
        p = p[:, :, :HW]
        mem = mem[:, :, :HW]

    mem = mem.reshape(B, D_o, H, W)
    mem_out = jnp.concatenate([mem, jnp.squeeze(q_out, axis=2)], axis=1)
    return mem_out, p


def _reference(m_in, m_out, q_in, q_out):
    B, D_e, T, H, W = m_in.shape
    _, D_o, _, _, _ = m_out.shape
    mi = jnp.transpose(m_in.reshape(B, D_e, T * H * W), (0, 2, 1))
    qi = q_in.reshape(B, D_e, H * W)
    p = jnp.einsum("btd,bds->bts", mi, qi) / math.sqrt(D_e)
    p = jax.nn.softmax(p, axis=1)
    mo = m_out.reshape(B, D_o, T * H * W)
    mem = jnp.einsum("bot,bts->bos", mo, p).reshape(B, D_o, H, W)
    mem_out = jnp.concatenate([mem, jnp.squeeze(q_out, axis=2)], axis=1)
    return mem_out, p


if __name__ == "__main__":
    # Small, deterministic inputs (no learned parameters in this module).
    # HW = 16*24 = 384 -> three 128-wide column tiles (exercises the hw grid).
    B, D_e, D_o, T, H, W = 2, 32, 32, 4, 16, 24

    key = jax.random.PRNGKey(0)
    k1, k2, k3, k4 = jax.random.split(key, 4)
    m_in = jax.random.normal(k1, (B, D_e, T, H, W), dtype=jnp.float32)
    m_out = jax.random.normal(k2, (B, D_o, T, H, W), dtype=jnp.float32)
    q_in = jax.random.normal(k3, (B, D_e, H, W), dtype=jnp.float32)
    q_out = jax.random.normal(k4, (B, D_o, 1, H, W), dtype=jnp.float32)

    mem_out, p = memory_forward(m_in, m_out, q_in, q_out)
    jax.block_until_ready((mem_out, p))

    ref_mem_out, ref_p = _reference(m_in, m_out, q_in, q_out)
    assert jnp.allclose(mem_out, ref_mem_out, atol=1e-4, rtol=1e-4)
    assert jnp.allclose(p, ref_p, atol=1e-5, rtol=1e-4)

    print("KERNEL_OK")
</pallas_src>

<mosaic_0001>
module attributes {stable_mosaic.version = 11 : i64} {
  func.func @_memory_kernel(%arg0: i32, %arg1: i32, %arg2: memref<1x32x1536xf32, #tpu.memory_space<vmem>>, %arg3: memref<1x32x128xf32, #tpu.memory_space<vmem>>, %arg4: memref<1x32x1536xf32, #tpu.memory_space<vmem>>, %arg5: memref<1x1536x128xf32, #tpu.memory_space<vmem>>, %arg6: memref<1x32x128xf32, #tpu.memory_space<vmem>>) attributes {dimension_semantics = [#tpu.dimension_semantics<parallel>, #tpu.dimension_semantics<parallel>], iteration_bounds = array<i64: 2, 3>, scalar_prefetch = 0 : i64, scratch_operands = 0 : i64, tpu.core_type = #tpu.core_type<tc>, window_params = [{transform_indices = @transform_0, window_bounds = array<i64: 1, 32, 1536>}, {transform_indices = @transform_1, window_bounds = array<i64: 1, 32, 128>}, {transform_indices = @transform_2, window_bounds = array<i64: 1, 32, 1536>}, {transform_indices = @transform_3, window_bounds = array<i64: 1, 1536, 128>}, {transform_indices = @transform_4, window_bounds = array<i64: 1, 32, 128>}]} {
    %c0 = arith.constant 0 : index
    %c0_0 = arith.constant 0 : index
    %c0_1 = arith.constant 0 : index
    %0 = vector.load %arg2[%c0, %c0_0, %c0_1] : memref<1x32x1536xf32, #tpu.memory_space<vmem>>, vector<1x32x1536xf32>
    %1 = vector.shape_cast %0 : vector<1x32x1536xf32> to vector<32x1536xf32>
    %c0_2 = arith.constant 0 : index
    %c0_3 = arith.constant 0 : index
    %c0_4 = arith.constant 0 : index
    %2 = vector.load %arg3[%c0_2, %c0_3, %c0_4] : memref<1x32x128xf32, #tpu.memory_space<vmem>>, vector<1x32x128xf32>
    %3 = vector.shape_cast %2 : vector<1x32x128xf32> to vector<32x128xf32>
    %cst = arith.constant 0.176776692 : f32
    %4 = vector.broadcast %cst : f32 to vector<32x128xf32>
    %5 = arith.mulf %3, %4 : vector<32x128xf32>
    %c0_5 = arith.constant 0 : index
    %c0_6 = arith.constant 0 : index
    %c0_7 = arith.constant 0 : index
    %6 = vector.load %arg4[%c0_5, %c0_6, %c0_7] : memref<1x32x1536xf32, #tpu.memory_space<vmem>>, vector<1x32x1536xf32>
    %7 = vector.shape_cast %6 : vector<1x32x1536xf32> to vector<32x1536xf32>
    %cst_8 = arith.constant dense<0.000000e+00> : vector<1536x128xf32>
    %8 = tpu.matmul %1, %5, %cst_8 {dimension_numbers = #tpu.dot_dimension_numbers<[0], [0], [1], [1], [0, 1, 1, 1], [], []>} : vector<32x1536xf32>, vector<32x128xf32>, vector<1536x128xf32> -> vector<1536x128xf32>
    %cst_9 = arith.constant dense<0xFF800000> : vector<128xf32>
    %9 = vector.multi_reduction <maximumf>, %8, %cst_9 [0] : vector<1536x128xf32> to vector<128xf32>
    %10 = vector.shape_cast %9 : vector<128xf32> to vector<1x128xf32>
    %11 = vector.broadcast %10 : vector<1x128xf32> to vector<1536x128xf32>
    %12 = arith.subf %8, %11 : vector<1536x128xf32>
    %13 = math.exp %12 : vector<1536x128xf32>
    %cst_10 = arith.constant dense<0.000000e+00> : vector<128xf32>
    %14 = vector.multi_reduction <add>, %13, %cst_10 [0] : vector<1536x128xf32> to vector<128xf32>
    %15 = vector.shape_cast %14 : vector<128xf32> to vector<1x128xf32>
    %16 = tpu.reciprocal %15 {approx = true} : vector<1x128xf32> -> vector<1x128xf32>
    %17 = arith.mulf %15, %16 : vector<1x128xf32>
    %cst_11 = arith.constant 2.000000e+00 : f32
    %18 = vector.broadcast %cst_11 : f32 to vector<1x128xf32>
    %19 = arith.subf %18, %17 : vector<1x128xf32>
    %20 = arith.mulf %16, %19 : vector<1x128xf32>
    %cst_12 = arith.constant dense<0.000000e+00> : vector<32x128xf32>
    %21 = tpu.matmul %7, %13, %cst_12 {dimension_numbers = #tpu.dot_dimension_numbers<[1], [0], [0], [1], [0, 0, 1, 1], [], []>} : vector<32x1536xf32>, vector<1536x128xf32>, vector<32x128xf32> -> vector<32x128xf32>
    %22 = vector.broadcast %20 : vector<1x128xf32> to vector<32x128xf32>
    %23 = arith.mulf %21, %22 : vector<32x128xf32>
    %c0_13 = arith.constant 0 : index
    %c0_14 = arith.constant 0 : index
    %c0_15 = arith.constant 0 : index
    %24 = vector.load %arg6[%c0_13, %c0_14, %c0_15] : memref<1x32x128xf32, #tpu.memory_space<vmem>>, vector<1x32x128xf32>
    %25 = vector.shape_cast %24 : vector<1x32x128xf32> to vector<32x128xf32>
    %26 = vector.shape_cast %23 : vector<32x128xf32> to vector<1x32x128xf32>
    tpu.vector_store %arg6[%c0_13, %c0_14, %c0_15], %26 {strides = array<i32>} : memref<1x32x128xf32, #tpu.memory_space<vmem>>, vector<1x32x128xf32>,
    %27 = vector.broadcast %20 : vector<1x128xf32> to vector<1536x128xf32>
    %28 = arith.mulf %13, %27 : vector<1536x128xf32>
    %c0_16 = arith.constant 0 : index
    %c0_17 = arith.constant 0 : index
    %c0_18 = arith.constant 0 : index
    %29 = vector.load %arg5[%c0_16, %c0_17, %c0_18] : memref<1x1536x128xf32, #tpu.memory_space<vmem>>, vector<1x1536x128xf32>
    %30 = vector.shape_cast %29 : vector<1x1536x128xf32> to vector<1536x128xf32>
    %31 = vector.shape_cast %28 : vector<1536x128xf32> to vector<1x1536x128xf32>
    tpu.vector_store %arg5[%c0_16, %c0_17, %c0_18], %31 {strides = array<i32>} : memref<1x1536x128xf32, #tpu.memory_space<vmem>>, vector<1x1536x128xf32>,
    return
  }
  func.func @transform_0(%arg0: i32, %arg1: i32) -> (i32, i32, i32) {
    %c0_i32 = arith.constant 0 : i32
    %c0_i32_0 = arith.constant 0 : i32
    %c0_i32_1 = arith.constant 0 : i32
    return %arg0, %c0_i32, %c0_i32_0 : i32, i32, i32
  }
  func.func @transform_1(%arg0: i32, %arg1: i32) -> (i32, i32, i32) {
    %c0_i32 = arith.constant 0 : i32
    %c0_i32_0 = arith.constant 0 : i32
    return %arg0, %c0_i32, %arg1 : i32, i32, i32
  }
  func.func @transform_2(%arg0: i32, %arg1: i32) -> (i32, i32, i32) {
    %c0_i32 = arith.constant 0 : i32
    %c0_i32_0 = arith.constant 0 : i32
    %c0_i32_1 = arith.constant 0 : i32
    return %arg0, %c0_i32, %c0_i32_0 : i32, i32, i32
  }
  func.func @transform_3(%arg0: i32, %arg1: i32) -> (i32, i32, i32) {
    %c0_i32 = arith.constant 0 : i32
    %c0_i32_0 = arith.constant 0 : i32
    return %arg0, %c0_i32, %arg1 : i32, i32, i32
  }
  func.func @transform_4(%arg0: i32, %arg1: i32) -> (i32, i32, i32) {
    %c0_i32 = arith.constant 0 : i32
    %c0_i32_0 = arith.constant 0 : i32
    return %arg0, %c0_i32, %arg1 : i32, i32, i32
  }
}

</mosaic_0001>

<llo_original>
// kernel: tpu_custom_call.1
$region0: #{tpu_custom_call.1}
  #allocation0 [shape = 'u32[]', space=smem, size = 0x4, offset = 0x4, fixed_abs, tag = 'smem constant byte address 0x4 - core index']
  #allocation1 [shape = 'u32[144,128]{1,0:T(1,128)}', space=vmem, size = 0x12000, scoped, tag = 'internal scratch']
  %s0 = inlined_call_operand.hbm [shape: f32[2,32,1536], index: 0, kind: input, shape index: {}]
  %s1 = inlined_call_operand.hbm [shape: f32[2,32,384], index: 1, kind: input, shape index: {}]
  %s2 = inlined_call_operand.hbm [shape: f32[2,32,1536], index: 2, kind: input, shape index: {}]
  %s3 = inlined_call_operand.hbm [shape: f32[2,1536,384], index: 3, kind: output, shape index: {0}]
  %s4 = inlined_call_operand.hbm [shape: f32[2,32,384], index: 4, kind: output, shape index: {1}]
  %5 = xla_tuple %s3, %s4
  %s6 = sld [smem:[#allocation0]]
  $region65: #{tpu_custom_call.1} parent=0
    _
  %s8 = ssub.s32 1, %s6
  %s9 = scalar_select 0, %s8, %s6
  $region1: #{tpu_custom_call.1} parent=0
    #allocation2 [shape = 'u8[393216]{0}', space=vmem, size = 0x60000, scoped, tag = 'input window, operand 0']
    #allocation3 [shape = 's32[2]{0}', space=sflag, size = 0x8, scoped, tag = 'scoped memory for tpu_custom_call.1']
    #allocation4 [shape = 's32[2]{0}', space=sflag, size = 0x8, scoped, tag = 'scoped memory for tpu_custom_call.1']
    #allocation5 [shape = 'u8[32768]{0}', space=vmem, size = 0x8000, scoped, tag = 'input window, operand 1']
    #allocation6 [shape = 's32[2]{0}', space=sflag, size = 0x8, scoped, tag = 'scoped memory for tpu_custom_call.1']
    #allocation7 [shape = 'u8[393216]{0}', space=vmem, size = 0x60000, scoped, tag = 'input window, operand 2']
    #allocation8 [shape = 'u8[1572864]{0}', space=vmem, size = 0x180000, scoped, tag = 'output window, operand 0']
    #allocation9 [shape = 'u8[32768]{0}', space=vmem, size = 0x8000, scoped, tag = 'output window, operand 1']
    #allocation10 [shape = 's32[2]{0}', space=sflag, size = 0x8, scoped, tag = 'scoped memory for tpu_custom_call.1']
    %10 = vsyncpa [#allocation3], 0
    %s11 = scalar_lea.sflag [#allocation3], 1
    %12 = vsyncpa %s11, 0
    %13 = vsyncpa [#allocation6], 0
    %s14 = scalar_lea.sflag [#allocation6], 1
    %15 = vsyncpa %s14, 0
    %16 = vsyncpa [#allocation4], 0
    %s17 = scalar_lea.sflag [#allocation4], 1
    %18 = vsyncpa %s17, 0
    %19 = vsyncpa [#allocation10], 0
    %s20 = scalar_lea.sflag [#allocation10], 1
    %21 = vsyncpa %s20, 0
    loop: start=0, step=1, limit=8
    $region2: #{tpu_custom_call.1} parent=1 // loop_pre_header
      _
    $region3: #{tpu_custom_call.1} parent=1 // loop_header
      %s23 = sphi 0, %s27
      %p24 = scmp.ge.s32.totalorder %s23, 8
      %s30 = sphi 0, %s42
      %s31 = sphi 0, %s38
      %s32 = sphi 0, %s30
      %s33 = sphi 0, %s31
      %s34 = sphi 0, %s32
      %s35 = sphi 0, %s33
      %s45 = sphi 0, %s47
      %s48 = sphi 0, %s45
      %s49 = sphi 0, %s48
      %s65 = sphi 0, %s49
      %s73 = sphi 0, %s75
      %s76 = sphi 0, %s73
      %s77 = sphi 0, %s76
      %s93 = sphi 0, %s77
      %s99 = sphi 0, %s101
      %s102 = sphi 0, %s99
      %s103 = sphi 0, %s102
      %s119 = sphi 0, %s103
      %s127 = sphi 0, %s129
      %s130 = sphi 0, %s127
      %s131 = sphi 0, %s130
      %s147 = sphi 0, %s131
      %s155 = sphi 0, %s157
      %s158 = sphi 0, %s155
      %s159 = sphi 0, %s158
      %s175 = sphi 0, %s159
    $region4: #{tpu_custom_call.1} parent=1 // loop_header_branch
      %26 = sbr.rel (%p24) target = $region8
    $region5: #{tpu_custom_call.1} parent=1 // loop_body
      %s28 = ssub.s32 %s23, 1
      %s29 = ssub.s32 %s23, 2
      %s36 = sadd.s32 1, %s31
      %p37 = scmp.ge.s32.totalorder %s36, 3
      %s38 = scalar_select %p37, 0, %s36
      %s39 = sadd.s32 1, %s30
      %s40 = scalar_select %p37, %s39, %s30
      %p41 = scmp.ge.s32.totalorder %s40, 2
      %s42 = scalar_select %p41, 0, %s40
      %s43 = ssub.s32 %s30, %s42
      %p44 = scmp.eq.s32.totalorder %s43, 0
      %s46 = sadd.s32 %s45, 1
      %s47 = scalar_select %p44, %s45, %s46
      %p50 = pneg %p44
      %p51 = scmp.eq.s32.totalorder %s23, 5
      %p52 = por %p50, %p51
      %p53 = scmp.ne.s32.totalorder %s45, %s48
      %p54 = scmp.eq.s32.totalorder %s23, 0
      %p55 = por %p53, %p54
      %p56 = scmp.ne.s32.totalorder %s45, %s48
      %p57 = scmp.eq.s32.totalorder %s28, 5
      %p58 = por %p56, %p57
      %p59 = scmp.ne.s32.totalorder %s48, %s49
      %p60 = scmp.eq.s32.totalorder %s28, 0
      %p61 = por %p59, %p60
      %p62 = scmp.ne.s32.totalorder %s48, %s49
      %p63 = scmp.eq.s32.totalorder %s29, 5
      %p64 = por %p62, %p63
      %p66 = scmp.ne.s32.totalorder %s49, %s65
      %p67 = scmp.eq.s32.totalorder %s29, 0
      %p68 = por %p66, %p67
      %s69 = ssub.s32 %s30, %s42
      %s70 = ssub.s32 %s31, %s38
      %s71 = sor.u32 %s69, %s70
      %p72 = scmp.eq.s32.totalorder %s71, 0
      %s74 = sadd.s32 %s73, 1
      %s75 = scalar_select %p72, %s73, %s74
      %p78 = pneg %p72
      %p79 = scmp.eq.s32.totalorder %s23, 5
      %p80 = por %p78, %p79
      %p81 = scmp.ne.s32.totalorder %s73, %s76
      %p82 = scmp.eq.s32.totalorder %s23, 0
      %p83 = por %p81, %p82
      %p84 = scmp.ne.s32.totalorder %s73, %s76
      %p85 = scmp.eq.s32.totalorder %s28, 5
      %p86 = por %p84, %p85
      %p87 = scmp.ne.s32.totalorder %s76, %s77
      %p88 = scmp.eq.s32.totalorder %s28, 0
      %p89 = por %p87, %p88
      %p90 = scmp.ne.s32.totalorder %s76, %s77
      %p91 = scmp.eq.s32.totalorder %s29, 5
      %p92 = por %p90, %p91
      %p94 = scmp.ne.s32.totalorder %s77, %s93
      %p95 = scmp.eq.s32.totalorder %s29, 0
      %p96 = por %p94, %p95
      %s97 = ssub.s32 %s30, %s42
      %p98 = scmp.eq.s32.totalorder %s97, 0
      %s100 = sadd.s32 %s99, 1
      %s101 = scalar_select %p98, %s99, %s100
      %p104 = pneg %p98
      %p105 = scmp.eq.s32.totalorder %s23, 5
      %p106 = por %p104, %p105
      %p107 = scmp.ne.s32.totalorder %s99, %s102
      %p108 = scmp.eq.s32.totalorder %s23, 0
      %p109 = por %p107, %p108
      %p110 = scmp.ne.s32.totalorder %s99, %s102
      %p111 = scmp.eq.s32.totalorder %s28, 5
      %p112 = por %p110, %p111
      %p113 = scmp.ne.s32.totalorder %s102, %s103
      %p114 = scmp.eq.s32.totalorder %s28, 0
      %p115 = por %p113, %p114
      %p116 = scmp.ne.s32.totalorder %s102, %s103
      %p117 = scmp.eq.s32.totalorder %s29, 5
      %p118 = por %p116, %p117
      %p120 = scmp.ne.s32.totalorder %s103, %s119
      %p121 = scmp.eq.s32.totalorder %s29, 0
      %p122 = por %p120, %p121
      %s123 = ssub.s32 %s30, %s42
      %s124 = ssub.s32 %s31, %s38
      %s125 = sor.u32 %s123, %s124
      %p126 = scmp.eq.s32.totalorder %s125, 0
      %s128 = sadd.s32 %s127, 1
      %s129 = scalar_select %p126, %s127, %s128
      %p132 = pneg %p126
      %p133 = scmp.eq.s32.totalorder %s23, 5
      %p134 = por %p132, %p133
      %p135 = scmp.ne.s32.totalorder %s127, %s130
      %p136 = scmp.eq.s32.totalorder %s23, 0
      %p137 = por %p135, %p136
      %p138 = scmp.ne.s32.totalorder %s127, %s130
      %p139 = scmp.eq.s32.totalorder %s28, 5
      %p140 = por %p138, %p139
      %p141 = scmp.ne.s32.totalorder %s130, %s131
      %p142 = scmp.eq.s32.totalorder %s28, 0
      %p143 = por %p141, %p142
      %p144 = scmp.ne.s32.totalorder %s130, %s131
      %p145 = scmp.eq.s32.totalorder %s29, 5
      %p146 = por %p144, %p145
      %p148 = scmp.ne.s32.totalorder %s131, %s147
      %p149 = scmp.eq.s32.totalorder %s29, 0
      %p150 = por %p148, %p149
      %s151 = ssub.s32 %s30, %s42
      %s152 = ssub.s32 %s31, %s38
      %s153 = sor.u32 %s151, %s152
      %p154 = scmp.eq.s32.totalorder %s153, 0
      %s156 = sadd.s32 %s155, 1
      %s157 = scalar_select %p154, %s155, %s156
      %p160 = pneg %p154
      %p161 = scmp.eq.s32.totalorder %s23, 5
      %p162 = por %p160, %p161
      %p163 = scmp.ne.s32.totalorder %s155, %s158
      %p164 = scmp.eq.s32.totalorder %s23, 0
      %p165 = por %p163, %p164
      %p166 = scmp.ne.s32.totalorder %s155, %s158
      %p167 = scmp.eq.s32.totalorder %s28, 5
      %p168 = por %p166, %p167
      %p169 = scmp.ne.s32.totalorder %s158, %s159
      %p170 = scmp.eq.s32.totalorder %s28, 0
      %p171 = por %p169, %p170
      %p172 = scmp.ne.s32.totalorder %s158, %s159
      %p173 = scmp.eq.s32.totalorder %s29, 5
      %p174 = por %p172, %p173
      %p176 = scmp.ne.s32.totalorder %s159, %s175
      %p177 = scmp.eq.s32.totalorder %s29, 0
      %p178 = por %p176, %p177
      %p179 = scmp.le.s32.totalorder 1, %s23
      %p180 = scmp.lt.s32.totalorder %s23, 7
      %p181 = pnand %p179, %p180
      %p182 = pneg %p181
      // Predicated region
      $region9: #{tpu_custom_call.1} parent=5 // pred_check
        _
      $region10: #{tpu_custom_call.1} parent=5 // pred_check_branch
        %184 = sbr.rel (%p181) target = $region12
      $region11: #{tpu_custom_call.1} parent=5 // pred_region
        %s185 = ssub.s32 %s23, 1
      $region12: #{tpu_custom_call.1} parent=5 // pred_fallthru
        _
      %p186 = scmp.lt.s32.totalorder %s23, 6
      // Predicated region
      $region13: #{tpu_custom_call.1} parent=5 // pred_check
        %p187 = pneg %p186
      $region14: #{tpu_custom_call.1} parent=5 // pred_check_branch
        %189 = sbr.rel (%p187) target = $region16
      $region15: #{tpu_custom_call.1} parent=5 // pred_region
        // Predicated region
        $region17: #{tpu_custom_call.1} parent=15 // pred_check
          %p190 = pneg %p55
        $region18: #{tpu_custom_call.1} parent=15 // pred_check_branch
          %192 = sbr.rel (%p190) target = $region20
        $region19: #{tpu_custom_call.1} parent=15 // pred_region
          %s193 = sand.u32 %s45, 1
          %s194 = scalar_lea.sflag [#allocation3], %s193
          %s195 = sand.u32 %s45, 1
          %s196 = smul.addr %s195, 384
          %s197 = scalar_lea.vmem [#allocation2], %s196
          %s199 = ssub.s32 6144, 6144
          %200 = vsyncadd %s194, %s199
          %s201 = smul.addr %s30, 48
          %s202 = smul.addr %s201, 128
          %s203 = scalar_lea.hbm %s0, %s202
          %s204 = sshll.u32 %s197, 4
          %s205 = int_to_ptr.vmem [resolvable:$true] %s204
          %210 = dma.hbm_to_vmem [thread:$0]  %s203, 6144, %s205, %s194, 1536, 1536, 96
        $region20: #{tpu_custom_call.1} parent=15 // pred_fallthru
          _
        // Predicated region
        $region21: #{tpu_custom_call.1} parent=15 // pred_check
          %p211 = pneg %p83
        $region22: #{tpu_custom_call.1} parent=15 // pred_check_branch
          %213 = sbr.rel (%p211) target = $region24
        $region23: #{tpu_custom_call.1} parent=15 // pred_region
          %s214 = sand.u32 %s23, 1
          %s215 = scalar_lea.sflag [#allocation6], %s214
          %s216 = sand.u32 %s73, 1
          %s217 = smul.addr %s216, 32
          %s218 = scalar_lea.vmem [#allocation5], %s217
          %s220 = ssub.s32 512, 512
          %221 = vsyncadd %s215, %s220
          %s222 = smul.addr %s30, 12
          %s223 = sadd.s32 %s31, %s222
          %s224 = smul.addr %s223, 128
          %s225 = scalar_lea.hbm %s1, %s224
          %s226 = sshll.u32 %s218, 4
          %s227 = int_to_ptr.vmem [resolvable:$true] %s226
          %232 = dma.hbm_to_vmem [thread:$0]  %s225, 512, %s227, %s215, 384, 128, 8
        $region24: #{tpu_custom_call.1} parent=15 // pred_fallthru
          _
        // Predicated region
        $region25: #{tpu_custom_call.1} parent=15 // pred_check
          %p233 = pneg %p109
        $region26: #{tpu_custom_call.1} parent=15 // pred_check_branch
          %235 = sbr.rel (%p233) target = $region28
        $region27: #{tpu_custom_call.1} parent=15 // pred_region
          %s236 = sand.u32 %s23, 1
          %s237 = scalar_lea.sflag [#allocation6], %s236
          %s238 = sand.u32 %s99, 1
          %s239 = smul.addr %s238, 384
          %s240 = scalar_lea.vmem [#allocation7], %s239
          %s242 = ssub.s32 6144, 6144
          %243 = vsyncadd %s237, %s242
          %s244 = smul.addr %s30, 48
          %s245 = smul.addr %s244, 128
          %s246 = scalar_lea.hbm %s2, %s245
          %s247 = sshll.u32 %s240, 4
          %s248 = int_to_ptr.vmem [resolvable:$true] %s247
          %253 = dma.hbm_to_vmem [thread:$0]  %s246, 6144, %s248, %s237, 1536, 1536, 96
        $region28: #{tpu_custom_call.1} parent=15 // pred_fallthru
          _
      $region16: #{tpu_custom_call.1} parent=5 // pred_fallthru
        _
      %p254 = scmp.le.s32.totalorder 1, %s23
      %p255 = scmp.lt.s32.totalorder %s23, 7
      %p256 = pnand %p254, %p255
      %p257 = pneg %p256
      // Predicated region
      $region29: #{tpu_custom_call.1} parent=5 // pred_check
        _
      $region30: #{tpu_custom_call.1} parent=5 // pred_check_branch
        %259 = sbr.rel (%p256) target = $region32
      $region31: #{tpu_custom_call.1} parent=5 // pred_region
        %s260 = ssub.s32 %s23, 1
        %s261 = sand.u32 %s48, 1
        %s262 = scalar_lea.sflag [#allocation3], %s261
        %s263 = sand.u32 %s48, 1
        %s264 = smul.addr %s263, 384
        %s265 = scalar_lea.vmem [#allocation2], %s264
        // Predicated region
        $region33: #{tpu_custom_call.1} parent=31 // pred_check
          %p266 = pneg %p61
        $region34: #{tpu_custom_call.1} parent=31 // pred_check_branch
          %268 = sbr.rel (%p266) target = $region36
        $region35: #{tpu_custom_call.1} parent=31 // pred_region
          %269 = dma.done %s262, 6144
        $region36: #{tpu_custom_call.1} parent=31 // pred_fallthru
          _
        %s270 = sand.u32 %s28, 1
        %s271 = scalar_lea.sflag [#allocation6], %s270
        %s272 = sand.u32 %s76, 1
        %s273 = smul.addr %s272, 32
        %s274 = scalar_lea.vmem [#allocation5], %s273
        // Predicated region
        $region37: #{tpu_custom_call.1} parent=31 // pred_check
          %p275 = pneg %p89
        $region38: #{tpu_custom_call.1} parent=31 // pred_check_branch
          %277 = sbr.rel (%p275) target = $region40
        $region39: #{tpu_custom_call.1} parent=31 // pred_region
          %278 = dma.done %s271, 512
        $region40: #{tpu_custom_call.1} parent=31 // pred_fallthru
          _
        %s279 = sand.u32 %s28, 1
        %s280 = scalar_lea.sflag [#allocation6], %s279
        %s281 = sand.u32 %s102, 1
        %s282 = smul.addr %s281, 384
        %s283 = scalar_lea.vmem [#allocation7], %s282
        // Predicated region
        $region41: #{tpu_custom_call.1} parent=31 // pred_check
          %p284 = pneg %p115
        $region42: #{tpu_custom_call.1} parent=31 // pred_check_branch
          %286 = sbr.rel (%p284) target = $region44
        $region43: #{tpu_custom_call.1} parent=31 // pred_region
          %287 = dma.done %s280, 6144
        $region44: #{tpu_custom_call.1} parent=31 // pred_fallthru
          _
        %s288 = sand.u32 %s48, 1
        %s289 = scalar_lea.sflag [#allocation3], %s288
        %s290 = sand.u32 %s48, 1
        %s291 = smul.addr %s290, 384
        %s292 = scalar_lea.vmem [#allocation2], %s291
        %p293 = pneg %p61
        %p294 = pneg %p58
        %s295 = sand.u32 %s28, 1
        %s296 = scalar_lea.sflag [#allocation6], %s295
        %s297 = sand.u32 %s76, 1
        %s298 = smul.addr %s297, 32
        %s299 = scalar_lea.vmem [#allocation5], %s298
        %p300 = pneg %p89
        %p301 = pneg %p86
        %s302 = sand.u32 %s28, 1
        %s303 = scalar_lea.sflag [#allocation6], %s302
        %s304 = sand.u32 %s102, 1
        %s305 = smul.addr %s304, 384
        %s306 = scalar_lea.vmem [#allocation7], %s305
        %p307 = pneg %p115
        %p308 = pneg %p112
        %p309 = pneg %p143
        %p310 = pneg %p140
        %s311 = sand.u32 %s130, 1
        %s312 = scalar_lea.sflag [#allocation4], %s311
        %s313 = sand.u32 %s130, 1
        %s314 = smul.addr %s313, 1536
        %s315 = scalar_lea.vmem [#allocation8], %s314
        %p316 = pneg %p171
        %p317 = pneg %p168
        %s318 = sand.u32 %s158, 1
        %s319 = scalar_lea.sflag [#allocation10], %s318
        %s320 = sand.u32 %s158, 1
        %s321 = smul.addr %s320, 32
        %s322 = scalar_lea.vmem [#allocation9], %s321
        %v323 = vld [vmem:[%s265] sm:$0xff]
        %v324 = vld [vmem:[%s265 + $0x8] sm:$0xff]
        %v325 = vld [vmem:[%s265 + $0x10] sm:$0xff]
        %v326 = vld [vmem:[%s265 + $0x18] sm:$0xff]
        %v327 = vld [vmem:[%s265 + $0x20] sm:$0xff]
        %v328 = vld [vmem:[%s265 + $0x28] sm:$0xff]
        %v329 = vld [vmem:[%s265 + $0x30] sm:$0xff]
        %v330 = vld [vmem:[%s265 + $0x38] sm:$0xff]
        %v331 = vld [vmem:[%s265 + $0x40] sm:$0xff]
        %v332 = vld [vmem:[%s265 + $0x48] sm:$0xff]
        %v333 = vld [vmem:[%s265 + $0x50] sm:$0xff]
        %v334 = vld [vmem:[%s265 + $0x58] sm:$0xff]
        %v335 = vld [vmem:[%s265 + $0x60] sm:$0xff]
        %v336 = vld [vmem:[%s265 + $0x68] sm:$0xff]
        %v337 = vld [vmem:[%s265 + $0x70] sm:$0xff]
        %v338 = vld [vmem:[%s265 + $0x78] sm:$0xff]
        %v339 = vld [vmem:[%s265 + $0x80] sm:$0xff]
        %v340 = vld [vmem:[%s265 + $0x88] sm:$0xff]
        %v341 = vld [vmem:[%s265 + $0x90] sm:$0xff]
        %v342 = vld [vmem:[%s265 + $0x98] sm:$0xff]
        %v343 = vld [vmem:[%s265 + $0xa0] sm:$0xff]
        %v344 = vld [vmem:[%s265 + $0xa8] sm:$0xff]
        %v345 = vld [vmem:[%s265 + $0xb0] sm:$0xff]
        %v346 = vld [vmem:[%s265 + $0xb8] sm:$0xff]
        %v347 = vld [vmem:[%s265 + $0xc0] sm:$0xff]
        %v348 = vld [vmem:[%s265 + $0xc8] sm:$0xff]
        %v349 = vld [vmem:[%s265 + $0xd0] sm:$0xff]
        %v350 = vld [vmem:[%s265 + $0xd8] sm:$0xff]
        %v351 = vld [vmem:[%s265 + $0xe0] sm:$0xff]
        %v352 = vld [vmem:[%s265 + $0xe8] sm:$0xff]
        %v353 = vld [vmem:[%s265 + $0xf0] sm:$0xff]
        %v354 = vld [vmem:[%s265 + $0xf8] sm:$0xff]
        %v355 = vld [vmem:[%s265 + $0x100] sm:$0xff]
        %v356 = vld [vmem:[%s265 + $0x108] sm:$0xff]
        %v357 = vld [vmem:[%s265 + $0x110] sm:$0xff]
        %v358 = vld [vmem:[%s265 + $0x118] sm:$0xff]
        %v359 = vld [vmem:[%s265 + $0x120] sm:$0xff]
        %v360 = vld [vmem:[%s265 + $0x128] sm:$0xff]
        %v361 = vld [vmem:[%s265 + $0x130] sm:$0xff]
        %v362 = vld [vmem:[%s265 + $0x138] sm:$0xff]
        %v363 = vld [vmem:[%s265 + $0x140] sm:$0xff]
        %v364 = vld [vmem:[%s265 + $0x148] sm:$0xff]
        %v365 = vld [vmem:[%s265 + $0x150] sm:$0xff]
        %v366 = vld [vmem:[%s265 + $0x158] sm:$0xff]
        %v367 = vld [vmem:[%s265 + $0x160] sm:$0xff]
        %v368 = vld [vmem:[%s265 + $0x168] sm:$0xff]
        %v369 = vld [vmem:[%s265 + $0x170] sm:$0xff]
        %v370 = vld [vmem:[%s265 + $0x178] sm:$0xff]
        %v371 = vld [vmem:[%s274] sm:$0xff]
        %v372 = vld [vmem:[%s274 + $0x8] sm:$0xff]
        %v373 = vld [vmem:[%s274 + $0x10] sm:$0xff]
        %v374 = vld [vmem:[%s274 + $0x18] sm:$0xff]
        %v375 = vmul.f32 %v371, 0.17677669
        %v376 = vmul.f32 %v372, 0.17677669
        %v377 = vmul.f32 %v373, 0.17677669
        %v378 = vmul.f32 %v374, 0.17677669
        %v379 = vld [vmem:[%s283] sm:$0xff]
        %v380 = vld [vmem:[%s283 + $0x8] sm:$0xff]
        %v381 = vld [vmem:[%s283 + $0x10] sm:$0xff]
        %v382 = vld [vmem:[%s283 + $0x18] sm:$0xff]
        %v383 = vld [vmem:[%s283 + $0x20] sm:$0xff]
        %v384 = vld [vmem:[%s283 + $0x28] sm:$0xff]
        %v385 = vld [vmem:[%s283 + $0x30] sm:$0xff]
        %v386 = vld [vmem:[%s283 + $0x38] sm:$0xff]
        %v387 = vld [vmem:[%s283 + $0x40] sm:$0xff]
        %v388 = vld [vmem:[%s283 + $0x48] sm:$0xff]
        %v389 = vld [vmem:[%s283 + $0x50] sm:$0xff]
        %v390 = vld [vmem:[%s283 + $0x58] sm:$0xff]
        %v391 = vld [vmem:[%s283 + $0x60] sm:$0xff]
        %v392 = vld [vmem:[%s283 + $0x68] sm:$0xff]
        %v393 = vld [vmem:[%s283 + $0x70] sm:$0xff]
        %v394 = vld [vmem:[%s283 + $0x78] sm:$0xff]
        %v395 = vld [vmem:[%s283 + $0x80] sm:$0xff]
        %v396 = vld [vmem:[%s283 + $0x88] sm:$0xff]
        %v397 = vld [vmem:[%s283 + $0x90] sm:$0xff]
        %v398 = vld [vmem:[%s283 + $0x98] sm:$0xff]
        %v399 = vld [vmem:[%s283 + $0xa0] sm:$0xff]
        %v400 = vld [vmem:[%s283 + $0xa8] sm:$0xff]
        %v401 = vld [vmem:[%s283 + $0xb0] sm:$0xff]
        %v402 = vld [vmem:[%s283 + $0xb8] sm:$0xff]
        %v403 = vld [vmem:[%s283 + $0xc0] sm:$0xff]
        %v404 = vld [vmem:[%s283 + $0xc8] sm:$0xff]
        %v405 = vld [vmem:[%s283 + $0xd0] sm:$0xff]
        %v406 = vld [vmem:[%s283 + $0xd8] sm:$0xff]
        %v407 = vld [vmem:[%s283 + $0xe0] sm:$0xff]
        %v408 = vld [vmem:[%s283 + $0xe8] sm:$0xff]
        %v409 = vld [vmem:[%s283 + $0xf0] sm:$0xff]
        %v410 = vld [vmem:[%s283 + $0xf8] sm:$0xff]
        %v411 = vld [vmem:[%s283 + $0x100] sm:$0xff]
        %v412 = vld [vmem:[%s283 + $0x108] sm:$0xff]
        %v413 = vld [vmem:[%s283 + $0x110] sm:$0xff]
        %v414 = vld [vmem:[%s283 + $0x118] sm:$0xff]
        %v415 = vld [vmem:[%s283 + $0x120] sm:$0xff]
        %v416 = vld [vmem:[%s283 + $0x128] sm:$0xff]
        %v417 = vld [vmem:[%s283 + $0x130] sm:$0xff]
        %v418 = vld [vmem:[%s283 + $0x138] sm:$0xff]
        %v419 = vld [vmem:[%s283 + $0x140] sm:$0xff]
        %v420 = vld [vmem:[%s283 + $0x148] sm:$0xff]
        %v421 = vld [vmem:[%s283 + $0x150] sm:$0xff]
        %v422 = vld [vmem:[%s283 + $0x158] sm:$0xff]
        %v423 = vld [vmem:[%s283 + $0x160] sm:$0xff]
        %v424 = vld [vmem:[%s283 + $0x168] sm:$0xff]
        %v425 = vld [vmem:[%s283 + $0x170] sm:$0xff]
        %v426 = vld [vmem:[%s283 + $0x178] sm:$0xff]
        %427 = vxpose.xlu0.b32.start [1/16] %v323, 128
        %428 = vxpose.xlu0.b32.cont [2/16] %v335, 128
        %429 = vxpose.xlu0.b32.cont [3/16] %v347, 128
        %430 = vxpose.xlu0.b32.cont [4/16] %v359, 128
        %431 = vxpose.xlu0.b32.cont [5/16] 0.0, 128
        %432 = vxpose.xlu0.b32.cont [6/16] 0.0, 128
        %433 = vxpose.xlu0.b32.cont [7/16] 0.0, 128
        %434 = vxpose.xlu0.b32.cont [8/16] 0.0, 128
        %435 = vxpose.xlu0.b32.cont [9/16] 0.0, 128
        %436 = vxpose.xlu0.b32.cont [10/16] 0.0, 128
        %437 = vxpose.xlu0.b32.cont [11/16] 0.0, 128
        %438 = vxpose.xlu0.b32.cont [12/16] 0.0, 128
        %439 = vxpose.xlu0.b32.cont [13/16] 0.0, 128
        %440 = vxpose.xlu0.b32.cont [14/16] 0.0, 128
        %441 = vxpose.xlu0.b32.cont [15/16] 0.0, 128
        %442 = vxpose.xlu0.b32.end [16/16] 0.0, 128
        %v443 = vpop.trf.xlu0
        %v444 = vpop.trf.xlu0
        %v445 = vpop.trf.xlu0
        %v446 = vpop.trf.xlu0
        %v447 = vpop.trf.xlu0
        %v448 = vpop.trf.xlu0
        %v449 = vpop.trf.xlu0
        %v450 = vpop.trf.xlu0
        %v451 = vpop.trf.xlu0
        %v452 = vpop.trf.xlu0
        %v453 = vpop.trf.xlu0
        %v454 = vpop.trf.xlu0
        %v455 = vpop.trf.xlu0
        %v456 = vpop.trf.xlu0
        %v457 = vpop.trf.xlu0
        %v458 = vpop.trf.xlu0
        %459 = vxpose.xlu0.b32.start [1/16] %v324, 128
        %460 = vxpose.xlu0.b32.cont [2/16] %v336, 128
        %461 = vxpose.xlu0.b32.cont [3/16] %v348, 128
        %462 = vxpose.xlu0.b32.cont [4/16] %v360, 128
        %463 = vxpose.xlu0.b32.cont [5/16] 0.0, 128
        %464 = vxpose.xlu0.b32.cont [6/16] 0.0, 128
        %465 = vxpose.xlu0.b32.cont [7/16] 0.0, 128
        %466 = vxpose.xlu0.b32.cont [8/16] 0.0, 128
        %467 = vxpose.xlu0.b32.cont [9/16] 0.0, 128
        %468 = vxpose.xlu0.b32.cont [10/16] 0.0, 128
        %469 = vxpose.xlu0.b32.cont [11/16] 0.0, 128
        %470 = vxpose.xlu0.b32.cont [12/16] 0.0, 128
        %471 = vxpose.xlu0.b32.cont [13/16] 0.0, 128
        %472 = vxpose.xlu0.b32.cont [14/16] 0.0, 128
        %473 = vxpose.xlu0.b32.cont [15/16] 0.0, 128
        %474 = vxpose.xlu0.b32.end [16/16] 0.0, 128
        %v475 = vpop.trf.xlu0
        %v476 = vpop.trf.xlu0
        %v477 = vpop.trf.xlu0
        %v478 = vpop.trf.xlu0
        %v479 = vpop.trf.xlu0
        %v480 = vpop.trf.xlu0
        %v481 = vpop.trf.xlu0
        %v482 = vpop.trf.xlu0
        %v483 = vpop.trf.xlu0
        %v484 = vpop.trf.xlu0
        %v485 = vpop.trf.xlu0
        %v486 = vpop.trf.xlu0
        %v487 = vpop.trf.xlu0
        %v488 = vpop.trf.xlu0
        %v489 = vpop.trf.xlu0
        %v490 = vpop.trf.xlu0
        %491 = vxpose.xlu0.b32.start [1/16] %v325, 128
        %492 = vxpose.xlu0.b32.cont [2/16] %v337, 128
        %493 = vxpose.xlu0.b32.cont [3/16] %v349, 128
        %494 = vxpose.xlu0.b32.cont [4/16] %v361, 128
        %495 = vxpose.xlu0.b32.cont [5/16] 0.0, 128
        %496 = vxpose.xlu0.b32.cont [6/16] 0.0, 128
        %497 = vxpose.xlu0.b32.cont [7/16] 0.0, 128
        %498 = vxpose.xlu0.b32.cont [8/16] 0.0, 128
        %499 = vxpose.xlu0.b32.cont [9/16] 0.0, 128
        %500 = vxpose.xlu0.b32.cont [10/16] 0.0, 128
        %501 = vxpose.xlu0.b32.cont [11/16] 0.0, 128
        %502 = vxpose.xlu0.b32.cont [12/16] 0.0, 128
        %503 = vxpose.xlu0.b32.cont [13/16] 0.0, 128
        %504 = vxpose.xlu0.b32.cont [14/16] 0.0, 128
        %505 = vxpose.xlu0.b32.cont [15/16] 0.0, 128
        %506 = vxpose.xlu0.b32.end [16/16] 0.0, 128
        %v507 = vpop.trf.xlu0
        %v508 = vpop.trf.xlu0
        %v509 = vpop.trf.xlu0
        %v510 = vpop.trf.xlu0
        %v511 = vpop.trf.xlu0
        %v512 = vpop.trf.xlu0
        %v513 = vpop.trf.xlu0
        %v514 = vpop.trf.xlu0
        %v515 = vpop.trf.xlu0
        %v516 = vpop.trf.xlu0
        %v517 = vpop.trf.xlu0
        %v518 = vpop.trf.xlu0
        %v519 = vpop.trf.xlu0
        %v520 = vpop.trf.xlu0
        %v521 = vpop.trf.xlu0
        %v522 = vpop.trf.xlu0
        %523 = vxpose.xlu0.b32.start [1/16] %v326, 128
        %524 = vxpose.xlu0.b32.cont [2/16] %v338, 128
        %525 = vxpose.xlu0.b32.cont [3/16] %v350, 128
        %526 = vxpose.xlu0.b32.cont [4/16] %v362, 128
        %527 = vxpose.xlu0.b32.cont [5/16] 0.0, 128
        %528 = vxpose.xlu0.b32.cont [6/16] 0.0, 128
        %529 = vxpose.xlu0.b32.cont [7/16] 0.0, 128
        %530 = vxpose.xlu0.b32.cont [8/16] 0.0, 128
        %531 = vxpose.xlu0.b32.cont [9/16] 0.0, 128
        %532 = vxpose.xlu0.b32.cont [10/16] 0.0, 128
        %533 = vxpose.xlu0.b32.cont [11/16] 0.0, 128
        %534 = vxpose.xlu0.b32.cont [12/16] 0.0, 128
        %535 = vxpose.xlu0.b32.cont [13/16] 0.0, 128
        %536 = vxpose.xlu0.b32.cont [14/16] 0.0, 128
        %537 = vxpose.xlu0.b32.cont [15/16] 0.0, 128
        %538 = vxpose.xlu0.b32.end [16/16] 0.0, 128
        %v539 = vpop.trf.xlu0
        %v540 = vpop.trf.xlu0
        %v541 = vpop.trf.xlu0
        %v542 = vpop.trf.xlu0
        %v543 = vpop.trf.xlu0
        %v544 = vpop.trf.xlu0
        %v545 = vpop.trf.xlu0
        %v546 = vpop.trf.xlu0
        %v547 = vpop.trf.xlu0
        %v548 = vpop.trf.xlu0
        %v549 = vpop.trf.xlu0
        %v550 = vpop.trf.xlu0
        %v551 = vpop.trf.xlu0
        %v552 = vpop.trf.xlu0
        %v553 = vpop.trf.xlu0
        %v554 = vpop.trf.xlu0
        %555 = vxpose.xlu0.b32.start [1/16] %v327, 128
        %556 = vxpose.xlu0.b32.cont [2/16] %v339, 128
        %557 = vxpose.xlu0.b32.cont [3/16] %v351, 128
        %558 = vxpose.xlu0.b32.cont [4/16] %v363, 128
        %559 = vxpose.xlu0.b32.cont [5/16] 0.0, 128
        %560 = vxpose.xlu0.b32.cont [6/16] 0.0, 128
        %561 = vxpose.xlu0.b32.cont [7/16] 0.0, 128
        %562 = vxpose.xlu0.b32.cont [8/16] 0.0, 128
        %563 = vxpose.xlu0.b32.cont [9/16] 0.0, 128
        %564 = vxpose.xlu0.b32.cont [10/16] 0.0, 128
        %565 = vxpose.xlu0.b32.cont [11/16] 0.0, 128
        %566 = vxpose.xlu0.b32.cont [12/16] 0.0, 128
        %567 = vxpose.xlu0.b32.cont [13/16] 0.0, 128
        %568 = vxpose.xlu0.b32.cont [14/16] 0.0, 128
        %569 = vxpose.xlu0.b32.cont [15/16] 0.0, 128
        %570 = vxpose.xlu0.b32.end [16/16] 0.0, 128
        %v571 = vpop.trf.xlu0
        %v572 = vpop.trf.xlu0
        %v573 = vpop.trf.xlu0
        %v574 = vpop.trf.xlu0
        %v575 = vpop.trf.xlu0
        %v576 = vpop.trf.xlu0
        %v577 = vpop.trf.xlu0
        %v578 = vpop.trf.xlu0
        %v579 = vpop.trf.xlu0
        %v580 = vpop.trf.xlu0
        %v581 = vpop.trf.xlu0
        %v582 = vpop.trf.xlu0
        %v583 = vpop.trf.xlu0
        %v584 = vpop.trf.xlu0
        %v585 = vpop.trf.xlu0
        %v586 = vpop.trf.xlu0
        %587 = vxpose.xlu0.b32.start [1/16] %v328, 128
        %588 = vxpose.xlu0.b32.cont [2/16] %v340, 128
        %589 = vxpose.xlu0.b32.cont [3/16] %v352, 128
        %590 = vxpose.xlu0.b32.cont [4/16] %v364, 128
        %591 = vxpose.xlu0.b32.cont [5/16] 0.0, 128
        %592 = vxpose.xlu0.b32.cont [6/16] 0.0, 128
        %593 = vxpose.xlu0.b32.cont [7/16] 0.0, 128
        %594 = vxpose.xlu0.b32.cont [8/16] 0.0, 128
        %595 = vxpose.xlu0.b32.cont [9/16] 0.0, 128
        %596 = vxpose.xlu0.b32.cont [10/16] 0.0, 128
        %597 = vxpose.xlu0.b32.cont [11/16] 0.0, 128
        %598 = vxpose.xlu0.b32.cont [12/16] 0.0, 128
        %599 = vxpose.xlu0.b32.cont [13/16] 0.0, 128
        %600 = vxpose.xlu0.b32.cont [14/16] 0.0, 128
        %601 = vxpose.xlu0.b32.cont [15/16] 0.0, 128
        %602 = vxpose.xlu0.b32.end [16/16] 0.0, 128
        %v603 = vpop.trf.xlu0
        %v604 = vpop.trf.xlu0
        %v605 = vpop.trf.xlu0
        %v606 = vpop.trf.xlu0
        %v607 = vpop.trf.xlu0
        %v608 = vpop.trf.xlu0
        %v609 = vpop.trf.xlu0
        %v610 = vpop.trf.xlu0
        %v611 = vpop.trf.xlu0
        %v612 = vpop.trf.xlu0
        %v613 = vpop.trf.xlu0
        %v614 = vpop.trf.xlu0
        %v615 = vpop.trf.xlu0
        %v616 = vpop.trf.xlu0
        %v617 = vpop.trf.xlu0
        %v618 = vpop.trf.xlu0
        %619 = vxpose.xlu0.b32.start [1/16] %v329, 128
        %620 = vxpose.xlu0.b32.cont [2/16] %v341, 128
        %621 = vxpose.xlu0.b32.cont [3/16] %v353, 128
        %622 = vxpose.xlu0.b32.cont [4/16] %v365, 128
        %623 = vxpose.xlu0.b32.cont [5/16] 0.0, 128
        %624 = vxpose.xlu0.b32.cont [6/16] 0.0, 128
        %625 = vxpose.xlu0.b32.cont [7/16] 0.0, 128
        %626 = vxpose.xlu0.b32.cont [8/16] 0.0, 128
        %627 = vxpose.xlu0.b32.cont [9/16] 0.0, 128
        %628 = vxpose.xlu0.b32.cont [10/16] 0.0, 128
        %629 = vxpose.xlu0.b32.cont [11/16] 0.0, 128
        %630 = vxpose.xlu0.b32.cont [12/16] 0.0, 128
        %631 = vxpose.xlu0.b32.cont [13/16] 0.0, 128
        %632 = vxpose.xlu0.b32.cont [14/16] 0.0, 128
        %633 = vxpose.xlu0.b32.cont [15/16] 0.0, 128
        %634 = vxpose.xlu0.b32.end [16/16] 0.0, 128
        %v635 = vpop.trf.xlu0
        %v636 = vpop.trf.xlu0
        %v637 = vpop.trf.xlu0
        %v638 = vpop.trf.xlu0
        %v639 = vpop.trf.xlu0
        %v640 = vpop.trf.xlu0
        %v641 = vpop.trf.xlu0
        %v642 = vpop.trf.xlu0
        %v643 = vpop.trf.xlu0
        %v644 = vpop.trf.xlu0
        %v645 = vpop.trf.xlu0
        %v646 = vpop.trf.xlu0
        %v647 = vpop.trf.xlu0
        %v648 = vpop.trf.xlu0
        %v649 = vpop.trf.xlu0
        %v650 = vpop.trf.xlu0
        %651 = vxpose.xlu0.b32.start [1/16] %v330, 128
        %652 = vxpose.xlu0.b32.cont [2/16] %v342, 128
        %653 = vxpose.xlu0.b32.cont [3/16] %v354, 128
        %654 = vxpose.xlu0.b32.cont [4/16] %v366, 128
        %655 = vxpose.xlu0.b32.cont [5/16] 0.0, 128
        %656 = vxpose.xlu0.b32.cont [6/16] 0.0, 128
        %657 = vxpose.xlu0.b32.cont [7/16] 0.0, 128
        %658 = vxpose.xlu0.b32.cont [8/16] 0.0, 128
        %659 = vxpose.xlu0.b32.cont [9/16] 0.0, 128
        %660 = vxpose.xlu0.b32.cont [10/16] 0.0, 128
        %661 = vxpose.xlu0.b32.cont [11/16] 0.0, 128
        %662 = vxpose.xlu0.b32.cont [12/16] 0.0, 128
        %663 = vxpose.xlu0.b32.cont [13/16] 0.0, 128
        %664 = vxpose.xlu0.b32.cont [14/16] 0.0, 128
        %665 = vxpose.xlu0.b32.cont [15/16] 0.0, 128
        %666 = vxpose.xlu0.b32.end [16/16] 0.0, 128
        %v667 = vpop.trf.xlu0
        %v668 = vpop.trf.xlu0
        %v669 = vpop.trf.xlu0
        %v670 = vpop.trf.xlu0
        %v671 = vpop.trf.xlu0
        %v672 = vpop.trf.xlu0
        %v673 = vpop.trf.xlu0
        %v674 = vpop.trf.xlu0
        %v675 = vpop.trf.xlu0
        %v676 = vpop.trf.xlu0
        %v677 = vpop.trf.xlu0
        %v678 = vpop.trf.xlu0
        %v679 = vpop.trf.xlu0
        %v680 = vpop.trf.xlu0
        %v681 = vpop.trf.xlu0
        %v682 = vpop.trf.xlu0
        %683 = vxpose.xlu0.b32.start [1/16] %v331, 128
        %684 = vxpose.xlu0.b32.cont [2/16] %v343, 128
        %685 = vxpose.xlu0.b32.cont [3/16] %v355, 128
        %686 = vxpose.xlu0.b32.cont [4/16] %v367, 128
        %687 = vxpose.xlu0.b32.cont [5/16] 0.0, 128
        %688 = vxpose.xlu0.b32.cont [6/16] 0.0, 128
        %689 = vxpose.xlu0.b32.cont [7/16] 0.0, 128
        %690 = vxpose.xlu0.b32.cont [8/16] 0.0, 128
        %691 = vxpose.xlu0.b32.cont [9/16] 0.0, 128
        %692 = vxpose.xlu0.b32.cont [10/16] 0.0, 128
        %693 = vxpose.xlu0.b32.cont [11/16] 0.0, 128
        %694 = vxpose.xlu0.b32.cont [12/16] 0.0, 128
        %695 = vxpose.xlu0.b32.cont [13/16] 0.0, 128
        %696 = vxpose.xlu0.b32.cont [14/16] 0.0, 128
        %697 = vxpose.xlu0.b32.cont [15/16] 0.0, 128
        %698 = vxpose.xlu0.b32.end [16/16] 0.0, 128
        %v699 = vpop.trf.xlu0
        %v700 = vpop.trf.xlu0
        %v701 = vpop.trf.xlu0
        %v702 = vpop.trf.xlu0
        %v703 = vpop.trf.xlu0
        %v704 = vpop.trf.xlu0
        %v705 = vpop.trf.xlu0
        %v706 = vpop.trf.xlu0
        %v707 = vpop.trf.xlu0
        %v708 = vpop.trf.xlu0
        %v709 = vpop.trf.xlu0
        %v710 = vpop.trf.xlu0
        %v711 = vpop.trf.xlu0
        %v712 = vpop.trf.xlu0
        %v713 = vpop.trf.xlu0
        %v714 = vpop.trf.xlu0
        %715 = vxpose.xlu0.b32.start [1/16] %v332, 128
        %716 = vxpose.xlu0.b32.cont [2/16] %v344, 128
        %717 = vxpose.xlu0.b32.cont [3/16] %v356, 128
        %718 = vxpose.xlu0.b32.cont [4/16] %v368, 128
        %719 = vxpose.xlu0.b32.cont [5/16] 0.0, 128
        %720 = vxpose.xlu0.b32.cont [6/16] 0.0, 128
        %721 = vxpose.xlu0.b32.cont [7/16] 0.0, 128
        %722 = vxpose.xlu0.b32.cont [8/16] 0.0, 128
        %723 = vxpose.xlu0.b32.cont [9/16] 0.0, 128
        %724 = vxpose.xlu0.b32.cont [10/16] 0.0, 128
        %725 = vxpose.xlu0.b32.cont [11/16] 0.0, 128
        %726 = vxpose.xlu0.b32.cont [12/16] 0.0, 128
        %727 = vxpose.xlu0.b32.cont [13/16] 0.0, 128
        %728 = vxpose.xlu0.b32.cont [14/16] 0.0, 128
        %729 = vxpose.xlu0.b32.cont [15/16] 0.0, 128
        %730 = vxpose.xlu0.b32.end [16/16] 0.0, 128
        %v731 = vpop.trf.xlu0
        %v732 = vpop.trf.xlu0
        %v733 = vpop.trf.xlu0
        %v734 = vpop.trf.xlu0
        %v735 = vpop.trf.xlu0
        %v736 = vpop.trf.xlu0
        %v737 = vpop.trf.xlu0
        %v738 = vpop.trf.xlu0
        %v739 = vpop.trf.xlu0
        %v740 = vpop.trf.xlu0
        %v741 = vpop.trf.xlu0
        %v742 = vpop.trf.xlu0
        %v743 = vpop.trf.xlu0
        %v744 = vpop.trf.xlu0
        %v745 = vpop.trf.xlu0
        %v746 = vpop.trf.xlu0
        %747 = vxpose.xlu0.b32.start [1/16] %v333, 128
        %748 = vxpose.xlu0.b32.cont [2/16] %v345, 128
        %749 = vxpose.xlu0.b32.cont [3/16] %v357, 128
        %750 = vxpose.xlu0.b32.cont [4/16] %v369, 128
        %751 = vxpose.xlu0.b32.cont [5/16] 0.0, 128
        %752 = vxpose.xlu0.b32.cont [6/16] 0.0, 128
        %753 = vxpose.xlu0.b32.cont [7/16] 0.0, 128
        %754 = vxpose.xlu0.b32.cont [8/16] 0.0, 128
        %755 = vxpose.xlu0.b32.cont [9/16] 0.0, 128
        %756 = vxpose.xlu0.b32.cont [10/16] 0.0, 128
        %757 = vxpose.xlu0.b32.cont [11/16] 0.0, 128
        %758 = vxpose.xlu0.b32.cont [12/16] 0.0, 128
        %759 = vxpose.xlu0.b32.cont [13/16] 0.0, 128
        %760 = vxpose.xlu0.b32.cont [14/16] 0.0, 128
        %761 = vxpose.xlu0.b32.cont [15/16] 0.0, 128
        %762 = vxpose.xlu0.b32.end [16/16] 0.0, 128
        %v763 = vpop.trf.xlu0
        %v764 = vpop.trf.xlu0
        %v765 = vpop.trf.xlu0
        %v766 = vpop.trf.xlu0
        %v767 = vpop.trf.xlu0
        %v768 = vpop.trf.xlu0
        %v769 = vpop.trf.xlu0
        %v770 = vpop.trf.xlu0
        %v771 = vpop.trf.xlu0
        %v772 = vpop.trf.xlu0
        %v773 = vpop.trf.xlu0
        %v774 = vpop.trf.xlu0
        %v775 = vpop.trf.xlu0
        %v776 = vpop.trf.xlu0
        %v777 = vpop.trf.xlu0
        %v778 = vpop.trf.xlu0
        %779 = vxpose.xlu0.b32.start [1/16] %v334, 128
        %780 = vxpose.xlu0.b32.cont [2/16] %v346, 128
        %781 = vxpose.xlu0.b32.cont [3/16] %v358, 128
        %782 = vxpose.xlu0.b32.cont [4/16] %v370, 128
        %783 = vxpose.xlu0.b32.cont [5/16] 0.0, 128
        %784 = vxpose.xlu0.b32.cont [6/16] 0.0, 128
        %785 = vxpose.xlu0.b32.cont [7/16] 0.0, 128
        %786 = vxpose.xlu0.b32.cont [8/16] 0.0, 128
        %787 = vxpose.xlu0.b32.cont [9/16] 0.0, 128
        %788 = vxpose.xlu0.b32.cont [10/16] 0.0, 128
        %789 = vxpose.xlu0.b32.cont [11/16] 0.0, 128
        %790 = vxpose.xlu0.b32.cont [12/16] 0.0, 128
        %791 = vxpose.xlu0.b32.cont [13/16] 0.0, 128
        %792 = vxpose.xlu0.b32.cont [14/16] 0.0, 128
        %793 = vxpose.xlu0.b32.cont [15/16] 0.0, 128
        %794 = vxpose.xlu0.b32.end [16/16] 0.0, 128
        %v795 = vpop.trf.xlu0
        %v796 = vpop.trf.xlu0
        %v797 = vpop.trf.xlu0
        %v798 = vpop.trf.xlu0
        %v799 = vpop.trf.xlu0
        %v800 = vpop.trf.xlu0
        %v801 = vpop.trf.xlu0
        %v802 = vpop.trf.xlu0
        %v803 = vpop.trf.xlu0
        %v804 = vpop.trf.xlu0
        %v805 = vpop.trf.xlu0
        %v806 = vpop.trf.xlu0
        %v807 = vpop.trf.xlu0
        %v808 = vpop.trf.xlu0
        %v809 = vpop.trf.xlu0
        %v810 = vpop.trf.xlu0
        %vm811 = vcmask 261120
        %v813 = vsel %vm811, %v443, 0
        %v816 = vsel %vm811, %v444, 0
        %v819 = vsel %vm811, %v445, 0
        %v822 = vsel %vm811, %v446, 0
        %v825 = vsel %vm811, %v447, 0
        %v828 = vsel %vm811, %v448, 0
        %v831 = vsel %vm811, %v449, 0
        %v834 = vsel %vm811, %v450, 0
        %v837 = vsel %vm811, %v451, 0
        %v840 = vsel %vm811, %v452, 0
        %v843 = vsel %vm811, %v453, 0
        %v846 = vsel %vm811, %v454, 0
        %v849 = vsel %vm811, %v455, 0
        %v852 = vsel %vm811, %v456, 0
        %v855 = vsel %vm811, %v457, 0
        %v858 = vsel %vm811, %v458, 0
        %v861 = vsel %vm811, %v475, 0
        %v864 = vsel %vm811, %v476, 0
        %v867 = vsel %vm811, %v477, 0
        %v870 = vsel %vm811, %v478, 0
        %v873 = vsel %vm811, %v479, 0
        %v876 = vsel %vm811, %v480, 0
        %v879 = vsel %vm811, %v481, 0
        %v882 = vsel %vm811, %v482, 0
        %v885 = vsel %vm811, %v483, 0
        %v888 = vsel %vm811, %v484, 0
        %v891 = vsel %vm811, %v485, 0
        %v894 = vsel %vm811, %v486, 0
        %v897 = vsel %vm811, %v487, 0
        %v900 = vsel %vm811, %v488, 0
        %v903 = vsel %vm811, %v489, 0
        %v906 = vsel %vm811, %v490, 0
        %v909 = vsel %vm811, %v507, 0
        %v912 = vsel %vm811, %v508, 0
        %v915 = vsel %vm811, %v509, 0
        %v918 = vsel %vm811, %v510, 0
        %v921 = vsel %vm811, %v511, 0
        %v924 = vsel %vm811, %v512, 0
        %v927 = vsel %vm811, %v513, 0
        %v930 = vsel %vm811, %v514, 0
        %v933 = vsel %vm811, %v515, 0
        %v936 = vsel %vm811, %v516, 0
        %v939 = vsel %vm811, %v517, 0
        %v942 = vsel %vm811, %v518, 0
        %v945 = vsel %vm811, %v519, 0
        %v948 = vsel %vm811, %v520, 0
        %v951 = vsel %vm811, %v521, 0
        %v954 = vsel %vm811, %v522, 0
        %v957 = vsel %vm811, %v539, 0
        %v960 = vsel %vm811, %v540, 0
        %v963 = vsel %vm811, %v541, 0
        %v966 = vsel %vm811, %v542, 0
        %v969 = vsel %vm811, %v543, 0
        %v972 = vsel %vm811, %v544, 0
        %v975 = vsel %vm811, %v545, 0
        %v978 = vsel %vm811, %v546, 0
        %v981 = vsel %vm811, %v547, 0
        %v984 = vsel %vm811, %v548, 0
        %v987 = vsel %vm811, %v549, 0
        %v990 = vsel %vm811, %v550, 0
        %v993 = vsel %vm811, %v551, 0
        %v996 = vsel %vm811, %v552, 0
        %v999 = vsel %vm811, %v553, 0
        %v1002 = vsel %vm811, %v554, 0
        %v1005 = vsel %vm811, %v571, 0
        %v1008 = vsel %vm811, %v572, 0
        %v1011 = vsel %vm811, %v573, 0
        %v1014 = vsel %vm811, %v574, 0
        %v1017 = vsel %vm811, %v575, 0
        %v1020 = vsel %vm811, %v576, 0
        %v1023 = vsel %vm811, %v577, 0
        %v1026 = vsel %vm811, %v578, 0
        %v1029 = vsel %vm811, %v579, 0
        %v1032 = vsel %vm811, %v580, 0
        %v1035 = vsel %vm811, %v581, 0
        %v1038 = vsel %vm811, %v582, 0
        %v1041 = vsel %vm811, %v583, 0
        %v1044 = vsel %vm811, %v584, 0
        %v1047 = vsel %vm811, %v585, 0
        %v1050 = vsel %vm811, %v586, 0
        %v1053 = vsel %vm811, %v603, 0
        %v1056 = vsel %vm811, %v604, 0
        %v1059 = vsel %vm811, %v605, 0
        %v1062 = vsel %vm811, %v606, 0
        %v1065 = vsel %vm811, %v607, 0
        %v1068 = vsel %vm811, %v608, 0
        %v1071 = vsel %vm811, %v609, 0
        %v1074 = vsel %vm811, %v610, 0
        %v1077 = vsel %vm811, %v611, 0
        %v1080 = vsel %vm811, %v612, 0
        %v1083 = vsel %vm811, %v613, 0
        %v1086 = vsel %vm811, %v614, 0
        %v1089 = vsel %vm811, %v615, 0
        %v1092 = vsel %vm811, %v616, 0
        %v1095 = vsel %vm811, %v617, 0
        %v1098 = vsel %vm811, %v618, 0
        %v1101 = vsel %vm811, %v635, 0
        %v1104 = vsel %vm811, %v636, 0
        %v1107 = vsel %vm811, %v637, 0
        %v1110 = vsel %vm811, %v638, 0
        %v1113 = vsel %vm811, %v639, 0
        %v1116 = vsel %vm811, %v640, 0
        %v1119 = vsel %vm811, %v641, 0
        %v1122 = vsel %vm811, %v642, 0
        %v1125 = vsel %vm811, %v643, 0
        %v1128 = vsel %vm811, %v644, 0
        %v1131 = vsel %vm811, %v645, 0
        %v1134 = vsel %vm811, %v646, 0
        %v1137 = vsel %vm811, %v647, 0
        %v1140 = vsel %vm811, %v648, 0
        %v1143 = vsel %vm811, %v649, 0
        %v1146 = vsel %vm811, %v650, 0
        %v1149 = vsel %vm811, %v667, 0
        %v1152 = vsel %vm811, %v668, 0
        %v1155 = vsel %vm811, %v669, 0
        %v1158 = vsel %vm811, %v670, 0
        %v1161 = vsel %vm811, %v671, 0
        %v1164 = vsel %vm811, %v672, 0
        %v1167 = vsel %vm811, %v673, 0
        %v1170 = vsel %vm811, %v674, 0
        %v1173 = vsel %vm811, %v675, 0
        %v1176 = vsel %vm811, %v676, 0
        %v1179 = vsel %vm811, %v677, 0
        %v1182 = vsel %vm811, %v678, 0
        %v1185 = vsel %vm811, %v679, 0
        %v1188 = vsel %vm811, %v680, 0
        %v1191 = vsel %vm811, %v681, 0
        %v1194 = vsel %vm811, %v682, 0
        %v1197 = vsel %vm811, %v699, 0
        %v1200 = vsel %vm811, %v700, 0
        %v1203 = vsel %vm811, %v701, 0
        %v1206 = vsel %vm811, %v702, 0
        %v1209 = vsel %vm811, %v703, 0
        %v1212 = vsel %vm811, %v704, 0
        %v1215 = vsel %vm811, %v705, 0
        %v1218 = vsel %vm811, %v706, 0
        %v1221 = vsel %vm811, %v707, 0
        %v1224 = vsel %vm811, %v708, 0
        %v1227 = vsel %vm811, %v709, 0
        %v1230 = vsel %vm811, %v710, 0
        %v1233 = vsel %vm811, %v711, 0
        %v1236 = vsel %vm811, %v712, 0
        %v1239 = vsel %vm811, %v713, 0
        %v1242 = vsel %vm811, %v714, 0
        %v1245 = vsel %vm811, %v731, 0
        %v1248 = vsel %vm811, %v732, 0
        %v1251 = vsel %vm811, %v733, 0
        %v1254 = vsel %vm811, %v734, 0
        %v1257 = vsel %vm811, %v735, 0
        %v1260 = vsel %vm811, %v736, 0
        %v1263 = vsel %vm811, %v737, 0
        %v1266 = vsel %vm811, %v738, 0
        %v1269 = vsel %vm811, %v739, 0
        %v1272 = vsel %vm811, %v740, 0
        %v1275 = vsel %vm811, %v741, 0
        %v1278 = vsel %vm811, %v742, 0
        %v1281 = vsel %vm811, %v743, 0
        %v1284 = vsel %vm811, %v744, 0
        %v1287 = vsel %vm811, %v745, 0
        %v1290 = vsel %vm811, %v746, 0
        %v1293 = vsel %vm811, %v763, 0
        %v1296 = vsel %vm811, %v764, 0
        %v1299 = vsel %vm811, %v765, 0
        %v1302 = vsel %vm811, %v766, 0
        %v1305 = vsel %vm811, %v767, 0
        %v1308 = vsel %vm811, %v768, 0
        %v1311 = vsel %vm811, %v769, 0
        %v1314 = vsel %vm811, %v770, 0
        %v1317 = vsel %vm811, %v771, 0
        %v1320 = vsel %vm811, %v772, 0
        %v1323 = vsel %vm811, %v773, 0
        %v1326 = vsel %vm811, %v774, 0
        %v1329 = vsel %vm811, %v775, 0
        %v1332 = vsel %vm811, %v776, 0
        %v1335 = vsel %vm811, %v777, 0
        %v1338 = vsel %vm811, %v778, 0
        %v1341 = vsel %vm811, %v795, 0
        %v1344 = vsel %vm811, %v796, 0
        %v1347 = vsel %vm811, %v797, 0
        %v1350 = vsel %vm811, %v798, 0
        %v1353 = vsel %vm811, %v799, 0
        %v1356 = vsel %vm811, %v800, 0
        %v1359 = vsel %vm811, %v801, 0
        %v1362 = vsel %vm811, %v802, 0
        %v1365 = vsel %vm811, %v803, 0
        %v1368 = vsel %vm811, %v804, 0
        %v1371 = vsel %vm811, %v805, 0
        %v1374 = vsel %vm811, %v806, 0
        %v1377 = vsel %vm811, %v807, 0
        %v1380 = vsel %vm811, %v808, 0
        %v1383 = vsel %vm811, %v809, 0
        %v1386 = vsel %vm811, %v810, 0
        %1388 = vmatprep.subr.mxu0 0.0
        %1389 = vmatpush1.msra.mxu0 0.0
        %1390 = vmatprep.subr.mxu0 0.0
        %1391 = vmatpush1.msra.mxu0 0.0
        %1392 = vmatprep.subr.mxu0 0.0
        %1393 = vmatpush1.msra.mxu0 0.0
        %1394 = vmatprep.subr.mxu0 0.0
        %1395 = vmatpush1.msra.mxu0 0.0
        %1396 = vmatprep.subr.mxu0 0.0
        %1397 = vmatpush1.msra.mxu0 0.0
        %1398 = vmatprep.subr.mxu0 0.0
        %1399 = vmatpush1.msra.mxu0 0.0
        %1400 = vmatprep.subr.mxu0 0.0
        %1401 = vmatpush1.msra.mxu0 0.0
        %1402 = vmatprep.subr.mxu0 0.0
        %1403 = vmatpush1.msra.mxu0 0.0
        %1404 = vmatprep.subr.mxu0 0.0
        %1405 = vmatpush1.msra.mxu0 0.0
        %1406 = vmatprep.subr.mxu0 0.0
        %1407 = vmatpush1.msra.mxu0 0.0
        %1408 = vmatprep.subr.mxu0 0.0
        %1409 = vmatpush1.msra.mxu0 0.0
        %1410 = vmatprep.subr.mxu0 0.0
        %1411 = vmatpush1.msra.mxu0 0.0
        %1412 = vmatprep.subr.mxu0 0.0
        %1413 = vmatpush1.msra.mxu0 %v378
        %1414 = vmatprep.subr.mxu0 0.0
        %1415 = vmatpush1.msra.mxu0 %v377
        %1416 = vmatprep.subr.mxu0 0.0
        %1417 = vmatpush1.msra.mxu0 %v376
        %1418 = vmatprep.subr.mxu0 0.0
        %1419 = vmatpush1.msra.mxu0 %v375
        %1420 = vmatprep.subr.mxu0 0.0
        %1421 = vmatpush2.msra.mxu0 0.0
        %1422 = vmatprep.subr.mxu0 0.0
        %1423 = vmatpush2.msra.mxu0 0.0
        %1424 = vmatprep.subr.mxu0 0.0
        %1425 = vmatpush2.msra.mxu0 0.0
        %1426 = vmatprep.subr.mxu0 0.0
        %1427 = vmatpush2.msra.mxu0 0.0
        %1428 = vmatprep.subr.mxu0 0.0
        %1429 = vmatpush2.msra.mxu0 0.0
        %1430 = vmatprep.subr.mxu0 0.0
        %1431 = vmatpush2.msra.mxu0 0.0
        %1432 = vmatprep.subr.mxu0 0.0
        %1433 = vmatpush2.msra.mxu0 0.0
        %1434 = vmatprep.subr.mxu0 0.0
        %1435 = vmatpush2.msra.mxu0 0.0
        %1436 = vmatprep.subr.mxu0 0.0
        %1437 = vmatpush2.msra.mxu0 0.0
        %1438 = vmatprep.subr.mxu0 0.0
        %1439 = vmatpush2.msra.mxu0 0.0
        %1440 = vmatprep.subr.mxu0 0.0
        %1441 = vmatpush2.msra.mxu0 0.0
        %1442 = vmatprep.subr.mxu0 0.0
        %1443 = vmatpush2.msra.mxu0 0.0
        %1444 = vmatprep.subr.mxu0 0.0
        %1445 = vmatpush2.msra.mxu0 0.0
        %1446 = vmatprep.subr.mxu0 0.0
        %1447 = vmatpush2.msra.mxu0 0.0
        %1448 = vmatprep.subr.mxu0 0.0
        %1449 = vmatpush2.msra.mxu0 0.0
        %1450 = vmatprep.subr.mxu0 0.0
        %1451 = vmatpush2.msra.mxu0 0.0
        %1452 = vmatprep.mubr.f32.mxu0 0.0
        %1453 = vmatmul.mubr.f32.gmra.mxu0 %v813
        %v1454 = vpop.f32.mrf.mxu0
        %v1455 = vadd.f32 0.0, %v1454
        %v1456 = vpop.f32.mrf.mxu0
        %1457 = vmatprep.mubr.f32.mxu0 0.0
        %1458 = vmatmul.mubr.f32.gmra.mxu0 %v816
        %v1459 = vpop.f32.mrf.mxu0
        %v1460 = vadd.f32 0.0, %v1459
        %v1461 = vpop.f32.mrf.mxu0
        %1462 = vmatprep.mubr.f32.mxu0 0.0
        %1463 = vmatmul.mubr.f32.gmra.mxu0 %v819
        %v1464 = vpop.f32.mrf.mxu0
        %v1465 = vadd.f32 0.0, %v1464
        %v1466 = vpop.f32.mrf.mxu0
        %1467 = vmatprep.mubr.f32.mxu0 0.0
        %1468 = vmatmul.mubr.f32.gmra.mxu0 %v822
        %v1469 = vpop.f32.mrf.mxu0
        %v1470 = vadd.f32 0.0, %v1469
        %v1471 = vpop.f32.mrf.mxu0
        %1472 = vmatprep.mubr.f32.mxu0 0.0
        %1473 = vmatmul.mubr.f32.gmra.mxu0 %v825
        %v1474 = vpop.f32.mrf.mxu0
        %v1475 = vadd.f32 0.0, %v1474
        %v1476 = vpop.f32.mrf.mxu0
        %1477 = vmatprep.mubr.f32.mxu0 0.0
        %1478 = vmatmul.mubr.f32.gmra.mxu0 %v828
        %v1479 = vpop.f32.mrf.mxu0
        %v1480 = vadd.f32 0.0, %v1479
        %v1481 = vpop.f32.mrf.mxu0
        %1482 = vmatprep.mubr.f32.mxu0 0.0
        %1483 = vmatmul.mubr.f32.gmra.mxu0 %v831
        %v1484 = vpop.f32.mrf.mxu0
        %v1485 = vadd.f32 0.0, %v1484
        %v1486 = vpop.f32.mrf.mxu0
        %1487 = vmatprep.mubr.f32.mxu0 0.0
        %1488 = vmatmul.mubr.f32.gmra.mxu0 %v834
        %v1489 = vpop.f32.mrf.mxu0
        %v1490 = vadd.f32 0.0, %v1489
        %v1491 = vpop.f32.mrf.mxu0
        %1492 = vmatprep.mubr.f32.mxu0 0.0
        %1493 = vmatmul.mubr.f32.gmra.mxu0 %v837
        %v1494 = vpop.f32.mrf.mxu0
        %v1495 = vadd.f32 0.0, %v1494
        %v1496 = vpop.f32.mrf.mxu0
        %1497 = vmatprep.mubr.f32.mxu0 0.0
        %1498 = vmatmul.mubr.f32.gmra.mxu0 %v840
        %v1499 = vpop.f32.mrf.mxu0
        %v1500 = vadd.f32 0.0, %v1499
        %v1501 = vpop.f32.mrf.mxu0
        %1502 = vmatprep.mubr.f32.mxu0 0.0
        %1503 = vmatmul.mubr.f32.gmra.mxu0 %v843
        %v1504 = vpop.f32.mrf.mxu0
        %v1505 = vadd.f32 0.0, %v1504
        %v1506 = vpop.f32.mrf.mxu0
        %1507 = vmatprep.mubr.f32.mxu0 0.0
        %1508 = vmatmul.mubr.f32.gmra.mxu0 %v846
        %v1509 = vpop.f32.mrf.mxu0
        %v1510 = vadd.f32 0.0, %v1509
        %v1511 = vpop.f32.mrf.mxu0
        %1512 = vmatprep.mubr.f32.mxu0 0.0
        %1513 = vmatmul.mubr.f32.gmra.mxu0 %v849
        %v1514 = vpop.f32.mrf.mxu0
        %v1515 = vadd.f32 0.0, %v1514
        %v1516 = vpop.f32.mrf.mxu0
        %1517 = vmatprep.mubr.f32.mxu0 0.0
        %1518 = vmatmul.mubr.f32.gmra.mxu0 %v852
        %v1519 = vpop.f32.mrf.mxu0
        %v1520 = vadd.f32 0.0, %v1519
        %v1521 = vpop.f32.mrf.mxu0
        %1522 = vmatprep.mubr.f32.mxu0 0.0
        %1523 = vmatmul.mubr.f32.gmra.mxu0 %v855
        %v1524 = vpop.f32.mrf.mxu0
        %v1525 = vadd.f32 0.0, %v1524
        %v1526 = vpop.f32.mrf.mxu0
        %1527 = vmatprep.mubr.f32.mxu0 0.0
        %1528 = vmatmul.mubr.f32.gmra.mxu0 %v858
        %v1529 = vpop.f32.mrf.mxu0
        %v1530 = vadd.f32 0.0, %v1529
        %v1531 = vpop.f32.mrf.mxu0
        %1532 = vmatprep.mubr.f32.mxu0 0.0
        %1533 = vmatmul.mubr.f32.gmra.mxu0 %v861
        %v1534 = vpop.f32.mrf.mxu0
        %v1535 = vadd.f32 0.0, %v1534
        %v1536 = vpop.f32.mrf.mxu0
        %1537 = vmatprep.mubr.f32.mxu0 0.0
        %1538 = vmatmul.mubr.f32.gmra.mxu0 %v864
        %v1539 = vpop.f32.mrf.mxu0
        %v1540 = vadd.f32 0.0, %v1539
        %v1541 = vpop.f32.mrf.mxu0
        %1542 = vmatprep.mubr.f32.mxu0 0.0
        %1543 = vmatmul.mubr.f32.gmra.mxu0 %v867
        %v1544 = vpop.f32.mrf.mxu0
        %v1545 = vadd.f32 0.0, %v1544
        %v1546 = vpop.f32.mrf.mxu0
        %1547 = vmatprep.mubr.f32.mxu0 0.0
        %1548 = vmatmul.mubr.f32.gmra.mxu0 %v870
        %v1549 = vpop.f32.mrf.mxu0
        %v1550 = vadd.f32 0.0, %v1549
        %v1551 = vpop.f32.mrf.mxu0
        %1552 = vmatprep.mubr.f32.mxu0 0.0
        %1553 = vmatmul.mubr.f32.gmra.mxu0 %v873
        %v1554 = vpop.f32.mrf.mxu0
        %v1555 = vadd.f32 0.0, %v1554
        %v1556 = vpop.f32.mrf.mxu0
        %1557 = vmatprep.mubr.f32.mxu0 0.0
        %1558 = vmatmul.mubr.f32.gmra.mxu0 %v876
        %v1559 = vpop.f32.mrf.mxu0
        %v1560 = vadd.f32 0.0, %v1559
        %v1561 = vpop.f32.mrf.mxu0
        %1562 = vmatprep.mubr.f32.mxu0 0.0
        %1563 = vmatmul.mubr.f32.gmra.mxu0 %v879
        %v1564 = vpop.f32.mrf.mxu0
        %v1565 = vadd.f32 0.0, %v1564
        %v1566 = vpop.f32.mrf.mxu0
        %1567 = vmatprep.mubr.f32.mxu0 0.0
        %1568 = vmatmul.mubr.f32.gmra.mxu0 %v882
        %v1569 = vpop.f32.mrf.mxu0
        %v1570 = vadd.f32 0.0, %v1569
        %v1571 = vpop.f32.mrf.mxu0
        %1572 = vmatprep.mubr.f32.mxu0 0.0
        %1573 = vmatmul.mubr.f32.gmra.mxu0 %v885
        %v1574 = vpop.f32.mrf.mxu0
        %v1575 = vadd.f32 0.0, %v1574
        %v1576 = vpop.f32.mrf.mxu0
        %1577 = vmatprep.mubr.f32.mxu0 0.0
        %1578 = vmatmul.mubr.f32.gmra.mxu0 %v888
        %v1579 = vpop.f32.mrf.mxu0
        %v1580 = vadd.f32 0.0, %v1579
        %v1581 = vpop.f32.mrf.mxu0
        %1582 = vmatprep.mubr.f32.mxu0 0.0
        %1583 = vmatmul.mubr.f32.gmra.mxu0 %v891
        %v1584 = vpop.f32.mrf.mxu0
        %v1585 = vadd.f32 0.0, %v1584
        %v1586 = vpop.f32.mrf.mxu0
        %1587 = vmatprep.mubr.f32.mxu0 0.0
        %1588 = vmatmul.mubr.f32.gmra.mxu0 %v894
        %v1589 = vpop.f32.mrf.mxu0
        %v1590 = vadd.f32 0.0, %v1589
        %v1591 = vpop.f32.mrf.mxu0
        %1592 = vmatprep.mubr.f32.mxu0 0.0
        %1593 = vmatmul.mubr.f32.gmra.mxu0 %v897
        %v1594 = vpop.f32.mrf.mxu0
        %v1595 = vadd.f32 0.0, %v1594
        %v1596 = vpop.f32.mrf.mxu0
        %1597 = vmatprep.mubr.f32.mxu0 0.0
        %1598 = vmatmul.mubr.f32.gmra.mxu0 %v900
        %v1599 = vpop.f32.mrf.mxu0
        %v1600 = vadd.f32 0.0, %v1599
        %v1601 = vpop.f32.mrf.mxu0
        %1602 = vmatprep.mubr.f32.mxu0 0.0
        %1603 = vmatmul.mubr.f32.gmra.mxu0 %v903
        %v1604 = vpop.f32.mrf.mxu0
        %v1605 = vadd.f32 0.0, %v1604
        %v1606 = vpop.f32.mrf.mxu0
        %1607 = vmatprep.mubr.f32.mxu0 0.0
        %1608 = vmatmul.mubr.f32.gmra.mxu0 %v906
        %v1609 = vpop.f32.mrf.mxu0
        %v1610 = vadd.f32 0.0, %v1609
        %v1611 = vpop.f32.mrf.mxu0
        %1612 = vmatprep.mubr.f32.mxu0 0.0
        %1613 = vmatmul.mubr.f32.gmra.mxu0 %v909
        %v1614 = vpop.f32.mrf.mxu0
        %v1615 = vadd.f32 0.0, %v1614
        %v1616 = vpop.f32.mrf.mxu0
        %1617 = vmatprep.mubr.f32.mxu0 0.0
        %1618 = vmatmul.mubr.f32.gmra.mxu0 %v912
        %v1619 = vpop.f32.mrf.mxu0
        %v1620 = vadd.f32 0.0, %v1619
        %v1621 = vpop.f32.mrf.mxu0
        %1622 = vmatprep.mubr.f32.mxu0 0.0
        %1623 = vmatmul.mubr.f32.gmra.mxu0 %v915
        %v1624 = vpop.f32.mrf.mxu0
        %v1625 = vadd.f32 0.0, %v1624
        %v1626 = vpop.f32.mrf.mxu0
        %1627 = vmatprep.mubr.f32.mxu0 0.0
        %1628 = vmatmul.mubr.f32.gmra.mxu0 %v918
        %v1629 = vpop.f32.mrf.mxu0
        %v1630 = vadd.f32 0.0, %v1629
        %v1631 = vpop.f32.mrf.mxu0
        %1632 = vmatprep.mubr.f32.mxu0 0.0
        %1633 = vmatmul.mubr.f32.gmra.mxu0 %v921
        %v1634 = vpop.f32.mrf.mxu0
        %v1635 = vadd.f32 0.0, %v1634
        %v1636 = vpop.f32.mrf.mxu0
        %1637 = vmatprep.mubr.f32.mxu0 0.0
        %1638 = vmatmul.mubr.f32.gmra.mxu0 %v924
        %v1639 = vpop.f32.mrf.mxu0
        %v1640 = vadd.f32 0.0, %v1639
        %v1641 = vpop.f32.mrf.mxu0
        %1642 = vmatprep.mubr.f32.mxu0 0.0
        %1643 = vmatmul.mubr.f32.gmra.mxu0 %v927
        %v1644 = vpop.f32.mrf.mxu0
        %v1645 = vadd.f32 0.0, %v1644
        %v1646 = vpop.f32.mrf.mxu0
        %1647 = vmatprep.mubr.f32.mxu0 0.0
        %1648 = vmatmul.mubr.f32.gmra.mxu0 %v930
        %v1649 = vpop.f32.mrf.mxu0
        %v1650 = vadd.f32 0.0, %v1649
        %v1651 = vpop.f32.mrf.mxu0
        %1652 = vmatprep.mubr.f32.mxu0 0.0
        %1653 = vmatmul.mubr.f32.gmra.mxu0 %v933
        %v1654 = vpop.f32.mrf.mxu0
        %v1655 = vadd.f32 0.0, %v1654
        %v1656 = vpop.f32.mrf.mxu0
        %1657 = vmatprep.mubr.f32.mxu0 0.0
        %1658 = vmatmul.mubr.f32.gmra.mxu0 %v936
        %v1659 = vpop.f32.mrf.mxu0
        %v1660 = vadd.f32 0.0, %v1659
        %v1661 = vpop.f32.mrf.mxu0
        %1662 = vmatprep.mubr.f32.mxu0 0.0
        %1663 = vmatmul.mubr.f32.gmra.mxu0 %v939
        %v1664 = vpop.f32.mrf.mxu0
        %v1665 = vadd.f32 0.0, %v1664
        %v1666 = vpop.f32.mrf.mxu0
        %1667 = vmatprep.mubr.f32.mxu0 0.0
        %1668 = vmatmul.mubr.f32.gmra.mxu0 %v942
        %v1669 = vpop.f32.mrf.mxu0
        %v1670 = vadd.f32 0.0, %v1669
        %v1671 = vpop.f32.mrf.mxu0
        %1672 = vmatprep.mubr.f32.mxu0 0.0
        %1673 = vmatmul.mubr.f32.gmra.mxu0 %v945
        %v1674 = vpop.f32.mrf.mxu0
        %v1675 = vadd.f32 0.0, %v1674
        %v1676 = vpop.f32.mrf.mxu0
        %1677 = vmatprep.mubr.f32.mxu0 0.0
        %1678 = vmatmul.mubr.f32.gmra.mxu0 %v948
        %v1679 = vpop.f32.mrf.mxu0
        %v1680 = vadd.f32 0.0, %v1679
        %v1681 = vpop.f32.mrf.mxu0
        %1682 = vmatprep.mubr.f32.mxu0 0.0
        %1683 = vmatmul.mubr.f32.gmra.mxu0 %v951
        %v1684 = vpop.f32.mrf.mxu0
        %v1685 = vadd.f32 0.0, %v1684
        %v1686 = vpop.f32.mrf.mxu0
        %1687 = vmatprep.mubr.f32.mxu0 0.0
        %1688 = vmatmul.mubr.f32.gmra.mxu0 %v954
        %v1689 = vpop.f32.mrf.mxu0
        %v1690 = vadd.f32 0.0, %v1689
        %v1691 = vpop.f32.mrf.mxu0
        %1692 = vmatprep.mubr.f32.mxu0 0.0
        %1693 = vmatmul.mubr.f32.gmra.mxu0 %v957
        %v1694 = vpop.f32.mrf.mxu0
        %v1695 = vadd.f32 0.0, %v1694
        %v1696 = vpop.f32.mrf.mxu0
        %1697 = vmatprep.mubr.f32.mxu0 0.0
        %1698 = vmatmul.mubr.f32.gmra.mxu0 %v960
        %v1699 = vpop.f32.mrf.mxu0
        %v1700 = vadd.f32 0.0, %v1699
        %v1701 = vpop.f32.mrf.mxu0
        %1702 = vmatprep.mubr.f32.mxu0 0.0
        %1703 = vmatmul.mubr.f32.gmra.mxu0 %v963
        %v1704 = vpop.f32.mrf.mxu0
        %v1705 = vadd.f32 0.0, %v1704
        %v1706 = vpop.f32.mrf.mxu0
        %1707 = vmatprep.mubr.f32.mxu0 0.0
        %1708 = vmatmul.mubr.f32.gmra.mxu0 %v966
        %v1709 = vpop.f32.mrf.mxu0
        %v1710 = vadd.f32 0.0, %v1709
        %v1711 = vpop.f32.mrf.mxu0
        %1712 = vmatprep.mubr.f32.mxu0 0.0
        %1713 = vmatmul.mubr.f32.gmra.mxu0 %v969
        %v1714 = vpop.f32.mrf.mxu0
        %v1715 = vadd.f32 0.0, %v1714
        %v1716 = vpop.f32.mrf.mxu0
        %1717 = vmatprep.mubr.f32.mxu0 0.0
        %1718 = vmatmul.mubr.f32.gmra.mxu0 %v972
        %v1719 = vpop.f32.mrf.mxu0
        %v1720 = vadd.f32 0.0, %v1719
        %v1721 = vpop.f32.mrf.mxu0
        %1722 = vmatprep.mubr.f32.mxu0 0.0
        %1723 = vmatmul.mubr.f32.gmra.mxu0 %v975
        %v1724 = vpop.f32.mrf.mxu0
        %v1725 = vadd.f32 0.0, %v1724
        %v1726 = vpop.f32.mrf.mxu0
        %1727 = vmatprep.mubr.f32.mxu0 0.0
        %1728 = vmatmul.mubr.f32.gmra.mxu0 %v978
        %v1729 = vpop.f32.mrf.mxu0
        %v1730 = vadd.f32 0.0, %v1729
        %v1731 = vpop.f32.mrf.mxu0
        %1732 = vmatprep.mubr.f32.mxu0 0.0
        %1733 = vmatmul.mubr.f32.gmra.mxu0 %v981
        %v1734 = vpop.f32.mrf.mxu0
        %v1735 = vadd.f32 0.0, %v1734
        %v1736 = vpop.f32.mrf.mxu0
        %1737 = vmatprep.mubr.f32.mxu0 0.0
        %1738 = vmatmul.mubr.f32.gmra.mxu0 %v984
        %v1739 = vpop.f32.mrf.mxu0
        %v1740 = vadd.f32 0.0, %v1739
        %v1741 = vpop.f32.mrf.mxu0
        %1742 = vmatprep.mubr.f32.mxu0 0.0
        %1743 = vmatmul.mubr.f32.gmra.mxu0 %v987
        %v1744 = vpop.f32.mrf.mxu0
        %v1745 = vadd.f32 0.0, %v1744
        %v1746 = vpop.f32.mrf.mxu0
        %1747 = vmatprep.mubr.f32.mxu0 0.0
        %1748 = vmatmul.mubr.f32.gmra.mxu0 %v990
        %v1749 = vpop.f32.mrf.mxu0
        %v1750 = vadd.f32 0.0, %v1749
        %v1751 = vpop.f32.mrf.mxu0
        %1752 = vmatprep.mubr.f32.mxu0 0.0
        %1753 = vmatmul.mubr.f32.gmra.mxu0 %v993
        %v1754 = vpop.f32.mrf.mxu0
        %v1755 = vadd.f32 0.0, %v1754
        %v1756 = vpop.f32.mrf.mxu0
        %1757 = vmatprep.mubr.f32.mxu0 0.0
        %1758 = vmatmul.mubr.f32.gmra.mxu0 %v996
        %v1759 = vpop.f32.mrf.mxu0
        %v1760 = vadd.f32 0.0, %v1759
        %v1761 = vpop.f32.mrf.mxu0
        %1762 = vmatprep.mubr.f32.mxu0 0.0
        %1763 = vmatmul.mubr.f32.gmra.mxu0 %v999
        %v1764 = vpop.f32.mrf.mxu0
        %v1765 = vadd.f32 0.0, %v1764
        %v1766 = vpop.f32.mrf.mxu0
        %1767 = vmatprep.mubr.f32.mxu0 0.0
        %1768 = vmatmul.mubr.f32.gmra.mxu0 %v1002
        %v1769 = vpop.f32.mrf.mxu0
        %v1770 = vadd.f32 0.0, %v1769
        %v1771 = vpop.f32.mrf.mxu0
        %1772 = vmatprep.mubr.f32.mxu0 0.0
        %1773 = vmatmul.mubr.f32.gmra.mxu0 %v1005
        %v1774 = vpop.f32.mrf.mxu0
        %v1775 = vadd.f32 0.0, %v1774
        %v1776 = vpop.f32.mrf.mxu0
        %1777 = vmatprep.mubr.f32.mxu0 0.0
        %1778 = vmatmul.mubr.f32.gmra.mxu0 %v1008
        %v1779 = vpop.f32.mrf.mxu0
        %v1780 = vadd.f32 0.0, %v1779
        %v1781 = vpop.f32.mrf.mxu0
        %1782 = vmatprep.mubr.f32.mxu0 0.0
        %1783 = vmatmul.mubr.f32.gmra.mxu0 %v1011
        %v1784 = vpop.f32.mrf.mxu0
        %v1785 = vadd.f32 0.0, %v1784
        %v1786 = vpop.f32.mrf.mxu0
        %1787 = vmatprep.mubr.f32.mxu0 0.0
        %1788 = vmatmul.mubr.f32.gmra.mxu0 %v1014
        %v1789 = vpop.f32.mrf.mxu0
        %v1790 = vadd.f32 0.0, %v1789
        %v1791 = vpop.f32.mrf.mxu0
        %1792 = vmatprep.mubr.f32.mxu0 0.0
        %1793 = vmatmul.mubr.f32.gmra.mxu0 %v1017
        %v1794 = vpop.f32.mrf.mxu0
        %v1795 = vadd.f32 0.0, %v1794
        %v1796 = vpop.f32.mrf.mxu0
        %1797 = vmatprep.mubr.f32.mxu0 0.0
        %1798 = vmatmul.mubr.f32.gmra.mxu0 %v1020
        %v1799 = vpop.f32.mrf.mxu0
        %v1800 = vadd.f32 0.0, %v1799
        %v1801 = vpop.f32.mrf.mxu0
        %1802 = vmatprep.mubr.f32.mxu0 0.0
        %1803 = vmatmul.mubr.f32.gmra.mxu0 %v1023
        %v1804 = vpop.f32.mrf.mxu0
        %v1805 = vadd.f32 0.0, %v1804
        %v1806 = vpop.f32.mrf.mxu0
        %1807 = vmatprep.mubr.f32.mxu0 0.0
        %1808 = vmatmul.mubr.f32.gmra.mxu0 %v1026
        %v1809 = vpop.f32.mrf.mxu0
        %v1810 = vadd.f32 0.0, %v1809
        %v1811 = vpop.f32.mrf.mxu0
        %1812 = vmatprep.mubr.f32.mxu0 0.0
        %1813 = vmatmul.mubr.f32.gmra.mxu0 %v1029
        %v1814 = vpop.f32.mrf.mxu0
        %v1815 = vadd.f32 0.0, %v1814
        %v1816 = vpop.f32.mrf.mxu0
        %1817 = vmatprep.mubr.f32.mxu0 0.0
        %1818 = vmatmul.mubr.f32.gmra.mxu0 %v1032
        %v1819 = vpop.f32.mrf.mxu0
        %v1820 = vadd.f32 0.0, %v1819
        %v1821 = vpop.f32.mrf.mxu0
        %1822 = vmatprep.mubr.f32.mxu0 0.0
        %1823 = vmatmul.mubr.f32.gmra.mxu0 %v1035
        %v1824 = vpop.f32.mrf.mxu0
        %v1825 = vadd.f32 0.0, %v1824
        %v1826 = vpop.f32.mrf.mxu0
        %1827 = vmatprep.mubr.f32.mxu0 0.0
        %1828 = vmatmul.mubr.f32.gmra.mxu0 %v1038
        %v1829 = vpop.f32.mrf.mxu0
        %v1830 = vadd.f32 0.0, %v1829
        %v1831 = vpop.f32.mrf.mxu0
        %1832 = vmatprep.mubr.f32.mxu0 0.0
        %1833 = vmatmul.mubr.f32.gmra.mxu0 %v1041
        %v1834 = vpop.f32.mrf.mxu0
        %v1835 = vadd.f32 0.0, %v1834
        %v1836 = vpop.f32.mrf.mxu0
        %1837 = vmatprep.mubr.f32.mxu0 0.0
        %1838 = vmatmul.mubr.f32.gmra.mxu0 %v1044
        %v1839 = vpop.f32.mrf.mxu0
        %v1840 = vadd.f32 0.0, %v1839
        %v1841 = vpop.f32.mrf.mxu0
        %1842 = vmatprep.mubr.f32.mxu0 0.0
        %1843 = vmatmul.mubr.f32.gmra.mxu0 %v1047
        %v1844 = vpop.f32.mrf.mxu0
        %v1845 = vadd.f32 0.0, %v1844
        %v1846 = vpop.f32.mrf.mxu0
        %1847 = vmatprep.mubr.f32.mxu0 0.0
        %1848 = vmatmul.mubr.f32.gmra.mxu0 %v1050
        %v1849 = vpop.f32.mrf.mxu0
        %v1850 = vadd.f32 0.0, %v1849
        %v1851 = vpop.f32.mrf.mxu0
        %1852 = vmatprep.mubr.f32.mxu0 0.0
        %1853 = vmatmul.mubr.f32.gmra.mxu0 %v1053
        %v1854 = vpop.f32.mrf.mxu0
        %v1855 = vadd.f32 0.0, %v1854
        %v1856 = vpop.f32.mrf.mxu0
        %1857 = vmatprep.mubr.f32.mxu0 0.0
        %1858 = vmatmul.mubr.f32.gmra.mxu0 %v1056
        %v1859 = vpop.f32.mrf.mxu0
        %v1860 = vadd.f32 0.0, %v1859
        %v1861 = vpop.f32.mrf.mxu0
        %1862 = vmatprep.mubr.f32.mxu0 0.0
        %1863 = vmatmul.mubr.f32.gmra.mxu0 %v1059
        %v1864 = vpop.f32.mrf.mxu0
        %v1865 = vadd.f32 0.0, %v1864
        %v1866 = vpop.f32.mrf.mxu0
        %1867 = vmatprep.mubr.f32.mxu0 0.0
        %1868 = vmatmul.mubr.f32.gmra.mxu0 %v1062
        %v1869 = vpop.f32.mrf.mxu0
        %v1870 = vadd.f32 0.0, %v1869
        %v1871 = vpop.f32.mrf.mxu0
        %1872 = vmatprep.mubr.f32.mxu0 0.0
        %1873 = vmatmul.mubr.f32.gmra.mxu0 %v1065
        %v1874 = vpop.f32.mrf.mxu0
        %v1875 = vadd.f32 0.0, %v1874
        %v1876 = vpop.f32.mrf.mxu0
        %1877 = vmatprep.mubr.f32.mxu0 0.0
        %1878 = vmatmul.mubr.f32.gmra.mxu0 %v1068
        %v1879 = vpop.f32.mrf.mxu0
        %v1880 = vadd.f32 0.0, %v1879
        %v1881 = vpop.f32.mrf.mxu0
        %1882 = vmatprep.mubr.f32.mxu0 0.0
        %1883 = vmatmul.mubr.f32.gmra.mxu0 %v1071
        %v1884 = vpop.f32.mrf.mxu0
        %v1885 = vadd.f32 0.0, %v1884
        %v1886 = vpop.f32.mrf.mxu0
        %1887 = vmatprep.mubr.f32.mxu0 0.0
        %1888 = vmatmul.mubr.f32.gmra.mxu0 %v1074
        %v1889 = vpop.f32.mrf.mxu0
        %v1890 = vadd.f32 0.0, %v1889
        %v1891 = vpop.f32.mrf.mxu0
        %1892 = vmatprep.mubr.f32.mxu0 0.0
        %1893 = vmatmul.mubr.f32.gmra.mxu0 %v1077
        %v1894 = vpop.f32.mrf.mxu0
        %v1895 = vadd.f32 0.0, %v1894
        %v1896 = vpop.f32.mrf.mxu0
        %1897 = vmatprep.mubr.f32.mxu0 0.0
        %1898 = vmatmul.mubr.f32.gmra.mxu0 %v1080
        %v1899 = vpop.f32.mrf.mxu0
        %v1900 = vadd.f32 0.0, %v1899
        %v1901 = vpop.f32.mrf.mxu0
        %1902 = vmatprep.mubr.f32.mxu0 0.0
        %1903 = vmatmul.mubr.f32.gmra.mxu0 %v1083
        %v1904 = vpop.f32.mrf.mxu0
        %v1905 = vadd.f32 0.0, %v1904
        %v1906 = vpop.f32.mrf.mxu0
        %1907 = vmatprep.mubr.f32.mxu0 0.0
        %1908 = vmatmul.mubr.f32.gmra.mxu0 %v1086
        %v1909 = vpop.f32.mrf.mxu0
        %v1910 = vadd.f32 0.0, %v1909
        %v1911 = vpop.f32.mrf.mxu0
        %1912 = vmatprep.mubr.f32.mxu0 0.0
        %1913 = vmatmul.mubr.f32.gmra.mxu0 %v1089
        %v1914 = vpop.f32.mrf.mxu0
        %v1915 = vadd.f32 0.0, %v1914
        %v1916 = vpop.f32.mrf.mxu0
        %1917 = vmatprep.mubr.f32.mxu0 0.0
        %1918 = vmatmul.mubr.f32.gmra.mxu0 %v1092
        %v1919 = vpop.f32.mrf.mxu0
        %v1920 = vadd.f32 0.0, %v1919
        %v1921 = vpop.f32.mrf.mxu0
        %1922 = vmatprep.mubr.f32.mxu0 0.0
        %1923 = vmatmul.mubr.f32.gmra.mxu0 %v1095
        %v1924 = vpop.f32.mrf.mxu0
        %v1925 = vadd.f32 0.0, %v1924
        %v1926 = vpop.f32.mrf.mxu0
        %1927 = vmatprep.mubr.f32.mxu0 0.0
        %1928 = vmatmul.mubr.f32.gmra.mxu0 %v1098
        %v1929 = vpop.f32.mrf.mxu0
        %v1930 = vadd.f32 0.0, %v1929
        %v1931 = vpop.f32.mrf.mxu0
        %1932 = vmatprep.mubr.f32.mxu0 0.0
        %1933 = vmatmul.mubr.f32.gmra.mxu0 %v1101
        %v1934 = vpop.f32.mrf.mxu0
        %v1935 = vadd.f32 0.0, %v1934
        %v1936 = vpop.f32.mrf.mxu0
        %1937 = vmatprep.mubr.f32.mxu0 0.0
        %1938 = vmatmul.mubr.f32.gmra.mxu0 %v1104
        %v1939 = vpop.f32.mrf.mxu0
        %v1940 = vadd.f32 0.0, %v1939
        %v1941 = vpop.f32.mrf.mxu0
        %1942 = vmatprep.mubr.f32.mxu0 0.0
        %1943 = vmatmul.mubr.f32.gmra.mxu0 %v1107
        %v1944 = vpop.f32.mrf.mxu0
        %v1945 = vadd.f32 0.0, %v1944
        %v1946 = vpop.f32.mrf.mxu0
        %1947 = vmatprep.mubr.f32.mxu0 0.0
        %1948 = vmatmul.mubr.f32.gmra.mxu0 %v1110
        %v1949 = vpop.f32.mrf.mxu0
        %v1950 = vadd.f32 0.0, %v1949
        %v1951 = vpop.f32.mrf.mxu0
        %1952 = vmatprep.mubr.f32.mxu0 0.0
        %1953 = vmatmul.mubr.f32.gmra.mxu0 %v1113
        %v1954 = vpop.f32.mrf.mxu0
        %v1955 = vadd.f32 0.0, %v1954
        %v1956 = vpop.f32.mrf.mxu0
        %1957 = vmatprep.mubr.f32.mxu0 0.0
        %1958 = vmatmul.mubr.f32.gmra.mxu0 %v1116
        %v1959 = vpop.f32.mrf.mxu0
        %v1960 = vadd.f32 0.0, %v1959
        %v1961 = vpop.f32.mrf.mxu0
        %1962 = vmatprep.mubr.f32.mxu0 0.0
        %1963 = vmatmul.mubr.f32.gmra.mxu0 %v1119
        %v1964 = vpop.f32.mrf.mxu0
        %v1965 = vadd.f32 0.0, %v1964
        %v1966 = vpop.f32.mrf.mxu0
        %1967 = vmatprep.mubr.f32.mxu0 0.0
        %1968 = vmatmul.mubr.f32.gmra.mxu0 %v1122
        %v1969 = vpop.f32.mrf.mxu0
        %v1970 = vadd.f32 0.0, %v1969
        %v1971 = vpop.f32.mrf.mxu0
        %1972 = vmatprep.mubr.f32.mxu0 0.0
        %1973 = vmatmul.mubr.f32.gmra.mxu0 %v1125
        %v1974 = vpop.f32.mrf.mxu0
        %v1975 = vadd.f32 0.0, %v1974
        %v1976 = vpop.f32.mrf.mxu0
        %1977 = vmatprep.mubr.f32.mxu0 0.0
        %1978 = vmatmul.mubr.f32.gmra.mxu0 %v1128
        %v1979 = vpop.f32.mrf.mxu0
        %v1980 = vadd.f32 0.0, %v1979
        %v1981 = vpop.f32.mrf.mxu0
        %1982 = vmatprep.mubr.f32.mxu0 0.0
        %1983 = vmatmul.mubr.f32.gmra.mxu0 %v1131
        %v1984 = vpop.f32.mrf.mxu0
        %v1985 = vadd.f32 0.0, %v1984
        %v1986 = vpop.f32.mrf.mxu0
        %1987 = vmatprep.mubr.f32.mxu0 0.0
        %1988 = vmatmul.mubr.f32.gmra.mxu0 %v1134
        %v1989 = vpop.f32.mrf.mxu0
        %v1990 = vadd.f32 0.0, %v1989
        %v1991 = vpop.f32.mrf.mxu0
        %1992 = vmatprep.mubr.f32.mxu0 0.0
        %1993 = vmatmul.mubr.f32.gmra.mxu0 %v1137
        %v1994 = vpop.f32.mrf.mxu0
        %v1995 = vadd.f32 0.0, %v1994
        %v1996 = vpop.f32.mrf.mxu0
        %1997 = vmatprep.mubr.f32.mxu0 0.0
        %1998 = vmatmul.mubr.f32.gmra.mxu0 %v1140
        %v1999 = vpop.f32.mrf.mxu0
        %v2000 = vadd.f32 0.0, %v1999
        %v2001 = vpop.f32.mrf.mxu0
        %2002 = vmatprep.mubr.f32.mxu0 0.0
        %2003 = vmatmul.mubr.f32.gmra.mxu0 %v1143
        %v2004 = vpop.f32.mrf.mxu0
        %v2005 = vadd.f32 0.0, %v2004
        %v2006 = vpop.f32.mrf.mxu0
        %2007 = vmatprep.mubr.f32.mxu0 0.0
        %2008 = vmatmul.mubr.f32.gmra.mxu0 %v1146
        %v2009 = vpop.f32.mrf.mxu0
        %v2010 = vadd.f32 0.0, %v2009
        %v2011 = vpop.f32.mrf.mxu0
        %2012 = vmatprep.mubr.f32.mxu0 0.0
        %2013 = vmatmul.mubr.f32.gmra.mxu0 %v1149
        %v2014 = vpop.f32.mrf.mxu0
        %v2015 = vadd.f32 0.0, %v2014
        %v2016 = vpop.f32.mrf.mxu0
        %2017 = vmatprep.mubr.f32.mxu0 0.0
        %2018 = vmatmul.mubr.f32.gmra.mxu0 %v1152
        %v2019 = vpop.f32.mrf.mxu0
        %v2020 = vadd.f32 0.0, %v2019
        %v2021 = vpop.f32.mrf.mxu0
        %2022 = vmatprep.mubr.f32.mxu0 0.0
        %2023 = vmatmul.mubr.f32.gmra.mxu0 %v1155
        %v2024 = vpop.f32.mrf.mxu0
        %v2025 = vadd.f32 0.0, %v2024
        %v2026 = vpop.f32.mrf.mxu0
        %2027 = vmatprep.mubr.f32.mxu0 0.0
        %2028 = vmatmul.mubr.f32.gmra.mxu0 %v1158
        %v2029 = vpop.f32.mrf.mxu0
        %v2030 = vadd.f32 0.0, %v2029
        %v2031 = vpop.f32.mrf.mxu0
        %2032 = vmatprep.mubr.f32.mxu0 0.0
        %2033 = vmatmul.mubr.f32.gmra.mxu0 %v1161
        %v2034 = vpop.f32.mrf.mxu0
        %v2035 = vadd.f32 0.0, %v2034
        %v2036 = vpop.f32.mrf.mxu0
        %2037 = vmatprep.mubr.f32.mxu0 0.0
        %2038 = vmatmul.mubr.f32.gmra.mxu0 %v1164
        %v2039 = vpop.f32.mrf.mxu0
        %v2040 = vadd.f32 0.0, %v2039
        %v2041 = vpop.f32.mrf.mxu0
        %2042 = vmatprep.mubr.f32.mxu0 0.0
        %2043 = vmatmul.mubr.f32.gmra.mxu0 %v1167
        %v2044 = vpop.f32.mrf.mxu0
        %v2045 = vadd.f32 0.0, %v2044
        %v2046 = vpop.f32.mrf.mxu0
        %2047 = vmatprep.mubr.f32.mxu0 0.0
        %2048 = vmatmul.mubr.f32.gmra.mxu0 %v1170
        %v2049 = vpop.f32.mrf.mxu0
        %v2050 = vadd.f32 0.0, %v2049
        %v2051 = vpop.f32.mrf.mxu0
        %2052 = vmatprep.mubr.f32.mxu0 0.0
        %2053 = vmatmul.mubr.f32.gmra.mxu0 %v1173
        %v2054 = vpop.f32.mrf.mxu0
        %v2055 = vadd.f32 0.0, %v2054
        %v2056 = vpop.f32.mrf.mxu0
        %2057 = vmatprep.mubr.f32.mxu0 0.0
        %2058 = vmatmul.mubr.f32.gmra.mxu0 %v1176
        %v2059 = vpop.f32.mrf.mxu0
        %v2060 = vadd.f32 0.0, %v2059
        %v2061 = vpop.f32.mrf.mxu0
        %2062 = vmatprep.mubr.f32.mxu0 0.0
        %2063 = vmatmul.mubr.f32.gmra.mxu0 %v1179
        %v2064 = vpop.f32.mrf.mxu0
        %v2065 = vadd.f32 0.0, %v2064
        %v2066 = vpop.f32.mrf.mxu0
        %2067 = vmatprep.mubr.f32.mxu0 0.0
        %2068 = vmatmul.mubr.f32.gmra.mxu0 %v1182
        %v2069 = vpop.f32.mrf.mxu0
        %v2070 = vadd.f32 0.0, %v2069
        %v2071 = vpop.f32.mrf.mxu0
        %2072 = vmatprep.mubr.f32.mxu0 0.0
        %2073 = vmatmul.mubr.f32.gmra.mxu0 %v1185
        %v2074 = vpop.f32.mrf.mxu0
        %v2075 = vadd.f32 0.0, %v2074
        %v2076 = vpop.f32.mrf.mxu0
        %2077 = vmatprep.mubr.f32.mxu0 0.0
        %2078 = vmatmul.mubr.f32.gmra.mxu0 %v1188
        %v2079 = vpop.f32.mrf.mxu0
        %v2080 = vadd.f32 0.0, %v2079
        %v2081 = vpop.f32.mrf.mxu0
        %2082 = vmatprep.mubr.f32.mxu0 0.0
        %2083 = vmatmul.mubr.f32.gmra.mxu0 %v1191
        %v2084 = vpop.f32.mrf.mxu0
        %v2085 = vadd.f32 0.0, %v2084
        %v2086 = vpop.f32.mrf.mxu0
        %2087 = vmatprep.mubr.f32.mxu0 0.0
        %2088 = vmatmul.mubr.f32.gmra.mxu0 %v1194
        %v2089 = vpop.f32.mrf.mxu0
        %v2090 = vadd.f32 0.0, %v2089
        %v2091 = vpop.f32.mrf.mxu0
        %2092 = vmatprep.mubr.f32.mxu0 0.0
        %2093 = vmatmul.mubr.f32.gmra.mxu0 %v1197
        %v2094 = vpop.f32.mrf.mxu0
        %v2095 = vadd.f32 0.0, %v2094
        %v2096 = vpop.f32.mrf.mxu0
        %2097 = vmatprep.mubr.f32.mxu0 0.0
        %2098 = vmatmul.mubr.f32.gmra.mxu0 %v1200
        %v2099 = vpop.f32.mrf.mxu0
        %v2100 = vadd.f32 0.0, %v2099
        %v2101 = vpop.f32.mrf.mxu0
        %2102 = vmatprep.mubr.f32.mxu0 0.0
        %2103 = vmatmul.mubr.f32.gmra.mxu0 %v1203
        %v2104 = vpop.f32.mrf.mxu0
        %v2105 = vadd.f32 0.0, %v2104
        %v2106 = vpop.f32.mrf.mxu0
        %2107 = vmatprep.mubr.f32.mxu0 0.0
        %2108 = vmatmul.mubr.f32.gmra.mxu0 %v1206
        %v2109 = vpop.f32.mrf.mxu0
        %v2110 = vadd.f32 0.0, %v2109
        %v2111 = vpop.f32.mrf.mxu0
        %2112 = vmatprep.mubr.f32.mxu0 0.0
        %2113 = vmatmul.mubr.f32.gmra.mxu0 %v1209
        %v2114 = vpop.f32.mrf.mxu0
        %v2115 = vadd.f32 0.0, %v2114
        %v2116 = vpop.f32.mrf.mxu0
        %2117 = vmatprep.mubr.f32.mxu0 0.0
        %2118 = vmatmul.mubr.f32.gmra.mxu0 %v1212
        %v2119 = vpop.f32.mrf.mxu0
        %v2120 = vadd.f32 0.0, %v2119
        %v2121 = vpop.f32.mrf.mxu0
        %2122 = vmatprep.mubr.f32.mxu0 0.0
        %2123 = vmatmul.mubr.f32.gmra.mxu0 %v1215
        %v2124 = vpop.f32.mrf.mxu0
        %v2125 = vadd.f32 0.0, %v2124
        %v2126 = vpop.f32.mrf.mxu0
        %2127 = vmatprep.mubr.f32.mxu0 0.0
        %2128 = vmatmul.mubr.f32.gmra.mxu0 %v1218
        %v2129 = vpop.f32.mrf.mxu0
        %v2130 = vadd.f32 0.0, %v2129
        %v2131 = vpop.f32.mrf.mxu0
        %2132 = vmatprep.mubr.f32.mxu0 0.0
        %2133 = vmatmul.mubr.f32.gmra.mxu0 %v1221
        %v2134 = vpop.f32.mrf.mxu0
        %v2135 = vadd.f32 0.0, %v2134
        %v2136 = vpop.f32.mrf.mxu0
        %2137 = vmatprep.mubr.f32.mxu0 0.0
        %2138 = vmatmul.mubr.f32.gmra.mxu0 %v1224
        %v2139 = vpop.f32.mrf.mxu0
        %v2140 = vadd.f32 0.0, %v2139
        %v2141 = vpop.f32.mrf.mxu0
        %2142 = vmatprep.mubr.f32.mxu0 0.0
        %2143 = vmatmul.mubr.f32.gmra.mxu0 %v1227
        %v2144 = vpop.f32.mrf.mxu0
        %v2145 = vadd.f32 0.0, %v2144
        %v2146 = vpop.f32.mrf.mxu0
        %2147 = vmatprep.mubr.f32.mxu0 0.0
        %2148 = vmatmul.mubr.f32.gmra.mxu0 %v1230
        %v2149 = vpop.f32.mrf.mxu0
        %v2150 = vadd.f32 0.0, %v2149
        %v2151 = vpop.f32.mrf.mxu0
        %2152 = vmatprep.mubr.f32.mxu0 0.0
        %2153 = vmatmul.mubr.f32.gmra.mxu0 %v1233
        %v2154 = vpop.f32.mrf.mxu0
        %v2155 = vadd.f32 0.0, %v2154
        %v2156 = vpop.f32.mrf.mxu0
        %2157 = vmatprep.mubr.f32.mxu0 0.0
        %2158 = vmatmul.mubr.f32.gmra.mxu0 %v1236
        %v2159 = vpop.f32.mrf.mxu0
        %v2160 = vadd.f32 0.0, %v2159
        %v2161 = vpop.f32.mrf.mxu0
        %2162 = vmatprep.mubr.f32.mxu0 0.0
        %2163 = vmatmul.mubr.f32.gmra.mxu0 %v1239
        %v2164 = vpop.f32.mrf.mxu0
        %v2165 = vadd.f32 0.0, %v2164
        %v2166 = vpop.f32.mrf.mxu0
        %2167 = vmatprep.mubr.f32.mxu0 0.0
        %2168 = vmatmul.mubr.f32.gmra.mxu0 %v1242
        %v2169 = vpop.f32.mrf.mxu0
        %v2170 = vadd.f32 0.0, %v2169
        %v2171 = vpop.f32.mrf.mxu0
        %2172 = vmatprep.mubr.f32.mxu0 0.0
        %2173 = vmatmul.mubr.f32.gmra.mxu0 %v1245
        %v2174 = vpop.f32.mrf.mxu0
        %v2175 = vadd.f32 0.0, %v2174
        %v2176 = vpop.f32.mrf.mxu0
        %2177 = vmatprep.mubr.f32.mxu0 0.0
        %2178 = vmatmul.mubr.f32.gmra.mxu0 %v1248
        %v2179 = vpop.f32.mrf.mxu0
        %v2180 = vadd.f32 0.0, %v2179
        %v2181 = vpop.f32.mrf.mxu0
        %2182 = vmatprep.mubr.f32.mxu0 0.0
        %2183 = vmatmul.mubr.f32.gmra.mxu0 %v1251
        %v2184 = vpop.f32.mrf.mxu0
        %v2185 = vadd.f32 0.0, %v2184
        %v2186 = vpop.f32.mrf.mxu0
        %2187 = vmatprep.mubr.f32.mxu0 0.0
        %2188 = vmatmul.mubr.f32.gmra.mxu0 %v1254
        %v2189 = vpop.f32.mrf.mxu0
        %v2190 = vadd.f32 0.0, %v2189
        %v2191 = vpop.f32.mrf.mxu0
        %2192 = vmatprep.mubr.f32.mxu0 0.0
        %2193 = vmatmul.mubr.f32.gmra.mxu0 %v1257
        %v2194 = vpop.f32.mrf.mxu0
        %v2195 = vadd.f32 0.0, %v2194
        %v2196 = vpop.f32.mrf.mxu0
        %2197 = vmatprep.mubr.f32.mxu0 0.0
        %2198 = vmatmul.mubr.f32.gmra.mxu0 %v1260
        %v2199 = vpop.f32.mrf.mxu0
        %v2200 = vadd.f32 0.0, %v2199
        %v2201 = vpop.f32.mrf.mxu0
        %2202 = vmatprep.mubr.f32.mxu0 0.0
        %2203 = vmatmul.mubr.f32.gmra.mxu0 %v1263
        %v2204 = vpop.f32.mrf.mxu0
        %v2205 = vadd.f32 0.0, %v2204
        %v2206 = vpop.f32.mrf.mxu0
        %2207 = vmatprep.mubr.f32.mxu0 0.0
        %2208 = vmatmul.mubr.f32.gmra.mxu0 %v1266
        %v2209 = vpop.f32.mrf.mxu0
        %v2210 = vadd.f32 0.0, %v2209
        %v2211 = vpop.f32.mrf.mxu0
        %2212 = vmatprep.mubr.f32.mxu0 0.0
        %2213 = vmatmul.mubr.f32.gmra.mxu0 %v1269
        %v2214 = vpop.f32.mrf.mxu0
        %v2215 = vadd.f32 0.0, %v2214
        %v2216 = vpop.f32.mrf.mxu0
        %2217 = vmatprep.mubr.f32.mxu0 0.0
        %2218 = vmatmul.mubr.f32.gmra.mxu0 %v1272
        %v2219 = vpop.f32.mrf.mxu0
        %v2220 = vadd.f32 0.0, %v2219
        %v2221 = vpop.f32.mrf.mxu0
        %2222 = vmatprep.mubr.f32.mxu0 0.0
        %2223 = vmatmul.mubr.f32.gmra.mxu0 %v1275
        %v2224 = vpop.f32.mrf.mxu0
        %v2225 = vadd.f32 0.0, %v2224
        %v2226 = vpop.f32.mrf.mxu0
        %2227 = vmatprep.mubr.f32.mxu0 0.0
        %2228 = vmatmul.mubr.f32.gmra.mxu0 %v1278
        %v2229 = vpop.f32.mrf.mxu0
        %v2230 = vadd.f32 0.0, %v2229
        %v2231 = vpop.f32.mrf.mxu0
        %2232 = vmatprep.mubr.f32.mxu0 0.0
        %2233 = vmatmul.mubr.f32.gmra.mxu0 %v1281
        %v2234 = vpop.f32.mrf.mxu0
        %v2235 = vadd.f32 0.0, %v2234
        %v2236 = vpop.f32.mrf.mxu0
        %2237 = vmatprep.mubr.f32.mxu0 0.0
        %2238 = vmatmul.mubr.f32.gmra.mxu0 %v1284
        %v2239 = vpop.f32.mrf.mxu0
        %v2240 = vadd.f32 0.0, %v2239
        %v2241 = vpop.f32.mrf.mxu0
        %2242 = vmatprep.mubr.f32.mxu0 0.0
        %2243 = vmatmul.mubr.f32.gmra.mxu0 %v1287
        %v2244 = vpop.f32.mrf.mxu0
        %v2245 = vadd.f32 0.0, %v2244
        %v2246 = vpop.f32.mrf.mxu0
        %2247 = vmatprep.mubr.f32.mxu0 0.0
        %2248 = vmatmul.mubr.f32.gmra.mxu0 %v1290
        %v2249 = vpop.f32.mrf.mxu0
        %v2250 = vadd.f32 0.0, %v2249
        %v2251 = vpop.f32.mrf.mxu0
        %2252 = vmatprep.mubr.f32.mxu0 0.0
        %2253 = vmatmul.mubr.f32.gmra.mxu0 %v1293
        %v2254 = vpop.f32.mrf.mxu0
        %v2255 = vadd.f32 0.0, %v2254
        %v2256 = vpop.f32.mrf.mxu0
        %2257 = vmatprep.mubr.f32.mxu0 0.0
        %2258 = vmatmul.mubr.f32.gmra.mxu0 %v1296
        %v2259 = vpop.f32.mrf.mxu0
        %v2260 = vadd.f32 0.0, %v2259
        %v2261 = vpop.f32.mrf.mxu0
        %2262 = vmatprep.mubr.f32.mxu0 0.0
        %2263 = vmatmul.mubr.f32.gmra.mxu0 %v1299
        %v2264 = vpop.f32.mrf.mxu0
        %v2265 = vadd.f32 0.0, %v2264
        %v2266 = vpop.f32.mrf.mxu0
        %2267 = vmatprep.mubr.f32.mxu0 0.0
        %2268 = vmatmul.mubr.f32.gmra.mxu0 %v1302
        %v2269 = vpop.f32.mrf.mxu0
        %v2270 = vadd.f32 0.0, %v2269
        %v2271 = vpop.f32.mrf.mxu0
        %2272 = vmatprep.mubr.f32.mxu0 0.0
        %2273 = vmatmul.mubr.f32.gmra.mxu0 %v1305
        %v2274 = vpop.f32.mrf.mxu0
        %v2275 = vadd.f32 0.0, %v2274
        %v2276 = vpop.f32.mrf.mxu0
        %2277 = vmatprep.mubr.f32.mxu0 0.0
        %2278 = vmatmul.mubr.f32.gmra.mxu0 %v1308
        %v2279 = vpop.f32.mrf.mxu0
        %v2280 = vadd.f32 0.0, %v2279
        %v2281 = vpop.f32.mrf.mxu0
        %2282 = vmatprep.mubr.f32.mxu0 0.0
        %2283 = vmatmul.mubr.f32.gmra.mxu0 %v1311
        %v2284 = vpop.f32.mrf.mxu0
        %v2285 = vadd.f32 0.0, %v2284
        %v2286 = vpop.f32.mrf.mxu0
        %2287 = vmatprep.mubr.f32.mxu0 0.0
        %2288 = vmatmul.mubr.f32.gmra.mxu0 %v1314
        %v2289 = vpop.f32.mrf.mxu0
        %v2290 = vadd.f32 0.0, %v2289
        %v2291 = vpop.f32.mrf.mxu0
        %2292 = vmatprep.mubr.f32.mxu0 0.0
        %2293 = vmatmul.mubr.f32.gmra.mxu0 %v1317
        %v2294 = vpop.f32.mrf.mxu0
        %v2295 = vadd.f32 0.0, %v2294
        %v2296 = vpop.f32.mrf.mxu0
        %2297 = vmatprep.mubr.f32.mxu0 0.0
        %2298 = vmatmul.mubr.f32.gmra.mxu0 %v1320
        %v2299 = vpop.f32.mrf.mxu0
        %v2300 = vadd.f32 0.0, %v2299
        %v2301 = vpop.f32.mrf.mxu0
        %2302 = vmatprep.mubr.f32.mxu0 0.0
        %2303 = vmatmul.mubr.f32.gmra.mxu0 %v1323
        %v2304 = vpop.f32.mrf.mxu0
        %v2305 = vadd.f32 0.0, %v2304
        %v2306 = vpop.f32.mrf.mxu0
        %2307 = vmatprep.mubr.f32.mxu0 0.0
        %2308 = vmatmul.mubr.f32.gmra.mxu0 %v1326
        %v2309 = vpop.f32.mrf.mxu0
        %v2310 = vadd.f32 0.0, %v2309
        %v2311 = vpop.f32.mrf.mxu0
        %2312 = vmatprep.mubr.f32.mxu0 0.0
        %2313 = vmatmul.mubr.f32.gmra.mxu0 %v1329
        %v2314 = vpop.f32.mrf.mxu0
        %v2315 = vadd.f32 0.0, %v2314
        %v2316 = vpop.f32.mrf.mxu0
        %2317 = vmatprep.mubr.f32.mxu0 0.0
        %2318 = vmatmul.mubr.f32.gmra.mxu0 %v1332
        %v2319 = vpop.f32.mrf.mxu0
        %v2320 = vadd.f32 0.0, %v2319
        %v2321 = vpop.f32.mrf.mxu0
        %2322 = vmatprep.mubr.f32.mxu0 0.0
        %2323 = vmatmul.mubr.f32.gmra.mxu0 %v1335
        %v2324 = vpop.f32.mrf.mxu0
        %v2325 = vadd.f32 0.0, %v2324
        %v2326 = vpop.f32.mrf.mxu0
        %2327 = vmatprep.mubr.f32.mxu0 0.0
        %2328 = vmatmul.mubr.f32.gmra.mxu0 %v1338
        %v2329 = vpop.f32.mrf.mxu0
        %v2330 = vadd.f32 0.0, %v2329
        %v2331 = vpop.f32.mrf.mxu0
        %2332 = vmatprep.mubr.f32.mxu0 0.0
        %2333 = vmatmul.mubr.f32.gmra.mxu0 %v1341
        %v2334 = vpop.f32.mrf.mxu0
        %v2335 = vadd.f32 0.0, %v2334
        %v2336 = vpop.f32.mrf.mxu0
        %2337 = vmatprep.mubr.f32.mxu0 0.0
        %2338 = vmatmul.mubr.f32.gmra.mxu0 %v1344
        %v2339 = vpop.f32.mrf.mxu0
        %v2340 = vadd.f32 0.0, %v2339
        %v2341 = vpop.f32.mrf.mxu0
        %2342 = vmatprep.mubr.f32.mxu0 0.0
        %2343 = vmatmul.mubr.f32.gmra.mxu0 %v1347
        %v2344 = vpop.f32.mrf.mxu0
        %v2345 = vadd.f32 0.0, %v2344
        %v2346 = vpop.f32.mrf.mxu0
        %2347 = vmatprep.mubr.f32.mxu0 0.0
        %2348 = vmatmul.mubr.f32.gmra.mxu0 %v1350
        %v2349 = vpop.f32.mrf.mxu0
        %v2350 = vadd.f32 0.0, %v2349
        %v2351 = vpop.f32.mrf.mxu0
        %2352 = vmatprep.mubr.f32.mxu0 0.0
        %2353 = vmatmul.mubr.f32.gmra.mxu0 %v1353
        %v2354 = vpop.f32.mrf.mxu0
        %v2355 = vadd.f32 0.0, %v2354
        %v2356 = vpop.f32.mrf.mxu0
        %2357 = vmatprep.mubr.f32.mxu0 0.0
        %2358 = vmatmul.mubr.f32.gmra.mxu0 %v1356
        %v2359 = vpop.f32.mrf.mxu0
        %v2360 = vadd.f32 0.0, %v2359
        %v2361 = vpop.f32.mrf.mxu0
        %2362 = vmatprep.mubr.f32.mxu0 0.0
        %2363 = vmatmul.mubr.f32.gmra.mxu0 %v1359
        %v2364 = vpop.f32.mrf.mxu0
        %v2365 = vadd.f32 0.0, %v2364
        %v2366 = vpop.f32.mrf.mxu0
        %2367 = vmatprep.mubr.f32.mxu0 0.0
        %2368 = vmatmul.mubr.f32.gmra.mxu0 %v1362
        %v2369 = vpop.f32.mrf.mxu0
        %v2370 = vadd.f32 0.0, %v2369
        %v2371 = vpop.f32.mrf.mxu0
        %2372 = vmatprep.mubr.f32.mxu0 0.0
        %2373 = vmatmul.mubr.f32.gmra.mxu0 %v1365
        %v2374 = vpop.f32.mrf.mxu0
        %v2375 = vadd.f32 0.0, %v2374
        %v2376 = vpop.f32.mrf.mxu0
        %2377 = vmatprep.mubr.f32.mxu0 0.0
        %2378 = vmatmul.mubr.f32.gmra.mxu0 %v1368
        %v2379 = vpop.f32.mrf.mxu0
        %v2380 = vadd.f32 0.0, %v2379
        %v2381 = vpop.f32.mrf.mxu0
        %2382 = vmatprep.mubr.f32.mxu0 0.0
        %2383 = vmatmul.mubr.f32.gmra.mxu0 %v1371
        %v2384 = vpop.f32.mrf.mxu0
        %v2385 = vadd.f32 0.0, %v2384
        %v2386 = vpop.f32.mrf.mxu0
        %2387 = vmatprep.mubr.f32.mxu0 0.0
        %2388 = vmatmul.mubr.f32.gmra.mxu0 %v1374
        %v2389 = vpop.f32.mrf.mxu0
        %v2390 = vadd.f32 0.0, %v2389
        %v2391 = vpop.f32.mrf.mxu0
        %2392 = vmatprep.mubr.f32.mxu0 0.0
        %2393 = vmatmul.mubr.f32.gmra.mxu0 %v1377
        %v2394 = vpop.f32.mrf.mxu0
        %v2395 = vadd.f32 0.0, %v2394
        %v2396 = vpop.f32.mrf.mxu0
        %2397 = vmatprep.mubr.f32.mxu0 0.0
        %2398 = vmatmul.mubr.f32.gmra.mxu0 %v1380
        %v2399 = vpop.f32.mrf.mxu0
        %v2400 = vadd.f32 0.0, %v2399
        %v2401 = vpop.f32.mrf.mxu0
        %2402 = vmatprep.mubr.f32.mxu0 0.0
        %2403 = vmatmul.mubr.f32.gmra.mxu0 %v1383
        %v2404 = vpop.f32.mrf.mxu0
        %v2405 = vadd.f32 0.0, %v2404
        %v2406 = vpop.f32.mrf.mxu0
        %2407 = vmatprep.mubr.f32.mxu0 0.0
        %2408 = vmatmul.mubr.f32.gmra.mxu0 %v1386
        %v2409 = vpop.f32.mrf.mxu0
        %v2410 = vadd.f32 0.0, %v2409
        %v2411 = vpop.f32.mrf.mxu0
        %2412 = vdwg.mxu0
        %v2413 = vmax.f32 %v1455, %v1475
        %v2414 = vmax.f32 %v1460, %v1480
        %v2415 = vmax.f32 %v1465, %v1485
        %v2416 = vmax.f32 %v1470, %v1490
        %v2417 = vmax.f32 %v2413, %v1495
        %v2418 = vmax.f32 %v2414, %v1500
        %v2419 = vmax.f32 %v2415, %v1505
        %v2420 = vmax.f32 %v2416, %v1510
        %v2421 = vmax.f32 %v2417, %v1515
        %v2422 = vmax.f32 %v2418, %v1520
        %v2423 = vmax.f32 %v2419, %v1525
        %v2424 = vmax.f32 %v2420, %v1530
        %v2425 = vmax.f32 %v2421, %v1535
        %v2426 = vmax.f32 %v2422, %v1540
        %v2427 = vmax.f32 %v2423, %v1545
        %v2428 = vmax.f32 %v2424, %v1550
        %v2429 = vmax.f32 %v2425, %v1555
        %v2430 = vmax.f32 %v2426, %v1560
        %v2431 = vmax.f32 %v2427, %v1565
        %v2432 = vmax.f32 %v2428, %v1570
        %v2433 = vmax.f32 %v2429, %v1575
        %v2434 = vmax.f32 %v2430, %v1580
        %v2435 = vmax.f32 %v2431, %v1585
        %v2436 = vmax.f32 %v2432, %v1590
        %v2437 = vmax.f32 %v2433, %v1595
        %v2438 = vmax.f32 %v2434, %v1600
        %v2439 = vmax.f32 %v2435, %v1605
        %v2440 = vmax.f32 %v2436, %v1610
        %v2441 = vmax.f32 %v2437, %v1615
        %v2442 = vmax.f32 %v2438, %v1620
        %v2443 = vmax.f32 %v2439, %v1625
        %v2444 = vmax.f32 %v2440, %v1630
        %v2445 = vmax.f32 %v2441, %v1635
        %v2446 = vmax.f32 %v2442, %v1640
        %v2447 = vmax.f32 %v2443, %v1645
        %v2448 = vmax.f32 %v2444, %v1650
        %v2449 = vmax.f32 %v2445, %v1655
        %v2450 = vmax.f32 %v2446, %v1660
        %v2451 = vmax.f32 %v2447, %v1665
        %v2452 = vmax.f32 %v2448, %v1670
        %v2453 = vmax.f32 %v2449, %v1675
        %v2454 = vmax.f32 %v2450, %v1680
        %v2455 = vmax.f32 %v2451, %v1685
        %v2456 = vmax.f32 %v2452, %v1690
        %v2457 = vmax.f32 %v2453, %v1695
        %v2458 = vmax.f32 %v2454, %v1700
        %v2459 = vmax.f32 %v2455, %v1705
        %v2460 = vmax.f32 %v2456, %v1710
        %v2461 = vmax.f32 %v2457, %v1715
        %v2462 = vmax.f32 %v2458, %v1720
        %v2463 = vmax.f32 %v2459, %v1725
        %v2464 = vmax.f32 %v2460, %v1730
        %v2465 = vmax.f32 %v2461, %v1735
        %v2466 = vmax.f32 %v2462, %v1740
        %v2467 = vmax.f32 %v2463, %v1745
        %v2468 = vmax.f32 %v2464, %v1750
        %v2469 = vmax.f32 %v2465, %v1755
        %v2470 = vmax.f32 %v2466, %v1760
        %v2471 = vmax.f32 %v2467, %v1765
        %v2472 = vmax.f32 %v2468, %v1770
        %v2473 = vmax.f32 %v2469, %v1775
        %v2474 = vmax.f32 %v2470, %v1780
        %v2475 = vmax.f32 %v2471, %v1785
        %v2476 = vmax.f32 %v2472, %v1790
        %v2477 = vmax.f32 %v2473, %v1795
        %v2478 = vmax.f32 %v2474, %v1800
        %v2479 = vmax.f32 %v2475, %v1805
        %v2480 = vmax.f32 %v2476, %v1810
        %v2481 = vmax.f32 %v2477, %v1815
        %v2482 = vmax.f32 %v2478, %v1820
        %v2483 = vmax.f32 %v2479, %v1825
        %v2484 = vmax.f32 %v2480, %v1830
        %v2485 = vmax.f32 %v2481, %v1835
        %v2486 = vmax.f32 %v2482, %v1840
        %v2487 = vmax.f32 %v2483, %v1845
        %v2488 = vmax.f32 %v2484, %v1850
        %v2489 = vmax.f32 %v2485, %v1855
        %v2490 = vmax.f32 %v2486, %v1860
        %v2491 = vmax.f32 %v2487, %v1865
        %v2492 = vmax.f32 %v2488, %v1870
        %v2493 = vmax.f32 %v2489, %v1875
        %v2494 = vmax.f32 %v2490, %v1880
        %v2495 = vmax.f32 %v2491, %v1885
        %v2496 = vmax.f32 %v2492, %v1890
        %v2497 = vmax.f32 %v2493, %v1895
        %v2498 = vmax.f32 %v2494, %v1900
        %v2499 = vmax.f32 %v2495, %v1905
        %v2500 = vmax.f32 %v2496, %v1910
        %v2501 = vmax.f32 %v2497, %v1915
        %v2502 = vmax.f32 %v2498, %v1920
        %v2503 = vmax.f32 %v2499, %v1925
        %v2504 = vmax.f32 %v2500, %v1930
        %v2505 = vmax.f32 %v2501, %v1935
        %v2506 = vmax.f32 %v2502, %v1940
        %v2507 = vmax.f32 %v2503, %v1945
        %v2508 = vmax.f32 %v2504, %v1950
        %v2509 = vmax.f32 %v2505, %v1955
        %v2510 = vmax.f32 %v2506, %v1960
        %v2511 = vmax.f32 %v2507, %v1965
        %v2512 = vmax.f32 %v2508, %v1970
        %v2513 = vmax.f32 %v2509, %v1975
        %v2514 = vmax.f32 %v2510, %v1980
        %v2515 = vmax.f32 %v2511, %v1985
        %v2516 = vmax.f32 %v2512, %v1990
        %v2517 = vmax.f32 %v2513, %v1995
        %v2518 = vmax.f32 %v2514, %v2000
        %v2519 = vmax.f32 %v2515, %v2005
        %v2520 = vmax.f32 %v2516, %v2010
        %v2521 = vmax.f32 %v2517, %v2015
        %v2522 = vmax.f32 %v2518, %v2020
        %v2523 = vmax.f32 %v2519, %v2025
        %v2524 = vmax.f32 %v2520, %v2030
        %v2525 = vmax.f32 %v2521, %v2035
        %v2526 = vmax.f32 %v2522, %v2040
        %v2527 = vmax.f32 %v2523, %v2045
        %v2528 = vmax.f32 %v2524, %v2050
        %v2529 = vmax.f32 %v2525, %v2055
        %v2530 = vmax.f32 %v2526, %v2060
        %v2531 = vmax.f32 %v2527, %v2065
        %v2532 = vmax.f32 %v2528, %v2070
        %v2533 = vmax.f32 %v2529, %v2075
        %v2534 = vmax.f32 %v2530, %v2080
        %v2535 = vmax.f32 %v2531, %v2085
        %v2536 = vmax.f32 %v2532, %v2090
        %v2537 = vmax.f32 %v2533, %v2095
        %v2538 = vmax.f32 %v2534, %v2100
        %v2539 = vmax.f32 %v2535, %v2105
        %v2540 = vmax.f32 %v2536, %v2110
        %v2541 = vmax.f32 %v2537, %v2115
        %v2542 = vmax.f32 %v2538, %v2120
        %v2543 = vmax.f32 %v2539, %v2125
        %v2544 = vmax.f32 %v2540, %v2130
        %v2545 = vmax.f32 %v2541, %v2135
        %v2546 = vmax.f32 %v2542, %v2140
        %v2547 = vmax.f32 %v2543, %v2145
        %v2548 = vmax.f32 %v2544, %v2150
        %v2549 = vmax.f32 %v2545, %v2155
        %v2550 = vmax.f32 %v2546, %v2160
        %v2551 = vmax.f32 %v2547, %v2165
        %v2552 = vmax.f32 %v2548, %v2170
        %v2553 = vmax.f32 %v2549, %v2175
        %v2554 = vmax.f32 %v2550, %v2180
        %v2555 = vmax.f32 %v2551, %v2185
        %v2556 = vmax.f32 %v2552, %v2190
        %v2557 = vmax.f32 %v2553, %v2195
        %v2558 = vmax.f32 %v2554, %v2200
        %v2559 = vmax.f32 %v2555, %v2205
        %v2560 = vmax.f32 %v2556, %v2210
        %v2561 = vmax.f32 %v2557, %v2215
        %v2562 = vmax.f32 %v2558, %v2220
        %v2563 = vmax.f32 %v2559, %v2225
        %v2564 = vmax.f32 %v2560, %v2230
        %v2565 = vmax.f32 %v2561, %v2235
        %v2566 = vmax.f32 %v2562, %v2240
        %v2567 = vmax.f32 %v2563, %v2245
        %v2568 = vmax.f32 %v2564, %v2250
        %v2569 = vmax.f32 %v2565, %v2255
        %v2570 = vmax.f32 %v2566, %v2260
        %v2571 = vmax.f32 %v2567, %v2265
        %v2572 = vmax.f32 %v2568, %v2270
        %v2573 = vmax.f32 %v2569, %v2275
        %v2574 = vmax.f32 %v2570, %v2280
        %v2575 = vmax.f32 %v2571, %v2285
        %v2576 = vmax.f32 %v2572, %v2290
        %v2577 = vmax.f32 %v2573, %v2295
        %v2578 = vmax.f32 %v2574, %v2300
        %v2579 = vmax.f32 %v2575, %v2305
        %v2580 = vmax.f32 %v2576, %v2310
        %v2581 = vmax.f32 %v2577, %v2315
        %v2582 = vmax.f32 %v2578, %v2320
        %v2583 = vmax.f32 %v2579, %v2325
        %v2584 = vmax.f32 %v2580, %v2330
        %v2585 = vmax.f32 %v2581, %v2335
        %v2586 = vmax.f32 %v2582, %v2340
        %v2587 = vmax.f32 %v2583, %v2345
        %v2588 = vmax.f32 %v2584, %v2350
        %v2589 = vmax.f32 %v2585, %v2355
        %v2590 = vmax.f32 %v2586, %v2360
        %v2591 = vmax.f32 %v2587, %v2365
        %v2592 = vmax.f32 %v2588, %v2370
        %v2593 = vmax.f32 %v2589, %v2375
        %v2594 = vmax.f32 %v2590, %v2380
        %v2595 = vmax.f32 %v2591, %v2385
        %v2596 = vmax.f32 %v2592, %v2390
        %v2597 = vmax.f32 %v2593, %v2395
        %v2598 = vmax.f32 %v2594, %v2400
        %v2599 = vmax.f32 %v2595, %v2405
        %v2600 = vmax.f32 %v2596, %v2410
        %v2601 = vmax.f32 %v2597, %v2598
        %v2602 = vmax.f32 %v2599, %v2600
        %v2603 = vmax.f32 %v2601, %v2602
        %v2604 = vrot.slane %v2603, 4
        %v2605 = vmax.f32 %v2603, %v2604
        %v2606 = vrot.slane %v2605, 2
        %v2607 = vmax.f32 %v2605, %v2606
        %v2608 = vrot.slane %v2607, 1
        %v2609 = vmax.f32 %v2607, %v2608
        %v2610 = vsub.f32 %v1455, %v2609
        %v2611 = vsub.f32 %v1460, %v2609
        %v2612 = vsub.f32 %v1465, %v2609
        %v2613 = vsub.f32 %v1470, %v2609
        %v2614 = vsub.f32 %v1475, %v2609
        %v2615 = vsub.f32 %v1480, %v2609
        %v2616 = vsub.f32 %v1485, %v2609
        %v2617 = vsub.f32 %v1490, %v2609
        %v2618 = vsub.f32 %v1495, %v2609
        %v2619 = vsub.f32 %v1500, %v2609
        %v2620 = vsub.f32 %v1505, %v2609
        %v2621 = vsub.f32 %v1510, %v2609
        %v2622 = vsub.f32 %v1515, %v2609
        %v2623 = vsub.f32 %v1520, %v2609
        %v2624 = vsub.f32 %v1525, %v2609
        %v2625 = vsub.f32 %v1530, %v2609
        %v2626 = vsub.f32 %v1535, %v2609
        %v2627 = vsub.f32 %v1540, %v2609
        %v2628 = vsub.f32 %v1545, %v2609
        %v2629 = vsub.f32 %v1550, %v2609
        %v2630 = vsub.f32 %v1555, %v2609
        %v2631 = vsub.f32 %v1560, %v2609
        %v2632 = vsub.f32 %v1565, %v2609
        %v2633 = vsub.f32 %v1570, %v2609
        %v2634 = vsub.f32 %v1575, %v2609
        %v2635 = vsub.f32 %v1580, %v2609
        %v2636 = vsub.f32 %v1585, %v2609
        %v2637 = vsub.f32 %v1590, %v2609
        %v2638 = vsub.f32 %v1595, %v2609
        %v2639 = vsub.f32 %v1600, %v2609
        %v2640 = vsub.f32 %v1605, %v2609
        %v2641 = vsub.f32 %v1610, %v2609
        %v2642 = vsub.f32 %v1615, %v2609
        %v2643 = vsub.f32 %v1620, %v2609
        %v2644 = vsub.f32 %v1625, %v2609
        %v2645 = vsub.f32 %v1630, %v2609
        %v2646 = vsub.f32 %v1635, %v2609
        %v2647 = vsub.f32 %v1640, %v2609
        %v2648 = vsub.f32 %v1645, %v2609
        %v2649 = vsub.f32 %v1650, %v2609
        %v2650 = vsub.f32 %v1655, %v2609
        %v2651 = vsub.f32 %v1660, %v2609
        %v2652 = vsub.f32 %v1665, %v2609
        %v2653 = vsub.f32 %v1670, %v2609
        %v2654 = vsub.f32 %v1675, %v2609
        %v2655 = vsub.f32 %v1680, %v2609
        %v2656 = vsub.f32 %v1685, %v2609
        %v2657 = vsub.f32 %v1690, %v2609
        %v2658 = vsub.f32 %v1695, %v2609
        %v2659 = vsub.f32 %v1700, %v2609
        %v2660 = vsub.f32 %v1705, %v2609
        %v2661 = vsub.f32 %v1710, %v2609
        %v2662 = vsub.f32 %v1715, %v2609
        %v2663 = vsub.f32 %v1720, %v2609
        %v2664 = vsub.f32 %v1725, %v2609
        %v2665 = vsub.f32 %v1730, %v2609
        %v2666 = vsub.f32 %v1735, %v2609
        %v2667 = vsub.f32 %v1740, %v2609
        %v2668 = vsub.f32 %v1745, %v2609
        %v2669 = vsub.f32 %v1750, %v2609
        %v2670 = vsub.f32 %v1755, %v2609
        %v2671 = vsub.f32 %v1760, %v2609
        %v2672 = vsub.f32 %v1765, %v2609
        %v2673 = vsub.f32 %v1770, %v2609
        %v2674 = vsub.f32 %v1775, %v2609
        %v2675 = vsub.f32 %v1780, %v2609
        %v2676 = vsub.f32 %v1785, %v2609
        %v2677 = vsub.f32 %v1790, %v2609
        %v2678 = vsub.f32 %v1795, %v2609
        %v2679 = vsub.f32 %v1800, %v2609
        %v2680 = vsub.f32 %v1805, %v2609
        %v2681 = vsub.f32 %v1810, %v2609
        %v2682 = vsub.f32 %v1815, %v2609
        %v2683 = vsub.f32 %v1820, %v2609
        %v2684 = vsub.f32 %v1825, %v2609
        %v2685 = vsub.f32 %v1830, %v2609
        %v2686 = vsub.f32 %v1835, %v2609
        %v2687 = vsub.f32 %v1840, %v2609
        %v2688 = vsub.f32 %v1845, %v2609
        %v2689 = vsub.f32 %v1850, %v2609
        %v2690 = vsub.f32 %v1855, %v2609
        %v2691 = vsub.f32 %v1860, %v2609
        %v2692 = vsub.f32 %v1865, %v2609
        %v2693 = vsub.f32 %v1870, %v2609
        %v2694 = vsub.f32 %v1875, %v2609
        %v2695 = vsub.f32 %v1880, %v2609
        %v2696 = vsub.f32 %v1885, %v2609
        %v2697 = vsub.f32 %v1890, %v2609
        %v2698 = vsub.f32 %v1895, %v2609
        %v2699 = vsub.f32 %v1900, %v2609
        %v2700 = vsub.f32 %v1905, %v2609
        %v2701 = vsub.f32 %v1910, %v2609
        %v2702 = vsub.f32 %v1915, %v2609
        %v2703 = vsub.f32 %v1920, %v2609
        %v2704 = vsub.f32 %v1925, %v2609
        %v2705 = vsub.f32 %v1930, %v2609
        %v2706 = vsub.f32 %v1935, %v2609
        %v2707 = vsub.f32 %v1940, %v2609
        %v2708 = vsub.f32 %v1945, %v2609
        %v2709 = vsub.f32 %v1950, %v2609
        %v2710 = vsub.f32 %v1955, %v2609
        %v2711 = vsub.f32 %v1960, %v2609
        %v2712 = vsub.f32 %v1965, %v2609
        %v2713 = vsub.f32 %v1970, %v2609
        %v2714 = vsub.f32 %v1975, %v2609
        %v2715 = vsub.f32 %v1980, %v2609
        %v2716 = vsub.f32 %v1985, %v2609
        %v2717 = vsub.f32 %v1990, %v2609
        %v2718 = vsub.f32 %v1995, %v2609
        %v2719 = vsub.f32 %v2000, %v2609
        %v2720 = vsub.f32 %v2005, %v2609
        %v2721 = vsub.f32 %v2010, %v2609
        %v2722 = vsub.f32 %v2015, %v2609
        %v2723 = vsub.f32 %v2020, %v2609
        %v2724 = vsub.f32 %v2025, %v2609
        %v2725 = vsub.f32 %v2030, %v2609
        %v2726 = vsub.f32 %v2035, %v2609
        %v2727 = vsub.f32 %v2040, %v2609
        %v2728 = vsub.f32 %v2045, %v2609
        %v2729 = vsub.f32 %v2050, %v2609
        %v2730 = vsub.f32 %v2055, %v2609
        %v2731 = vsub.f32 %v2060, %v2609
        %v2732 = vsub.f32 %v2065, %v2609
        %v2733 = vsub.f32 %v2070, %v2609
        %v2734 = vsub.f32 %v2075, %v2609
        %v2735 = vsub.f32 %v2080, %v2609
        %v2736 = vsub.f32 %v2085, %v2609
        %v2737 = vsub.f32 %v2090, %v2609
        %v2738 = vsub.f32 %v2095, %v2609
        %v2739 = vsub.f32 %v2100, %v2609
        %v2740 = vsub.f32 %v2105, %v2609
        %v2741 = vsub.f32 %v2110, %v2609
        %v2742 = vsub.f32 %v2115, %v2609
        %v2743 = vsub.f32 %v2120, %v2609
        %v2744 = vsub.f32 %v2125, %v2609
        %v2745 = vsub.f32 %v2130, %v2609
        %v2746 = vsub.f32 %v2135, %v2609
        %v2747 = vsub.f32 %v2140, %v2609
        %v2748 = vsub.f32 %v2145, %v2609
        %v2749 = vsub.f32 %v2150, %v2609
        %v2750 = vsub.f32 %v2155, %v2609
        %v2751 = vsub.f32 %v2160, %v2609
        %v2752 = vsub.f32 %v2165, %v2609
        %v2753 = vsub.f32 %v2170, %v2609
        %v2754 = vsub.f32 %v2175, %v2609
        %v2755 = vsub.f32 %v2180, %v2609
        %v2756 = vsub.f32 %v2185, %v2609
        %v2757 = vsub.f32 %v2190, %v2609
        %v2758 = vsub.f32 %v2195, %v2609
        %v2759 = vsub.f32 %v2200, %v2609
        %v2760 = vsub.f32 %v2205, %v2609
        %v2761 = vsub.f32 %v2210, %v2609
        %v2762 = vsub.f32 %v2215, %v2609
        %v2763 = vsub.f32 %v2220, %v2609
        %v2764 = vsub.f32 %v2225, %v2609
        %v2765 = vsub.f32 %v2230, %v2609
        %v2766 = vsub.f32 %v2235, %v2609
        %v2767 = vsub.f32 %v2240, %v2609
        %v2768 = vsub.f32 %v2245, %v2609
        %v2769 = vsub.f32 %v2250, %v2609
        %v2770 = vsub.f32 %v2255, %v2609
        %v2771 = vsub.f32 %v2260, %v2609
        %v2772 = vsub.f32 %v2265, %v2609
        %v2773 = vsub.f32 %v2270, %v2609
        %v2774 = vsub.f32 %v2275, %v2609
        %v2775 = vsub.f32 %v2280, %v2609
        %v2776 = vsub.f32 %v2285, %v2609
        %v2777 = vsub.f32 %v2290, %v2609
        %v2778 = vsub.f32 %v2295, %v2609
        %v2779 = vsub.f32 %v2300, %v2609
        %v2780 = vsub.f32 %v2305, %v2609
        %v2781 = vsub.f32 %v2310, %v2609
        %v2782 = vsub.f32 %v2315, %v2609
        %v2783 = vsub.f32 %v2320, %v2609
        %v2784 = vsub.f32 %v2325, %v2609
        %v2785 = vsub.f32 %v2330, %v2609
        %v2786 = vsub.f32 %v2335, %v2609
        %v2787 = vsub.f32 %v2340, %v2609
        %v2788 = vsub.f32 %v2345, %v2609
        %v2789 = vsub.f32 %v2350, %v2609
        %v2790 = vsub.f32 %v2355, %v2609
        %v2791 = vsub.f32 %v2360, %v2609
        %v2792 = vsub.f32 %v2365, %v2609
        %v2793 = vsub.f32 %v2370, %v2609
        %v2794 = vsub.f32 %v2375, %v2609
        %v2795 = vsub.f32 %v2380, %v2609
        %v2796 = vsub.f32 %v2385, %v2609
        %v2797 = vsub.f32 %v2390, %v2609
        %v2798 = vsub.f32 %v2395, %v2609
        %v2799 = vsub.f32 %v2400, %v2609
        %v2800 = vsub.f32 %v2405, %v2609
        %v2801 = vsub.f32 %v2410, %v2609
        %v2802 = vmul.f32 %v2610, 1.442695
        %v2803 = vpow.pop %v2802
        %v2804 = vmul.f32 %v2611, 1.442695
        %v2805 = vpow.pop %v2804
        %v2806 = vmul.f32 %v2612, 1.442695
        %v2807 = vpow.pop %v2806
        %v2808 = vmul.f32 %v2613, 1.442695
        %v2809 = vpow.pop %v2808
        %v2810 = vmul.f32 %v2614, 1.442695
        %v2811 = vpow.pop %v2810
        %v2812 = vmul.f32 %v2615, 1.442695
        %v2813 = vpow.pop %v2812
        %v2814 = vmul.f32 %v2616, 1.442695
        %v2815 = vpow.pop %v2814
        %v2816 = vmul.f32 %v2617, 1.442695
        %v2817 = vpow.pop %v2816
        %v2818 = vmul.f32 %v2618, 1.442695
        %v2819 = vpow.pop %v2818
        %v2820 = vmul.f32 %v2619, 1.442695
        %v2821 = vpow.pop %v2820
        %v2822 = vmul.f32 %v2620, 1.442695
        %v2823 = vpow.pop %v2822
        %v2824 = vmul.f32 %v2621, 1.442695
        %v2825 = vpow.pop %v2824
        %v2826 = vmul.f32 %v2622, 1.442695
        %v2827 = vpow.pop %v2826
        %v2828 = vmul.f32 %v2623, 1.442695
        %v2829 = vpow.pop %v2828
        %v2830 = vmul.f32 %v2624, 1.442695
        %v2831 = vpow.pop %v2830
        %v2832 = vmul.f32 %v2625, 1.442695
        %v2833 = vpow.pop %v2832
        %v2834 = vmul.f32 %v2626, 1.442695
        %v2835 = vpow.pop %v2834
        %v2836 = vmul.f32 %v2627, 1.442695
        %v2837 = vpow.pop %v2836
        %v2838 = vmul.f32 %v2628, 1.442695
        %v2839 = vpow.pop %v2838
        %v2840 = vmul.f32 %v2629, 1.442695
        %v2841 = vpow.pop %v2840
        %v2842 = vmul.f32 %v2630, 1.442695
        %v2843 = vpow.pop %v2842
        %v2844 = vmul.f32 %v2631, 1.442695
        %v2845 = vpow.pop %v2844
        %v2846 = vmul.f32 %v2632, 1.442695
        %v2847 = vpow.pop %v2846
        %v2848 = vmul.f32 %v2633, 1.442695
        %v2849 = vpow.pop %v2848
        %v2850 = vmul.f32 %v2634, 1.442695
        %v2851 = vpow.pop %v2850
        %v2852 = vmul.f32 %v2635, 1.442695
        %v2853 = vpow.pop %v2852
        %v2854 = vmul.f32 %v2636, 1.442695
        %v2855 = vpow.pop %v2854
        %v2856 = vmul.f32 %v2637, 1.442695
        %v2857 = vpow.pop %v2856
        %v2858 = vmul.f32 %v2638, 1.442695
        %v2859 = vpow.pop %v2858
        %v2860 = vmul.f32 %v2639, 1.442695
        %v2861 = vpow.pop %v2860
        %v2862 = vmul.f32 %v2640, 1.442695
        %v2863 = vpow.pop %v2862
        %v2864 = vmul.f32 %v2641, 1.442695
        %v2865 = vpow.pop %v2864
        %v2866 = vmul.f32 %v2642, 1.442695
        %v2867 = vpow.pop %v2866
        %v2868 = vmul.f32 %v2643, 1.442695
        %v2869 = vpow.pop %v2868
        %v2870 = vmul.f32 %v2644, 1.442695
        %v2871 = vpow.pop %v2870
        %v2872 = vmul.f32 %v2645, 1.442695
        %v2873 = vpow.pop %v2872
        %v2874 = vmul.f32 %v2646, 1.442695
        %v2875 = vpow.pop %v2874
        %v2876 = vmul.f32 %v2647, 1.442695
        %v2877 = vpow.pop %v2876
        %v2878 = vmul.f32 %v2648, 1.442695
        %v2879 = vpow.pop %v2878
        %v2880 = vmul.f32 %v2649, 1.442695
        %v2881 = vpow.pop %v2880
        %v2882 = vmul.f32 %v2650, 1.442695
        %v2883 = vpow.pop %v2882
        %v2884 = vmul.f32 %v2651, 1.442695
        %v2885 = vpow.pop %v2884
        %v2886 = vmul.f32 %v2652, 1.442695
        %v2887 = vpow.pop %v2886
        %v2888 = vmul.f32 %v2653, 1.442695
        %v2889 = vpow.pop %v2888
        %v2890 = vmul.f32 %v2654, 1.442695
        %v2891 = vpow.pop %v2890
        %v2892 = vmul.f32 %v2655, 1.442695
        %v2893 = vpow.pop %v2892
        %v2894 = vmul.f32 %v2656, 1.442695
        %v2895 = vpow.pop %v2894
        %v2896 = vmul.f32 %v2657, 1.442695
        %v2897 = vpow.pop %v2896
        %v2898 = vmul.f32 %v2658, 1.442695
        %v2899 = vpow.pop %v2898
        %v2900 = vmul.f32 %v2659, 1.442695
        %v2901 = vpow.pop %v2900
        %v2902 = vmul.f32 %v2660, 1.442695
        %v2903 = vpow.pop %v2902
        %v2904 = vmul.f32 %v2661, 1.442695
        %v2905 = vpow.pop %v2904
        %v2906 = vmul.f32 %v2662, 1.442695
        %v2907 = vpow.pop %v2906
        %v2908 = vmul.f32 %v2663, 1.442695
        %v2909 = vpow.pop %v2908
        %v2910 = vmul.f32 %v2664, 1.442695
        %v2911 = vpow.pop %v2910
        %v2912 = vmul.f32 %v2665, 1.442695
        %v2913 = vpow.pop %v2912
        %v2914 = vmul.f32 %v2666, 1.442695
        %v2915 = vpow.pop %v2914
        %v2916 = vmul.f32 %v2667, 1.442695
        %v2917 = vpow.pop %v2916
        %v2918 = vmul.f32 %v2668, 1.442695
        %v2919 = vpow.pop %v2918
        %v2920 = vmul.f32 %v2669, 1.442695
        %v2921 = vpow.pop %v2920
        %v2922 = vmul.f32 %v2670, 1.442695
        %v2923 = vpow.pop %v2922
        %v2924 = vmul.f32 %v2671, 1.442695
        %v2925 = vpow.pop %v2924
        %v2926 = vmul.f32 %v2672, 1.442695
        %v2927 = vpow.pop %v2926
        %v2928 = vmul.f32 %v2673, 1.442695
        %v2929 = vpow.pop %v2928
        %v2930 = vmul.f32 %v2674, 1.442695
        %v2931 = vpow.pop %v2930
        %v2932 = vmul.f32 %v2675, 1.442695
        %v2933 = vpow.pop %v2932
        %v2934 = vmul.f32 %v2676, 1.442695
        %v2935 = vpow.pop %v2934
        %v2936 = vmul.f32 %v2677, 1.442695
        %v2937 = vpow.pop %v2936
        %v2938 = vmul.f32 %v2678, 1.442695
        %v2939 = vpow.pop %v2938
        %v2940 = vmul.f32 %v2679, 1.442695
        %v2941 = vpow.pop %v2940
        %v2942 = vmul.f32 %v2680, 1.442695
        %v2943 = vpow.pop %v2942
        %v2944 = vmul.f32 %v2681, 1.442695
        %v2945 = vpow.pop %v2944
        %v2946 = vmul.f32 %v2682, 1.442695
        %v2947 = vpow.pop %v2946
        %v2948 = vmul.f32 %v2683, 1.442695
        %v2949 = vpow.pop %v2948
        %v2950 = vmul.f32 %v2684, 1.442695
        %v2951 = vpow.pop %v2950
        %v2952 = vmul.f32 %v2685, 1.442695
        %v2953 = vpow.pop %v2952
        %v2954 = vmul.f32 %v2686, 1.442695
        %v2955 = vpow.pop %v2954
        %v2956 = vmul.f32 %v2687, 1.442695
        %v2957 = vpow.pop %v2956
        %v2958 = vmul.f32 %v2688, 1.442695
        %v2959 = vpow.pop %v2958
        %v2960 = vmul.f32 %v2689, 1.442695
        %v2961 = vpow.pop %v2960
        %v2962 = vmul.f32 %v2690, 1.442695
        %v2963 = vpow.pop %v2962
        %v2964 = vmul.f32 %v2691, 1.442695
        %v2965 = vpow.pop %v2964
        %v2966 = vmul.f32 %v2692, 1.442695
        %v2967 = vpow.pop %v2966
        %v2968 = vmul.f32 %v2693, 1.442695
        %v2969 = vpow.pop %v2968
        %v2970 = vmul.f32 %v2694, 1.442695
        %v2971 = vpow.pop %v2970
        %v2972 = vmul.f32 %v2695, 1.442695
        %v2973 = vpow.pop %v2972
        %v2974 = vmul.f32 %v2696, 1.442695
        %v2975 = vpow.pop %v2974
        %v2976 = vmul.f32 %v2697, 1.442695
        %v2977 = vpow.pop %v2976
        %v2978 = vmul.f32 %v2698, 1.442695
        %v2979 = vpow.pop %v2978
        %v2980 = vmul.f32 %v2699, 1.442695
        %v2981 = vpow.pop %v2980
        %v2982 = vmul.f32 %v2700, 1.442695
        %v2983 = vpow.pop %v2982
        %v2984 = vmul.f32 %v2701, 1.442695
        %v2985 = vpow.pop %v2984
        %v2986 = vmul.f32 %v2702, 1.442695
        %v2987 = vpow.pop %v2986
        %v2988 = vmul.f32 %v2703, 1.442695
        %v2989 = vpow.pop %v2988
        %v2990 = vmul.f32 %v2704, 1.442695
        %v2991 = vpow.pop %v2990
        %v2992 = vmul.f32 %v2705, 1.442695
        %v2993 = vpow.pop %v2992
        %v2994 = vmul.f32 %v2706, 1.442695
        %v2995 = vpow.pop %v2994
        %v2996 = vmul.f32 %v2707, 1.442695
        %v2997 = vpow.pop %v2996
        %v2998 = vmul.f32 %v2708, 1.442695
        %v2999 = vpow.pop %v2998
        %v3000 = vmul.f32 %v2709, 1.442695
        %v3001 = vpow.pop %v3000
        %v3002 = vmul.f32 %v2710, 1.442695
        %v3003 = vpow.pop %v3002
        %v3004 = vmul.f32 %v2711, 1.442695
        %v3005 = vpow.pop %v3004
        %v3006 = vmul.f32 %v2712, 1.442695
        %v3007 = vpow.pop %v3006
        %v3008 = vmul.f32 %v2713, 1.442695
        %v3009 = vpow.pop %v3008
        %v3010 = vmul.f32 %v2714, 1.442695
        %v3011 = vpow.pop %v3010
        %v3012 = vmul.f32 %v2715, 1.442695
        %v3013 = vpow.pop %v3012
        %v3014 = vmul.f32 %v2716, 1.442695
        %v3015 = vpow.pop %v3014
        %v3016 = vmul.f32 %v2717, 1.442695
        %v3017 = vpow.pop %v3016
        %v3018 = vmul.f32 %v2718, 1.442695
        %v3019 = vpow.pop %v3018
        %v3020 = vmul.f32 %v2719, 1.442695
        %v3021 = vpow.pop %v3020
        %v3022 = vmul.f32 %v2720, 1.442695
        %v3023 = vpow.pop %v3022
        %v3024 = vmul.f32 %v2721, 1.442695
        %v3025 = vpow.pop %v3024
        %v3026 = vmul.f32 %v2722, 1.442695
        %v3027 = vpow.pop %v3026
        %v3028 = vmul.f32 %v2723, 1.442695
        %v3029 = vpow.pop %v3028
        %v3030 = vmul.f32 %v2724, 1.442695
        %v3031 = vpow.pop %v3030
        %v3032 = vmul.f32 %v2725, 1.442695
        %v3033 = vpow.pop %v3032
        %v3034 = vmul.f32 %v2726, 1.442695
        %v3035 = vpow.pop %v3034
        %v3036 = vmul.f32 %v2727, 1.442695
        %v3037 = vpow.pop %v3036
        %v3038 = vmul.f32 %v2728, 1.442695
        %v3039 = vpow.pop %v3038
        %v3040 = vmul.f32 %v2729, 1.442695
        %v3041 = vpow.pop %v3040
        %v3042 = vmul.f32 %v2730, 1.442695
        %v3043 = vpow.pop %v3042
        %v3044 = vmul.f32 %v2731, 1.442695
        %v3045 = vpow.pop %v3044
        %v3046 = vmul.f32 %v2732, 1.442695
        %v3047 = vpow.pop %v3046
        %v3048 = vmul.f32 %v2733, 1.442695
        %v3049 = vpow.pop %v3048
        %v3050 = vmul.f32 %v2734, 1.442695
        %v3051 = vpow.pop %v3050
        %v3052 = vmul.f32 %v2735, 1.442695
        %v3053 = vpow.pop %v3052
        %v3054 = vmul.f32 %v2736, 1.442695
        %v3055 = vpow.pop %v3054
        %v3056 = vmul.f32 %v2737, 1.442695
        %v3057 = vpow.pop %v3056
        %v3058 = vmul.f32 %v2738, 1.442695
        %v3059 = vpow.pop %v3058
        %v3060 = vmul.f32 %v2739, 1.442695
        %v3061 = vpow.pop %v3060
        %v3062 = vmul.f32 %v2740, 1.442695
        %v3063 = vpow.pop %v3062
        %v3064 = vmul.f32 %v2741, 1.442695
        %v3065 = vpow.pop %v3064
        %v3066 = vmul.f32 %v2742, 1.442695
        %v3067 = vpow.pop %v3066
        %v3068 = vmul.f32 %v2743, 1.442695
        %v3069 = vpow.pop %v3068
        %v3070 = vmul.f32 %v2744, 1.442695
        %v3071 = vpow.pop %v3070
        %v3072 = vmul.f32 %v2745, 1.442695
        %v3073 = vpow.pop %v3072
        %v3074 = vmul.f32 %v2746, 1.442695
        %v3075 = vpow.pop %v3074
        %v3076 = vmul.f32 %v2747, 1.442695
        %v3077 = vpow.pop %v3076
        %v3078 = vmul.f32 %v2748, 1.442695
        %v3079 = vpow.pop %v3078
        %v3080 = vmul.f32 %v2749, 1.442695
        %v3081 = vpow.pop %v3080
        %v3082 = vmul.f32 %v2750, 1.442695
        %v3083 = vpow.pop %v3082
        %v3084 = vmul.f32 %v2751, 1.442695
        %v3085 = vpow.pop %v3084
        %v3086 = vmul.f32 %v2752, 1.442695
        %v3087 = vpow.pop %v3086
        %v3088 = vmul.f32 %v2753, 1.442695
        %v3089 = vpow.pop %v3088
        %v3090 = vmul.f32 %v2754, 1.442695
        %v3091 = vpow.pop %v3090
        %v3092 = vmul.f32 %v2755, 1.442695
        %v3093 = vpow.pop %v3092
        %v3094 = vmul.f32 %v2756, 1.442695
        %v3095 = vpow.pop %v3094
        %v3096 = vmul.f32 %v2757, 1.442695
        %v3097 = vpow.pop %v3096
        %v3098 = vmul.f32 %v2758, 1.442695
        %v3099 = vpow.pop %v3098
        %v3100 = vmul.f32 %v2759, 1.442695
        %v3101 = vpow.pop %v3100
        %v3102 = vmul.f32 %v2760, 1.442695
        %v3103 = vpow.pop %v3102
        %v3104 = vmul.f32 %v2761, 1.442695
        %v3105 = vpow.pop %v3104
        %v3106 = vmul.f32 %v2762, 1.442695
        %v3107 = vpow.pop %v3106
        %v3108 = vmul.f32 %v2763, 1.442695
        %v3109 = vpow.pop %v3108
        %v3110 = vmul.f32 %v2764, 1.442695
        %v3111 = vpow.pop %v3110
        %v3112 = vmul.f32 %v2765, 1.442695
        %v3113 = vpow.pop %v3112
        %v3114 = vmul.f32 %v2766, 1.442695
        %v3115 = vpow.pop %v3114
        %v3116 = vmul.f32 %v2767, 1.442695
        %v3117 = vpow.pop %v3116
        %v3118 = vmul.f32 %v2768, 1.442695
        %v3119 = vpow.pop %v3118
        %v3120 = vmul.f32 %v2769, 1.442695
        %v3121 = vpow.pop %v3120
        %v3122 = vmul.f32 %v2770, 1.442695
        %v3123 = vpow.pop %v3122
        %v3124 = vmul.f32 %v2771, 1.442695
        %v3125 = vpow.pop %v3124
        %v3126 = vmul.f32 %v2772, 1.442695
        %v3127 = vpow.pop %v3126
        %v3128 = vmul.f32 %v2773, 1.442695
        %v3129 = vpow.pop %v3128
        %v3130 = vmul.f32 %v2774, 1.442695
        %v3131 = vpow.pop %v3130
        %v3132 = vmul.f32 %v2775, 1.442695
        %v3133 = vpow.pop %v3132
        %v3134 = vmul.f32 %v2776, 1.442695
        %v3135 = vpow.pop %v3134
        %v3136 = vmul.f32 %v2777, 1.442695
        %v3137 = vpow.pop %v3136
        %v3138 = vmul.f32 %v2778, 1.442695
        %v3139 = vpow.pop %v3138
        %v3140 = vmul.f32 %v2779, 1.442695
        %v3141 = vpow.pop %v3140
        %v3142 = vmul.f32 %v2780, 1.442695
        %v3143 = vpow.pop %v3142
        %v3144 = vmul.f32 %v2781, 1.442695
        %v3145 = vpow.pop %v3144
        %v3146 = vmul.f32 %v2782, 1.442695
        %v3147 = vpow.pop %v3146
        %v3148 = vmul.f32 %v2783, 1.442695
        %v3149 = vpow.pop %v3148
        %v3150 = vmul.f32 %v2784, 1.442695
        %v3151 = vpow.pop %v3150
        %v3152 = vmul.f32 %v2785, 1.442695
        %v3153 = vpow.pop %v3152
        %v3154 = vmul.f32 %v2786, 1.442695
        %v3155 = vpow.pop %v3154
        %v3156 = vmul.f32 %v2787, 1.442695
        %v3157 = vpow.pop %v3156
        %v3158 = vmul.f32 %v2788, 1.442695
        %v3159 = vpow.pop %v3158
        %v3160 = vmul.f32 %v2789, 1.442695
        %v3161 = vpow.pop %v3160
        %v3162 = vmul.f32 %v2790, 1.442695
        %v3163 = vpow.pop %v3162
        %v3164 = vmul.f32 %v2791, 1.442695
        %v3165 = vpow.pop %v3164
        %v3166 = vmul.f32 %v2792, 1.442695
        %v3167 = vpow.pop %v3166
        %v3168 = vmul.f32 %v2793, 1.442695
        %v3169 = vpow.pop %v3168
        %v3170 = vmul.f32 %v2794, 1.442695
        %v3171 = vpow.pop %v3170
        %v3172 = vmul.f32 %v2795, 1.442695
        %v3173 = vpow.pop %v3172
        %v3174 = vmul.f32 %v2796, 1.442695
        %v3175 = vpow.pop %v3174
        %v3176 = vmul.f32 %v2797, 1.442695
        %v3177 = vpow.pop %v3176
        %v3178 = vmul.f32 %v2798, 1.442695
        %v3179 = vpow.pop %v3178
        %v3180 = vmul.f32 %v2799, 1.442695
        %v3181 = vpow.pop %v3180
        %v3182 = vmul.f32 %v2800, 1.442695
        %v3183 = vpow.pop %v3182
        %v3184 = vmul.f32 %v2801, 1.442695
        %v3185 = vpow.pop %v3184
        %v3186 = vadd.f32 %v2803, %v2805
        %v3187 = vadd.f32 %v3186, %v2807
        %v3188 = vadd.f32 %v3187, %v2809
        %v3189 = vadd.f32 %v3188, %v2811
        %v3190 = vadd.f32 %v3189, %v2813
        %v3191 = vadd.f32 %v3190, %v2815
        %v3192 = vadd.f32 %v3191, %v2817
        %v3193 = vadd.f32 %v3192, %v2819
        %v3194 = vadd.f32 %v3193, %v2821
        %v3195 = vadd.f32 %v3194, %v2823
        %v3196 = vadd.f32 %v3195, %v2825
        %v3197 = vadd.f32 %v3196, %v2827
        %v3198 = vadd.f32 %v3197, %v2829
        %v3199 = vadd.f32 %v3198, %v2831
        %v3200 = vadd.f32 %v3199, %v2833
        %v3201 = vadd.f32 %v3200, %v2835
        %v3202 = vadd.f32 %v3201, %v2837
        %v3203 = vadd.f32 %v3202, %v2839
        %v3204 = vadd.f32 %v3203, %v2841
        %v3205 = vadd.f32 %v3204, %v2843
        %v3206 = vadd.f32 %v3205, %v2845
        %v3207 = vadd.f32 %v3206, %v2847
        %v3208 = vadd.f32 %v3207, %v2849
        %v3209 = vadd.f32 %v3208, %v2851
        %v3210 = vadd.f32 %v3209, %v2853
        %v3211 = vadd.f32 %v3210, %v2855
        %v3212 = vadd.f32 %v3211, %v2857
        %v3213 = vadd.f32 %v3212, %v2859
        %v3214 = vadd.f32 %v3213, %v2861
        %v3215 = vadd.f32 %v3214, %v2863
        %v3216 = vadd.f32 %v3215, %v2865
        %v3217 = vadd.f32 %v3216, %v2867
        %v3218 = vadd.f32 %v3217, %v2869
        %v3219 = vadd.f32 %v3218, %v2871
        %v3220 = vadd.f32 %v3219, %v2873
        %v3221 = vadd.f32 %v3220, %v2875
        %v3222 = vadd.f32 %v3221, %v2877
        %v3223 = vadd.f32 %v3222, %v2879
        %v3224 = vadd.f32 %v3223, %v2881
        %v3225 = vadd.f32 %v3224, %v2883
        %v3226 = vadd.f32 %v3225, %v2885
        %v3227 = vadd.f32 %v3226, %v2887
        %v3228 = vadd.f32 %v3227, %v2889
        %v3229 = vadd.f32 %v3228, %v2891
        %v3230 = vadd.f32 %v3229, %v2893
        %v3231 = vadd.f32 %v3230, %v2895
        %v3232 = vadd.f32 %v3231, %v2897
        %v3233 = vadd.f32 %v3232, %v2899
        %v3234 = vadd.f32 %v3233, %v2901
        %v3235 = vadd.f32 %v3234, %v2903
        %v3236 = vadd.f32 %v3235, %v2905
        %v3237 = vadd.f32 %v3236, %v2907
        %v3238 = vadd.f32 %v3237, %v2909
        %v3239 = vadd.f32 %v3238, %v2911
        %v3240 = vadd.f32 %v3239, %v2913
        %v3241 = vadd.f32 %v3240, %v2915
        %v3242 = vadd.f32 %v3241, %v2917
        %v3243 = vadd.f32 %v3242, %v2919
        %v3244 = vadd.f32 %v3243, %v2921
        %v3245 = vadd.f32 %v3244, %v2923
        %v3246 = vadd.f32 %v3245, %v2925
        %v3247 = vadd.f32 %v3246, %v2927
        %v3248 = vadd.f32 %v3247, %v2929
        %v3249 = vadd.f32 %v3248, %v2931
        %v3250 = vadd.f32 %v3249, %v2933
        %v3251 = vadd.f32 %v3250, %v2935
        %v3252 = vadd.f32 %v3251, %v2937
        %v3253 = vadd.f32 %v3252, %v2939
        %v3254 = vadd.f32 %v3253, %v2941
        %v3255 = vadd.f32 %v3254, %v2943
        %v3256 = vadd.f32 %v3255, %v2945
        %v3257 = vadd.f32 %v3256, %v2947
        %v3258 = vadd.f32 %v3257, %v2949
        %v3259 = vadd.f32 %v3258, %v2951
        %v3260 = vadd.f32 %v3259, %v2953
        %v3261 = vadd.f32 %v3260, %v2955
        %v3262 = vadd.f32 %v3261, %v2957
        %v3263 = vadd.f32 %v3262, %v2959
        %v3264 = vadd.f32 %v3263, %v2961
        %v3265 = vadd.f32 %v3264, %v2963
        %v3266 = vadd.f32 %v3265, %v2965
        %v3267 = vadd.f32 %v3266, %v2967
        %v3268 = vadd.f32 %v3267, %v2969
        %v3269 = vadd.f32 %v3268, %v2971
        %v3270 = vadd.f32 %v3269, %v2973
        %v3271 = vadd.f32 %v3270, %v2975
        %v3272 = vadd.f32 %v3271, %v2977
        %v3273 = vadd.f32 %v3272, %v2979
        %v3274 = vadd.f32 %v3273, %v2981
        %v3275 = vadd.f32 %v3274, %v2983
        %v3276 = vadd.f32 %v3275, %v2985
        %v3277 = vadd.f32 %v3276, %v2987
        %v3278 = vadd.f32 %v3277, %v2989
        %v3279 = vadd.f32 %v3278, %v2991
        %v3280 = vadd.f32 %v3279, %v2993
        %v3281 = vadd.f32 %v3280, %v2995
        %v3282 = vadd.f32 %v3281, %v2997
        %v3283 = vadd.f32 %v3282, %v2999
        %v3284 = vadd.f32 %v3283, %v3001
        %v3285 = vadd.f32 %v3284, %v3003
        %v3286 = vadd.f32 %v3285, %v3005
        %v3287 = vadd.f32 %v3286, %v3007
        %v3288 = vadd.f32 %v3287, %v3009
        %v3289 = vadd.f32 %v3288, %v3011
        %v3290 = vadd.f32 %v3289, %v3013
        %v3291 = vadd.f32 %v3290, %v3015
        %v3292 = vadd.f32 %v3291, %v3017
        %v3293 = vadd.f32 %v3292, %v3019
        %v3294 = vadd.f32 %v3293, %v3021
        %v3295 = vadd.f32 %v3294, %v3023
        %v3296 = vadd.f32 %v3295, %v3025
        %v3297 = vadd.f32 %v3296, %v3027
        %v3298 = vadd.f32 %v3297, %v3029
        %v3299 = vadd.f32 %v3298, %v3031
        %v3300 = vadd.f32 %v3299, %v3033
        %v3301 = vadd.f32 %v3300, %v3035
        %v3302 = vadd.f32 %v3301, %v3037
        %v3303 = vadd.f32 %v3302, %v3039
        %v3304 = vadd.f32 %v3303, %v3041
        %v3305 = vadd.f32 %v3304, %v3043
        %v3306 = vadd.f32 %v3305, %v3045
        %v3307 = vadd.f32 %v3306, %v3047
        %v3308 = vadd.f32 %v3307, %v3049
        %v3309 = vadd.f32 %v3308, %v3051
        %v3310 = vadd.f32 %v3309, %v3053
        %v3311 = vadd.f32 %v3310, %v3055
        %v3312 = vadd.f32 %v3311, %v3057
        %v3313 = vadd.f32 %v3312, %v3059
        %v3314 = vadd.f32 %v3313, %v3061
        %v3315 = vadd.f32 %v3314, %v3063
        %v3316 = vadd.f32 %v3315, %v3065
        %v3317 = vadd.f32 %v3316, %v3067
        %v3318 = vadd.f32 %v3317, %v3069
        %v3319 = vadd.f32 %v3318, %v3071
        %v3320 = vadd.f32 %v3319, %v3073
        %v3321 = vadd.f32 %v3320, %v3075
        %v3322 = vadd.f32 %v3321, %v3077
        %v3323 = vadd.f32 %v3322, %v3079
        %v3324 = vadd.f32 %v3323, %v3081
        %v3325 = vadd.f32 %v3324, %v3083
        %v3326 = vadd.f32 %v3325, %v3085
        %v3327 = vadd.f32 %v3326, %v3087
        %v3328 = vadd.f32 %v3327, %v3089
        %v3329 = vadd.f32 %v3328, %v3091
        %v3330 = vadd.f32 %v3329, %v3093
        %v3331 = vadd.f32 %v3330, %v3095
        %v3332 = vadd.f32 %v3331, %v3097
        %v3333 = vadd.f32 %v3332, %v3099
        %v3334 = vadd.f32 %v3333, %v3101
        %v3335 = vadd.f32 %v3334, %v3103
        %v3336 = vadd.f32 %v3335, %v3105
        %v3337 = vadd.f32 %v3336, %v3107
        %v3338 = vadd.f32 %v3337, %v3109
        %v3339 = vadd.f32 %v3338, %v3111
        %v3340 = vadd.f32 %v3339, %v3113
        %v3341 = vadd.f32 %v3340, %v3115
        %v3342 = vadd.f32 %v3341, %v3117
        %v3343 = vadd.f32 %v3342, %v3119
        %v3344 = vadd.f32 %v3343, %v3121
        %v3345 = vadd.f32 %v3344, %v3123
        %v3346 = vadd.f32 %v3345, %v3125
        %v3347 = vadd.f32 %v3346, %v3127
        %v3348 = vadd.f32 %v3347, %v3129
        %v3349 = vadd.f32 %v3348, %v3131
        %v3350 = vadd.f32 %v3349, %v3133
        %v3351 = vadd.f32 %v3350, %v3135
        %v3352 = vadd.f32 %v3351, %v3137
        %v3353 = vadd.f32 %v3352, %v3139
        %v3354 = vadd.f32 %v3353, %v3141
        %v3355 = vadd.f32 %v3354, %v3143
        %v3356 = vadd.f32 %v3355, %v3145
        %v3357 = vadd.f32 %v3356, %v3147
        %v3358 = vadd.f32 %v3357, %v3149
        %v3359 = vadd.f32 %v3358, %v3151
        %v3360 = vadd.f32 %v3359, %v3153
        %v3361 = vadd.f32 %v3360, %v3155
        %v3362 = vadd.f32 %v3361, %v3157
        %v3363 = vadd.f32 %v3362, %v3159
        %v3364 = vadd.f32 %v3363, %v3161
        %v3365 = vadd.f32 %v3364, %v3163
        %v3366 = vadd.f32 %v3365, %v3165
        %v3367 = vadd.f32 %v3366, %v3167
        %v3368 = vadd.f32 %v3367, %v3169
        %v3369 = vadd.f32 %v3368, %v3171
        %v3370 = vadd.f32 %v3369, %v3173
        %v3371 = vadd.f32 %v3370, %v3175
        %v3372 = vadd.f32 %v3371, %v3177
        %v3373 = vadd.f32 %v3372, %v3179
        %v3374 = vadd.f32 %v3373, %v3181
        %v3375 = vadd.f32 %v3374, %v3183
        %v3376 = vadd.f32 %v3375, %v3185
        %v3377 = vrot.slane %v3376, 4
        %v3378 = vadd.f32 %v3376, %v3377
        %v3379 = vrot.slane %v3378, 2
        %v3380 = vadd.f32 %v3378, %v3379
        %v3381 = vrot.slane %v3380, 1
        %v3382 = vadd.f32 %v3380, %v3381
        %v3383 = vrcp.pop %v3382
        %v3384 = vmul.f32 %v3382, %v3383
        %v3385 = vsub.f32 2.0, %v3384
        %v3386 = vmul.f32 %v3383, %v3385
        %3387 = vmatprep.subr.mxu0 0.0
        %3388 = vmatpush1.msra.mxu0 %v2833
        %3389 = vmatprep.subr.mxu0 0.0
        %3390 = vmatpush1.msra.mxu0 %v2831
        %3391 = vmatprep.subr.mxu0 0.0
        %3392 = vmatpush1.msra.mxu0 %v2829
        %3393 = vmatprep.subr.mxu0 0.0
        %3394 = vmatpush1.msra.mxu0 %v2827
        %3395 = vmatprep.subr.mxu0 0.0
        %3396 = vmatpush1.msra.mxu0 %v2825
        %3397 = vmatprep.subr.mxu0 0.0
        %3398 = vmatpush1.msra.mxu0 %v2823
        %3399 = vmatprep.subr.mxu0 0.0
        %3400 = vmatpush1.msra.mxu0 %v2821
        %3401 = vmatprep.subr.mxu0 0.0
        %3402 = vmatpush1.msra.mxu0 %v2819
        %3403 = vmatprep.subr.mxu0 0.0
        %3404 = vmatpush1.msra.mxu0 %v2817
        %3405 = vmatprep.subr.mxu0 0.0
        %3406 = vmatpush1.msra.mxu0 %v2815
        %3407 = vmatprep.subr.mxu0 0.0
        %3408 = vmatpush1.msra.mxu0 %v2813
        %3409 = vmatprep.subr.mxu0 0.0
        %3410 = vmatpush1.msra.mxu0 %v2811
        %3411 = vmatprep.subr.mxu0 0.0
        %3412 = vmatpush1.msra.mxu0 %v2809
        %3413 = vmatprep.subr.mxu0 0.0
        %3414 = vmatpush1.msra.mxu0 %v2807
        %3415 = vmatprep.subr.mxu0 0.0
        %3416 = vmatpush1.msra.mxu0 %v2805
        %3417 = vmatprep.subr.mxu0 0.0
        %3418 = vmatpush1.msra.mxu0 %v2803
        %3419 = vmatprep.subr.mxu0 0.0
        %3420 = vmatpush2.msra.mxu0 %v2865
        %3421 = vmatprep.subr.mxu0 0.0
        %3422 = vmatpush2.msra.mxu0 %v2863
        %3423 = vmatprep.subr.mxu0 0.0
        %3424 = vmatpush2.msra.mxu0 %v2861
        %3425 = vmatprep.subr.mxu0 0.0
        %3426 = vmatpush2.msra.mxu0 %v2859
        %3427 = vmatprep.subr.mxu0 0.0
        %3428 = vmatpush2.msra.mxu0 %v2857
        %3429 = vmatprep.subr.mxu0 0.0
        %3430 = vmatpush2.msra.mxu0 %v2855
        %3431 = vmatprep.subr.mxu0 0.0
        %3432 = vmatpush2.msra.mxu0 %v2853
        %3433 = vmatprep.subr.mxu0 0.0
        %3434 = vmatpush2.msra.mxu0 %v2851
        %3435 = vmatprep.subr.mxu0 0.0
        %3436 = vmatpush2.msra.mxu0 %v2849
        %3437 = vmatprep.subr.mxu0 0.0
        %3438 = vmatpush2.msra.mxu0 %v2847
        %3439 = vmatprep.subr.mxu0 0.0
        %3440 = vmatpush2.msra.mxu0 %v2845
        %3441 = vmatprep.subr.mxu0 0.0
        %3442 = vmatpush2.msra.mxu0 %v2843
        %3443 = vmatprep.subr.mxu0 0.0
        %3444 = vmatpush2.msra.mxu0 %v2841
        %3445 = vmatprep.subr.mxu0 0.0
        %3446 = vmatpush2.msra.mxu0 %v2839
        %3447 = vmatprep.subr.mxu0 0.0
        %3448 = vmatpush2.msra.mxu0 %v2837
        %3449 = vmatprep.subr.mxu0 0.0
        %3450 = vmatpush2.msra.mxu0 %v2835
        %3451 = vmatprep.mubr.f32.mxu0 %v380
        %3452 = vmatmul.mubr.f32.gmra.mxu0 %v379
        %v3453 = vpop.f32.mrf.mxu0
        %v3454 = vadd.f32 0.0, %v3453
        %v3455 = vpop.f32.mrf.mxu0
        %3456 = vmatprep.mubr.f32.mxu0 %v392
        %3457 = vmatmul.mubr.f32.gmra.mxu0 %v391
        %v3458 = vpop.f32.mrf.mxu0
        %v3459 = vadd.f32 0.0, %v3458
        %v3460 = vpop.f32.mrf.mxu0
        %3461 = vmatprep.mubr.f32.mxu0 %v404
        %3462 = vmatmul.mubr.f32.gmra.mxu0 %v403
        %v3463 = vpop.f32.mrf.mxu0
        %v3464 = vadd.f32 0.0, %v3463
        %v3465 = vpop.f32.mrf.mxu0
        %3466 = vmatprep.mubr.f32.mxu0 %v416
        %3467 = vmatmul.mubr.f32.gmra.mxu0 %v415
        %v3468 = vpop.f32.mrf.mxu0
        %v3469 = vadd.f32 0.0, %v3468
        %v3470 = vpop.f32.mrf.mxu0
        %3471 = vdwg.mxu0
        %3472 = vmatprep.subr.mxu0 0.0
        %3473 = vmatpush1.msra.mxu0 %v2897
        %3474 = vmatprep.subr.mxu0 0.0
        %3475 = vmatpush1.msra.mxu0 %v2895
        %3476 = vmatprep.subr.mxu0 0.0
        %3477 = vmatpush1.msra.mxu0 %v2893
        %3478 = vmatprep.subr.mxu0 0.0
        %3479 = vmatpush1.msra.mxu0 %v2891
        %3480 = vmatprep.subr.mxu0 0.0
        %3481 = vmatpush1.msra.mxu0 %v2889
        %3482 = vmatprep.subr.mxu0 0.0
        %3483 = vmatpush1.msra.mxu0 %v2887
        %3484 = vmatprep.subr.mxu0 0.0
        %3485 = vmatpush1.msra.mxu0 %v2885
        %3486 = vmatprep.subr.mxu0 0.0
        %3487 = vmatpush1.msra.mxu0 %v2883
        %3488 = vmatprep.subr.mxu0 0.0
        %3489 = vmatpush1.msra.mxu0 %v2881
        %3490 = vmatprep.subr.mxu0 0.0
        %3491 = vmatpush1.msra.mxu0 %v2879
        %3492 = vmatprep.subr.mxu0 0.0
        %3493 = vmatpush1.msra.mxu0 %v2877
        %3494 = vmatprep.subr.mxu0 0.0
        %3495 = vmatpush1.msra.mxu0 %v2875
        %3496 = vmatprep.subr.mxu0 0.0
        %3497 = vmatpush1.msra.mxu0 %v2873
        %3498 = vmatprep.subr.mxu0 0.0
        %3499 = vmatpush1.msra.mxu0 %v2871
        %3500 = vmatprep.subr.mxu0 0.0
        %3501 = vmatpush1.msra.mxu0 %v2869
        %3502 = vmatprep.subr.mxu0 0.0
        %3503 = vmatpush1.msra.mxu0 %v2867
        %3504 = vmatprep.subr.mxu0 0.0
        %3505 = vmatpush2.msra.mxu0 %v2929
        %3506 = vmatprep.subr.mxu0 0.0
        %3507 = vmatpush2.msra.mxu0 %v2927
        %3508 = vmatprep.subr.mxu0 0.0
        %3509 = vmatpush2.msra.mxu0 %v2925
        %3510 = vmatprep.subr.mxu0 0.0
        %3511 = vmatpush2.msra.mxu0 %v2923
        %3512 = vmatprep.subr.mxu0 0.0
        %3513 = vmatpush2.msra.mxu0 %v2921
        %3514 = vmatprep.subr.mxu0 0.0
        %3515 = vmatpush2.msra.mxu0 %v2919
        %3516 = vmatprep.subr.mxu0 0.0
        %3517 = vmatpush2.msra.mxu0 %v2917
        %3518 = vmatprep.subr.mxu0 0.0
        %3519 = vmatpush2.msra.mxu0 %v2915
        %3520 = vmatprep.subr.mxu0 0.0
        %3521 = vmatpush2.msra.mxu0 %v2913
        %3522 = vmatprep.subr.mxu0 0.0
        %3523 = vmatpush2.msra.mxu0 %v2911
        %3524 = vmatprep.subr.mxu0 0.0
        %3525 = vmatpush2.msra.mxu0 %v2909
        %3526 = vmatprep.subr.mxu0 0.0
        %3527 = vmatpush2.msra.mxu0 %v2907
        %3528 = vmatprep.subr.mxu0 0.0
        %3529 = vmatpush2.msra.mxu0 %v2905
        %3530 = vmatprep.subr.mxu0 0.0
        %3531 = vmatpush2.msra.mxu0 %v2903
        %3532 = vmatprep.subr.mxu0 0.0
        %3533 = vmatpush2.msra.mxu0 %v2901
        %3534 = vmatprep.subr.mxu0 0.0
        %3535 = vmatpush2.msra.mxu0 %v2899
        %3536 = vmatprep.mubr.f32.mxu0 %v382
        %3537 = vmatmul.mubr.f32.gmra.mxu0 %v381
        %v3538 = vpop.f32.mrf.mxu0
        %v3539 = vadd.f32 %v3454, %v3538
        %v3540 = vpop.f32.mrf.mxu0
        %3541 = vmatprep.mubr.f32.mxu0 %v394
        %3542 = vmatmul.mubr.f32.gmra.mxu0 %v393
        %v3543 = vpop.f32.mrf.mxu0
        %v3544 = vadd.f32 %v3459, %v3543
        %v3545 = vpop.f32.mrf.mxu0
        %3546 = vmatprep.mubr.f32.mxu0 %v406
        %3547 = vmatmul.mubr.f32.gmra.mxu0 %v405
        %v3548 = vpop.f32.mrf.mxu0
        %v3549 = vadd.f32 %v3464, %v3548
        %v3550 = vpop.f32.mrf.mxu0
        %3551 = vmatprep.mubr.f32.mxu0 %v418
        %3552 = vmatmul.mubr.f32.gmra.mxu0 %v417
        %v3553 = vpop.f32.mrf.mxu0
        %v3554 = vadd.f32 %v3469, %v3553
        %v3555 = vpop.f32.mrf.mxu0
        %3556 = vdwg.mxu0
        %3557 = vmatprep.subr.mxu0 0.0
        %3558 = vmatpush1.msra.mxu0 %v2961
        %3559 = vmatprep.subr.mxu0 0.0
        %3560 = vmatpush1.msra.mxu0 %v2959
        %3561 = vmatprep.subr.mxu0 0.0
        %3562 = vmatpush1.msra.mxu0 %v2957
        %3563 = vmatprep.subr.mxu0 0.0
        %3564 = vmatpush1.msra.mxu0 %v2955
        %3565 = vmatprep.subr.mxu0 0.0
        %3566 = vmatpush1.msra.mxu0 %v2953
        %3567 = vmatprep.subr.mxu0 0.0
        %3568 = vmatpush1.msra.mxu0 %v2951
        %3569 = vmatprep.subr.mxu0 0.0
        %3570 = vmatpush1.msra.mxu0 %v2949
        %3571 = vmatprep.subr.mxu0 0.0
        %3572 = vmatpush1.msra.mxu0 %v2947
        %3573 = vmatprep.subr.mxu0 0.0
        %3574 = vmatpush1.msra.mxu0 %v2945
        %3575 = vmatprep.subr.mxu0 0.0
        %3576 = vmatpush1.msra.mxu0 %v2943
        %3577 = vmatprep.subr.mxu0 0.0
        %3578 = vmatpush1.msra.mxu0 %v2941
        %3579 = vmatprep.subr.mxu0 0.0
        %3580 = vmatpush1.msra.mxu0 %v2939
        %3581 = vmatprep.subr.mxu0 0.0
        %3582 = vmatpush1.msra.mxu0 %v2937
        %3583 = vmatprep.subr.mxu0 0.0
        %3584 = vmatpush1.msra.mxu0 %v2935
        %3585 = vmatprep.subr.mxu0 0.0
        %3586 = vmatpush1.msra.mxu0 %v2933
        %3587 = vmatprep.subr.mxu0 0.0
        %3588 = vmatpush1.msra.mxu0 %v2931
        %3589 = vmatprep.subr.mxu0 0.0
        %3590 = vmatpush2.msra.mxu0 %v2993
        %3591 = vmatprep.subr.mxu0 0.0
        %3592 = vmatpush2.msra.mxu0 %v2991
        %3593 = vmatprep.subr.mxu0 0.0
        %3594 = vmatpush2.msra.mxu0 %v2989
        %3595 = vmatprep.subr.mxu0 0.0
        %3596 = vmatpush2.msra.mxu0 %v2987
        %3597 = vmatprep.subr.mxu0 0.0
        %3598 = vmatpush2.msra.mxu0 %v2985
        %3599 = vmatprep.subr.mxu0 0.0
        %3600 = vmatpush2.msra.mxu0 %v2983
        %3601 = vmatprep.subr.mxu0 0.0
        %3602 = vmatpush2.msra.mxu0 %v2981
        %3603 = vmatprep.subr.mxu0 0.0
        %3604 = vmatpush2.msra.mxu0 %v2979
        %3605 = vmatprep.subr.mxu0 0.0
        %3606 = vmatpush2.msra.mxu0 %v2977
        %3607 = vmatprep.subr.mxu0 0.0
        %3608 = vmatpush2.msra.mxu0 %v2975
        %3609 = vmatprep.subr.mxu0 0.0
        %3610 = vmatpush2.msra.mxu0 %v2973
        %3611 = vmatprep.subr.mxu0 0.0
        %3612 = vmatpush2.msra.mxu0 %v2971
        %3613 = vmatprep.subr.mxu0 0.0
        %3614 = vmatpush2.msra.mxu0 %v2969
        %3615 = vmatprep.subr.mxu0 0.0
        %3616 = vmatpush2.msra.mxu0 %v2967
        %3617 = vmatprep.subr.mxu0 0.0
        %3618 = vmatpush2.msra.mxu0 %v2965
        %3619 = vmatprep.subr.mxu0 0.0
        %3620 = vmatpush2.msra.mxu0 %v2963
        %3621 = vmatprep.mubr.f32.mxu0 %v384
        %3622 = vmatmul.mubr.f32.gmra.mxu0 %v383
        %v3623 = vpop.f32.mrf.mxu0
        %v3624 = vadd.f32 %v3539, %v3623
        %v3625 = vpop.f32.mrf.mxu0
        %3626 = vmatprep.mubr.f32.mxu0 %v396
        %3627 = vmatmul.mubr.f32.gmra.mxu0 %v395
        %v3628 = vpop.f32.mrf.mxu0
        %v3629 = vadd.f32 %v3544, %v3628
        %v3630 = vpop.f32.mrf.mxu0
        %3631 = vmatprep.mubr.f32.mxu0 %v408
        %3632 = vmatmul.mubr.f32.gmra.mxu0 %v407
        %v3633 = vpop.f32.mrf.mxu0
        %v3634 = vadd.f32 %v3549, %v3633
        %v3635 = vpop.f32.mrf.mxu0
        %3636 = vmatprep.mubr.f32.mxu0 %v420
        %3637 = vmatmul.mubr.f32.gmra.mxu0 %v419
        %v3638 = vpop.f32.mrf.mxu0
        %v3639 = vadd.f32 %v3554, %v3638
        %v3640 = vpop.f32.mrf.mxu0
        %3641 = vdwg.mxu0
        %3642 = vmatprep.subr.mxu0 0.0
        %3643 = vmatpush1.msra.mxu0 %v3025
        %3644 = vmatprep.subr.mxu0 0.0
        %3645 = vmatpush1.msra.mxu0 %v3023
        %3646 = vmatprep.subr.mxu0 0.0
        %3647 = vmatpush1.msra.mxu0 %v3021
        %3648 = vmatprep.subr.mxu0 0.0
        %3649 = vmatpush1.msra.mxu0 %v3019
        %3650 = vmatprep.subr.mxu0 0.0
        %3651 = vmatpush1.msra.mxu0 %v3017
        %3652 = vmatprep.subr.mxu0 0.0
        %3653 = vmatpush1.msra.mxu0 %v3015
        %3654 = vmatprep.subr.mxu0 0.0
        %3655 = vmatpush1.msra.mxu0 %v3013
        %3656 = vmatprep.subr.mxu0 0.0
        %3657 = vmatpush1.msra.mxu0 %v3011
        %3658 = vmatprep.subr.mxu0 0.0
        %3659 = vmatpush1.msra.mxu0 %v3009
        %3660 = vmatprep.subr.mxu0 0.0
        %3661 = vmatpush1.msra.mxu0 %v3007
        %3662 = vmatprep.subr.mxu0 0.0
        %3663 = vmatpush1.msra.mxu0 %v3005
        %3664 = vmatprep.subr.mxu0 0.0
        %3665 = vmatpush1.msra.mxu0 %v3003
        %3666 = vmatprep.subr.mxu0 0.0
        %3667 = vmatpush1.msra.mxu0 %v3001
        %3668 = vmatprep.subr.mxu0 0.0
        %3669 = vmatpush1.msra.mxu0 %v2999
        %3670 = vmatprep.subr.mxu0 0.0
        %3671 = vmatpush1.msra.mxu0 %v2997
        %3672 = vmatprep.subr.mxu0 0.0
        %3673 = vmatpush1.msra.mxu0 %v2995
        %3674 = vmatprep.subr.mxu0 0.0
        %3675 = vmatpush2.msra.mxu0 %v3057
        %3676 = vmatprep.subr.mxu0 0.0
        %3677 = vmatpush2.msra.mxu0 %v3055
        %3678 = vmatprep.subr.mxu0 0.0
        %3679 = vmatpush2.msra.mxu0 %v3053
        %3680 = vmatprep.subr.mxu0 0.0
        %3681 = vmatpush2.msra.mxu0 %v3051
        %3682 = vmatprep.subr.mxu0 0.0
        %3683 = vmatpush2.msra.mxu0 %v3049
        %3684 = vmatprep.subr.mxu0 0.0
        %3685 = vmatpush2.msra.mxu0 %v3047
        %3686 = vmatprep.subr.mxu0 0.0
        %3687 = vmatpush2.msra.mxu0 %v3045
        %3688 = vmatprep.subr.mxu0 0.0
        %3689 = vmatpush2.msra.mxu0 %v3043
        %3690 = vmatprep.subr.mxu0 0.0
        %3691 = vmatpush2.msra.mxu0 %v3041
        %3692 = vmatprep.subr.mxu0 0.0
        %3693 = vmatpush2.msra.mxu0 %v3039
        %3694 = vmatprep.subr.mxu0 0.0
        %3695 = vmatpush2.msra.mxu0 %v3037
        %3696 = vmatprep.subr.mxu0 0.0
        %3697 = vmatpush2.msra.mxu0 %v3035
        %3698 = vmatprep.subr.mxu0 0.0
        %3699 = vmatpush2.msra.mxu0 %v3033
        %3700 = vmatprep.subr.mxu0 0.0
        %3701 = vmatpush2.msra.mxu0 %v3031
        %3702 = vmatprep.subr.mxu0 0.0
        %3703 = vmatpush2.msra.mxu0 %v3029
        %3704 = vmatprep.subr.mxu0 0.0
        %3705 = vmatpush2.msra.mxu0 %v3027
        %3706 = vmatprep.mubr.f32.mxu0 %v386
        %3707 = vmatmul.mubr.f32.gmra.mxu0 %v385
        %v3708 = vpop.f32.mrf.mxu0
        %v3709 = vadd.f32 %v3624, %v3708
        %v3710 = vpop.f32.mrf.mxu0
        %3711 = vmatprep.mubr.f32.mxu0 %v398
        %3712 = vmatmul.mubr.f32.gmra.mxu0 %v397
        %v3713 = vpop.f32.mrf.mxu0
        %v3714 = vadd.f32 %v3629, %v3713
        %v3715 = vpop.f32.mrf.mxu0
        %3716 = vmatprep.mubr.f32.mxu0 %v410
        %3717 = vmatmul.mubr.f32.gmra.mxu0 %v409
        %v3718 = vpop.f32.mrf.mxu0
        %v3719 = vadd.f32 %v3634, %v3718
        %v3720 = vpop.f32.mrf.mxu0
        %3721 = vmatprep.mubr.f32.mxu0 %v422
        %3722 = vmatmul.mubr.f32.gmra.mxu0 %v421
        %v3723 = vpop.f32.mrf.mxu0
        %v3724 = vadd.f32 %v3639, %v3723
        %v3725 = vpop.f32.mrf.mxu0
        %3726 = vdwg.mxu0
        %3727 = vmatprep.subr.mxu0 0.0
        %3728 = vmatpush1.msra.mxu0 %v3089
        %3729 = vmatprep.subr.mxu0 0.0
        %3730 = vmatpush1.msra.mxu0 %v3087
        %3731 = vmatprep.subr.mxu0 0.0
        %3732 = vmatpush1.msra.mxu0 %v3085
        %3733 = vmatprep.subr.mxu0 0.0
        %3734 = vmatpush1.msra.mxu0 %v3083
        %3735 = vmatprep.subr.mxu0 0.0
        %3736 = vmatpush1.msra.mxu0 %v3081
        %3737 = vmatprep.subr.mxu0 0.0
        %3738 = vmatpush1.msra.mxu0 %v3079
        %3739 = vmatprep.subr.mxu0 0.0
        %3740 = vmatpush1.msra.mxu0 %v3077
        %3741 = vmatprep.subr.mxu0 0.0
        %3742 = vmatpush1.msra.mxu0 %v3075
        %3743 = vmatprep.subr.mxu0 0.0
        %3744 = vmatpush1.msra.mxu0 %v3073
        %3745 = vmatprep.subr.mxu0 0.0
        %3746 = vmatpush1.msra.mxu0 %v3071
        %3747 = vmatprep.subr.mxu0 0.0
        %3748 = vmatpush1.msra.mxu0 %v3069
        %3749 = vmatprep.subr.mxu0 0.0
        %3750 = vmatpush1.msra.mxu0 %v3067
        %3751 = vmatprep.subr.mxu0 0.0
        %3752 = vmatpush1.msra.mxu0 %v3065
        %3753 = vmatprep.subr.mxu0 0.0
        %3754 = vmatpush1.msra.mxu0 %v3063
        %3755 = vmatprep.subr.mxu0 0.0
        %3756 = vmatpush1.msra.mxu0 %v3061
        %3757 = vmatprep.subr.mxu0 0.0
        %3758 = vmatpush1.msra.mxu0 %v3059
        %3759 = vmatprep.subr.mxu0 0.0
        %3760 = vmatpush2.msra.mxu0 %v3121
        %3761 = vmatprep.subr.mxu0 0.0
        %3762 = vmatpush2.msra.mxu0 %v3119
        %3763 = vmatprep.subr.mxu0 0.0
        %3764 = vmatpush2.msra.mxu0 %v3117
        %3765 = vmatprep.subr.mxu0 0.0
        %3766 = vmatpush2.msra.mxu0 %v3115
        %3767 = vmatprep.subr.mxu0 0.0
        %3768 = vmatpush2.msra.mxu0 %v3113
        %3769 = vmatprep.subr.mxu0 0.0
        %3770 = vmatpush2.msra.mxu0 %v3111
        %3771 = vmatprep.subr.mxu0 0.0
        %3772 = vmatpush2.msra.mxu0 %v3109
        %3773 = vmatprep.subr.mxu0 0.0
        %3774 = vmatpush2.msra.mxu0 %v3107
        %3775 = vmatprep.subr.mxu0 0.0
        %3776 = vmatpush2.msra.mxu0 %v3105
        %3777 = vmatprep.subr.mxu0 0.0
        %3778 = vmatpush2.msra.mxu0 %v3103
        %3779 = vmatprep.subr.mxu0 0.0
        %3780 = vmatpush2.msra.mxu0 %v3101
        %3781 = vmatprep.subr.mxu0 0.0
        %3782 = vmatpush2.msra.mxu0 %v3099
        %3783 = vmatprep.subr.mxu0 0.0
        %3784 = vmatpush2.msra.mxu0 %v3097
        %3785 = vmatprep.subr.mxu0 0.0
        %3786 = vmatpush2.msra.mxu0 %v3095
        %3787 = vmatprep.subr.mxu0 0.0
        %3788 = vmatpush2.msra.mxu0 %v3093
        %3789 = vmatprep.subr.mxu0 0.0
        %3790 = vmatpush2.msra.mxu0 %v3091
        %3791 = vmatprep.mubr.f32.mxu0 %v388
        %3792 = vmatmul.mubr.f32.gmra.mxu0 %v387
        %v3793 = vpop.f32.mrf.mxu0
        %v3794 = vadd.f32 %v3709, %v3793
        %v3795 = vpop.f32.mrf.mxu0
        %3796 = vmatprep.mubr.f32.mxu0 %v400
        %3797 = vmatmul.mubr.f32.gmra.mxu0 %v399
        %v3798 = vpop.f32.mrf.mxu0
        %v3799 = vadd.f32 %v3714, %v3798
        %v3800 = vpop.f32.mrf.mxu0
        %3801 = vmatprep.mubr.f32.mxu0 %v412
        %3802 = vmatmul.mubr.f32.gmra.mxu0 %v411
        %v3803 = vpop.f32.mrf.mxu0
        %v3804 = vadd.f32 %v3719, %v3803
        %v3805 = vpop.f32.mrf.mxu0
        %3806 = vmatprep.mubr.f32.mxu0 %v424
        %3807 = vmatmul.mubr.f32.gmra.mxu0 %v423
        %v3808 = vpop.f32.mrf.mxu0
        %v3809 = vadd.f32 %v3724, %v3808
        %v3810 = vpop.f32.mrf.mxu0
        %3811 = vdwg.mxu0
        %3812 = vmatprep.subr.mxu0 0.0
        %3813 = vmatpush1.msra.mxu0 %v3153
        %3814 = vmatprep.subr.mxu0 0.0
        %3815 = vmatpush1.msra.mxu0 %v3151
        %3816 = vmatprep.subr.mxu0 0.0
        %3817 = vmatpush1.msra.mxu0 %v3149
        %3818 = vmatprep.subr.mxu0 0.0
        %3819 = vmatpush1.msra.mxu0 %v3147
        %3820 = vmatprep.subr.mxu0 0.0
        %3821 = vmatpush1.msra.mxu0 %v3145
        %3822 = vmatprep.subr.mxu0 0.0
        %3823 = vmatpush1.msra.mxu0 %v3143
        %3824 = vmatprep.subr.mxu0 0.0
        %3825 = vmatpush1.msra.mxu0 %v3141
        %3826 = vmatprep.subr.mxu0 0.0
        %3827 = vmatpush1.msra.mxu0 %v3139
        %3828 = vmatprep.subr.mxu0 0.0
        %3829 = vmatpush1.msra.mxu0 %v3137
        %3830 = vmatprep.subr.mxu0 0.0
        %3831 = vmatpush1.msra.mxu0 %v3135
        %3832 = vmatprep.subr.mxu0 0.0
        %3833 = vmatpush1.msra.mxu0 %v3133
        %3834 = vmatprep.subr.mxu0 0.0
        %3835 = vmatpush1.msra.mxu0 %v3131
        %3836 = vmatprep.subr.mxu0 0.0
        %3837 = vmatpush1.msra.mxu0 %v3129
        %3838 = vmatprep.subr.mxu0 0.0
        %3839 = vmatpush1.msra.mxu0 %v3127
        %3840 = vmatprep.subr.mxu0 0.0
        %3841 = vmatpush1.msra.mxu0 %v3125
        %3842 = vmatprep.subr.mxu0 0.0
        %3843 = vmatpush1.msra.mxu0 %v3123
        %3844 = vmatprep.subr.mxu0 0.0
        %3845 = vmatpush2.msra.mxu0 %v3185
        %3846 = vmatprep.subr.mxu0 0.0
        %3847 = vmatpush2.msra.mxu0 %v3183
        %3848 = vmatprep.subr.mxu0 0.0
        %3849 = vmatpush2.msra.mxu0 %v3181
        %3850 = vmatprep.subr.mxu0 0.0
        %3851 = vmatpush2.msra.mxu0 %v3179
        %3852 = vmatprep.subr.mxu0 0.0
        %3853 = vmatpush2.msra.mxu0 %v3177
        %3854 = vmatprep.subr.mxu0 0.0
        %3855 = vmatpush2.msra.mxu0 %v3175
        %3856 = vmatprep.subr.mxu0 0.0
        %3857 = vmatpush2.msra.mxu0 %v3173
        %3858 = vmatprep.subr.mxu0 0.0
        %3859 = vmatpush2.msra.mxu0 %v3171
        %3860 = vmatprep.subr.mxu0 0.0
        %3861 = vmatpush2.msra.mxu0 %v3169
        %3862 = vmatprep.subr.mxu0 0.0
        %3863 = vmatpush2.msra.mxu0 %v3167
        %3864 = vmatprep.subr.mxu0 0.0
        %3865 = vmatpush2.msra.mxu0 %v3165
        %3866 = vmatprep.subr.mxu0 0.0
        %3867 = vmatpush2.msra.mxu0 %v3163
        %3868 = vmatprep.subr.mxu0 0.0
        %3869 = vmatpush2.msra.mxu0 %v3161
        %3870 = vmatprep.subr.mxu0 0.0
        %3871 = vmatpush2.msra.mxu0 %v3159
        %3872 = vmatprep.subr.mxu0 0.0
        %3873 = vmatpush2.msra.mxu0 %v3157
        %3874 = vmatprep.subr.mxu0 0.0
        %3875 = vmatpush2.msra.mxu0 %v3155
        %3876 = vmatprep.mubr.f32.mxu0 %v390
        %3877 = vmatmul.mubr.f32.gmra.mxu0 %v389
        %v3878 = vpop.f32.mrf.mxu0
        %v3879 = vadd.f32 %v3794, %v3878
        %v3880 = vpop.f32.mrf.mxu0
        %3881 = vmatprep.mubr.f32.mxu0 %v402
        %3882 = vmatmul.mubr.f32.gmra.mxu0 %v401
        %v3883 = vpop.f32.mrf.mxu0
        %v3884 = vadd.f32 %v3799, %v3883
        %v3885 = vpop.f32.mrf.mxu0
        %3886 = vmatprep.mubr.f32.mxu0 %v414
        %3887 = vmatmul.mubr.f32.gmra.mxu0 %v413
        %v3888 = vpop.f32.mrf.mxu0
        %v3889 = vadd.f32 %v3804, %v3888
        %v3890 = vpop.f32.mrf.mxu0
        %3891 = vmatprep.mubr.f32.mxu0 %v426
        %3892 = vmatmul.mubr.f32.gmra.mxu0 %v425
        %v3893 = vpop.f32.mrf.mxu0
        %v3894 = vadd.f32 %v3809, %v3893
        %v3895 = vpop.f32.mrf.mxu0
        %3896 = vdwg.mxu0
        %v3897 = vmul.f32 %v3879, %v3386
        %v3898 = vmul.f32 %v3884, %v3386
        %v3899 = vmul.f32 %v3889, %v3386
        %v3900 = vmul.f32 %v3894, %v3386
        %3901 = vst [vmem:[%s322] sm:$0xff] %v3897
        %3902 = vst [vmem:[%s322 + $0x8] sm:$0xff] %v3898
        %3903 = vst [vmem:[%s322 + $0x10] sm:$0xff] %v3899
        %3904 = vst [vmem:[%s322 + $0x18] sm:$0xff] %v3900
        %v3905 = vmul.f32 %v2803, %v3386
        %v3906 = vmul.f32 %v2805, %v3386
        %v3907 = vmul.f32 %v2807, %v3386
        %v3908 = vmul.f32 %v2809, %v3386
        %v3909 = vmul.f32 %v2811, %v3386
        %v3910 = vmul.f32 %v2813, %v3386
        %v3911 = vmul.f32 %v2815, %v3386
        %v3912 = vmul.f32 %v2817, %v3386
        %v3913 = vmul.f32 %v2819, %v3386
        %v3914 = vmul.f32 %v2821, %v3386
        %v3915 = vmul.f32 %v2823, %v3386
        %v3916 = vmul.f32 %v2825, %v3386
        %v3917 = vmul.f32 %v2827, %v3386
        %v3918 = vmul.f32 %v2829, %v3386
        %v3919 = vmul.f32 %v2831, %v3386
        %v3920 = vmul.f32 %v2833, %v3386
        %v3921 = vmul.f32 %v2835, %v3386
        %v3922 = vmul.f32 %v2837, %v3386
        %v3923 = vmul.f32 %v2839, %v3386
        %v3924 = vmul.f32 %v2841, %v3386
        %v3925 = vmul.f32 %v2843, %v3386
        %v3926 = vmul.f32 %v2845, %v3386
        %v3927 = vmul.f32 %v2847, %v3386
        %v3928 = vmul.f32 %v2849, %v3386
        %v3929 = vmul.f32 %v2851, %v3386
        %v3930 = vmul.f32 %v2853, %v3386
        %v3931 = vmul.f32 %v2855, %v3386
        %v3932 = vmul.f32 %v2857, %v3386
        %v3933 = vmul.f32 %v2859, %v3386
        %v3934 = vmul.f32 %v2861, %v3386
        %v3935 = vmul.f32 %v2863, %v3386
        %v3936 = vmul.f32 %v2865, %v3386
        %v3937 = vmul.f32 %v2867, %v3386
        %v3938 = vmul.f32 %v2869, %v3386
        %v3939 = vmul.f32 %v2871, %v3386
        %v3940 = vmul.f32 %v2873, %v3386
        %v3941 = vmul.f32 %v2875, %v3386
        %v3942 = vmul.f32 %v2877, %v3386
        %v3943 = vmul.f32 %v2879, %v3386
        %v3944 = vmul.f32 %v2881, %v3386
        %v3945 = vmul.f32 %v2883, %v3386
        %v3946 = vmul.f32 %v2885, %v3386
        %v3947 = vmul.f32 %v2887, %v3386
        %v3948 = vmul.f32 %v2889, %v3386
        %v3949 = vmul.f32 %v2891, %v3386
        %v3950 = vmul.f32 %v2893, %v3386
        %v3951 = vmul.f32 %v2895, %v3386
        %v3952 = vmul.f32 %v2897, %v3386
        %v3953 = vmul.f32 %v2899, %v3386
        %v3954 = vmul.f32 %v2901, %v3386
        %v3955 = vmul.f32 %v2903, %v3386
        %v3956 = vmul.f32 %v2905, %v3386
        %v3957 = vmul.f32 %v2907, %v3386
        %v3958 = vmul.f32 %v2909, %v3386
        %v3959 = vmul.f32 %v2911, %v3386
        %v3960 = vmul.f32 %v2913, %v3386
        %v3961 = vmul.f32 %v2915, %v3386
        %v3962 = vmul.f32 %v2917, %v3386
        %v3963 = vmul.f32 %v2919, %v3386
        %v3964 = vmul.f32 %v2921, %v3386
        %v3965 = vmul.f32 %v2923, %v3386
        %v3966 = vmul.f32 %v2925, %v3386
        %v3967 = vmul.f32 %v2927, %v3386
        %v3968 = vmul.f32 %v2929, %v3386
        %v3969 = vmul.f32 %v2931, %v3386
        %v3970 = vmul.f32 %v2933, %v3386
        %v3971 = vmul.f32 %v2935, %v3386
        %v3972 = vmul.f32 %v2937, %v3386
        %v3973 = vmul.f32 %v2939, %v3386
        %v3974 = vmul.f32 %v2941, %v3386
        %v3975 = vmul.f32 %v2943, %v3386
        %v3976 = vmul.f32 %v2945, %v3386
        %v3977 = vmul.f32 %v2947, %v3386
        %v3978 = vmul.f32 %v2949, %v3386
        %v3979 = vmul.f32 %v2951, %v3386
        %v3980 = vmul.f32 %v2953, %v3386
        %v3981 = vmul.f32 %v2955, %v3386
        %v3982 = vmul.f32 %v2957, %v3386
        %v3983 = vmul.f32 %v2959, %v3386
        %v3984 = vmul.f32 %v2961, %v3386
        %v3985 = vmul.f32 %v2963, %v3386
        %v3986 = vmul.f32 %v2965, %v3386
        %v3987 = vmul.f32 %v2967, %v3386
        %v3988 = vmul.f32 %v2969, %v3386
        %v3989 = vmul.f32 %v2971, %v3386
        %v3990 = vmul.f32 %v2973, %v3386
        %v3991 = vmul.f32 %v2975, %v3386
        %v3992 = vmul.f32 %v2977, %v3386
        %v3993 = vmul.f32 %v2979, %v3386
        %v3994 = vmul.f32 %v2981, %v3386
        %v3995 = vmul.f32 %v2983, %v3386
        %v3996 = vmul.f32 %v2985, %v3386
        %v3997 = vmul.f32 %v2987, %v3386
        %v3998 = vmul.f32 %v2989, %v3386
        %v3999 = vmul.f32 %v2991, %v3386
        %v4000 = vmul.f32 %v2993, %v3386
        %v4001 = vmul.f32 %v2995, %v3386
        %v4002 = vmul.f32 %v2997, %v3386
        %v4003 = vmul.f32 %v2999, %v3386
        %v4004 = vmul.f32 %v3001, %v3386
        %v4005 = vmul.f32 %v3003, %v3386
        %v4006 = vmul.f32 %v3005, %v3386
        %v4007 = vmul.f32 %v3007, %v3386
        %v4008 = vmul.f32 %v3009, %v3386
        %v4009 = vmul.f32 %v3011, %v3386
        %v4010 = vmul.f32 %v3013, %v3386
        %v4011 = vmul.f32 %v3015, %v3386
        %v4012 = vmul.f32 %v3017, %v3386
        %v4013 = vmul.f32 %v3019, %v3386
        %v4014 = vmul.f32 %v3021, %v3386
        %v4015 = vmul.f32 %v3023, %v3386
        %v4016 = vmul.f32 %v3025, %v3386
        %v4017 = vmul.f32 %v3027, %v3386
        %v4018 = vmul.f32 %v3029, %v3386
        %v4019 = vmul.f32 %v3031, %v3386
        %v4020 = vmul.f32 %v3033, %v3386
        %v4021 = vmul.f32 %v3035, %v3386
        %v4022 = vmul.f32 %v3037, %v3386
        %v4023 = vmul.f32 %v3039, %v3386
        %v4024 = vmul.f32 %v3041, %v3386
        %v4025 = vmul.f32 %v3043, %v3386
        %v4026 = vmul.f32 %v3045, %v3386
        %v4027 = vmul.f32 %v3047, %v3386
        %v4028 = vmul.f32 %v3049, %v3386
        %v4029 = vmul.f32 %v3051, %v3386
        %v4030 = vmul.f32 %v3053, %v3386
        %v4031 = vmul.f32 %v3055, %v3386
        %v4032 = vmul.f32 %v3057, %v3386
        %v4033 = vmul.f32 %v3059, %v3386
        %v4034 = vmul.f32 %v3061, %v3386
        %v4035 = vmul.f32 %v3063, %v3386
        %v4036 = vmul.f32 %v3065, %v3386
        %v4037 = vmul.f32 %v3067, %v3386
        %v4038 = vmul.f32 %v3069, %v3386
        %v4039 = vmul.f32 %v3071, %v3386
        %v4040 = vmul.f32 %v3073, %v3386
        %v4041 = vmul.f32 %v3075, %v3386
        %v4042 = vmul.f32 %v3077, %v3386
        %v4043 = vmul.f32 %v3079, %v3386
        %v4044 = vmul.f32 %v3081, %v3386
        %v4045 = vmul.f32 %v3083, %v3386
        %v4046 = vmul.f32 %v3085, %v3386
        %v4047 = vmul.f32 %v3087, %v3386
        %v4048 = vmul.f32 %v3089, %v3386
        %v4049 = vmul.f32 %v3091, %v3386
        %v4050 = vmul.f32 %v3093, %v3386
        %v4051 = vmul.f32 %v3095, %v3386
        %v4052 = vmul.f32 %v3097, %v3386
        %v4053 = vmul.f32 %v3099, %v3386
        %v4054 = vmul.f32 %v3101, %v3386
        %v4055 = vmul.f32 %v3103, %v3386
        %v4056 = vmul.f32 %v3105, %v3386
        %v4057 = vmul.f32 %v3107, %v3386
        %v4058 = vmul.f32 %v3109, %v3386
        %v4059 = vmul.f32 %v3111, %v3386
        %v4060 = vmul.f32 %v3113, %v3386
        %v4061 = vmul.f32 %v3115, %v3386
        %v4062 = vmul.f32 %v3117, %v3386
        %v4063 = vmul.f32 %v3119, %v3386
        %v4064 = vmul.f32 %v3121, %v3386
        %v4065 = vmul.f32 %v3123, %v3386
        %v4066 = vmul.f32 %v3125, %v3386
        %v4067 = vmul.f32 %v3127, %v3386
        %v4068 = vmul.f32 %v3129, %v3386
        %v4069 = vmul.f32 %v3131, %v3386
        %v4070 = vmul.f32 %v3133, %v3386
        %v4071 = vmul.f32 %v3135, %v3386
        %v4072 = vmul.f32 %v3137, %v3386
        %v4073 = vmul.f32 %v3139, %v3386
        %v4074 = vmul.f32 %v3141, %v3386
        %v4075 = vmul.f32 %v3143, %v3386
        %v4076 = vmul.f32 %v3145, %v3386
        %v4077 = vmul.f32 %v3147, %v3386
        %v4078 = vmul.f32 %v3149, %v3386
        %v4079 = vmul.f32 %v3151, %v3386
        %v4080 = vmul.f32 %v3153, %v3386
        %v4081 = vmul.f32 %v3155, %v3386
        %v4082 = vmul.f32 %v3157, %v3386
        %v4083 = vmul.f32 %v3159, %v3386
        %v4084 = vmul.f32 %v3161, %v3386
        %v4085 = vmul.f32 %v3163, %v3386
        %v4086 = vmul.f32 %v3165, %v3386
        %v4087 = vmul.f32 %v3167, %v3386
        %v4088 = vmul.f32 %v3169, %v3386
        %v4089 = vmul.f32 %v3171, %v3386
        %v4090 = vmul.f32 %v3173, %v3386
        %v4091 = vmul.f32 %v3175, %v3386
        %v4092 = vmul.f32 %v3177, %v3386
        %v4093 = vmul.f32 %v3179, %v3386
        %v4094 = vmul.f32 %v3181, %v3386
        %v4095 = vmul.f32 %v3183, %v3386
        %v4096 = vmul.f32 %v3185, %v3386
        %4097 = vst [vmem:[%s315] sm:$0xff] %v3905
        %4098 = vst [vmem:[%s315 + $0x8] sm:$0xff] %v3906
        %4099 = vst [vmem:[%s315 + $0x10] sm:$0xff] %v3907
        %4100 = vst [vmem:[%s315 + $0x18] sm:$0xff] %v3908
        %4101 = vst [vmem:[%s315 + $0x20] sm:$0xff] %v3909
        %4102 = vst [vmem:[%s315 + $0x28] sm:$0xff] %v3910
        %4103 = vst [vmem:[%s315 + $0x30] sm:$0xff] %v3911
        %4104 = vst [vmem:[%s315 + $0x38] sm:$0xff] %v3912
        %4105 = vst [vmem:[%s315 + $0x40] sm:$0xff] %v3913
        %4106 = vst [vmem:[%s315 + $0x48] sm:$0xff] %v3914
        %4107 = vst [vmem:[%s315 + $0x50] sm:$0xff] %v3915
        %4108 = vst [vmem:[%s315 + $0x58] sm:$0xff] %v3916
        %4109 = vst [vmem:[%s315 + $0x60] sm:$0xff] %v3917
        %4110 = vst [vmem:[%s315 + $0x68] sm:$0xff] %v3918
        %4111 = vst [vmem:[%s315 + $0x70] sm:$0xff] %v3919
        %4112 = vst [vmem:[%s315 + $0x78] sm:$0xff] %v3920
        %4113 = vst [vmem:[%s315 + $0x80] sm:$0xff] %v3921
        %4114 = vst [vmem:[%s315 + $0x88] sm:$0xff] %v3922
        %4115 = vst [vmem:[%s315 + $0x90] sm:$0xff] %v3923
        %4116 = vst [vmem:[%s315 + $0x98] sm:$0xff] %v3924
        %4117 = vst [vmem:[%s315 + $0xa0] sm:$0xff] %v3925
        %4118 = vst [vmem:[%s315 + $0xa8] sm:$0xff] %v3926
        %4119 = vst [vmem:[%s315 + $0xb0] sm:$0xff] %v3927
        %4120 = vst [vmem:[%s315 + $0xb8] sm:$0xff] %v3928
        %4121 = vst [vmem:[%s315 + $0xc0] sm:$0xff] %v3929
        %4122 = vst [vmem:[%s315 + $0xc8] sm:$0xff] %v3930
        %4123 = vst [vmem:[%s315 + $0xd0] sm:$0xff] %v3931
        %4124 = vst [vmem:[%s315 + $0xd8] sm:$0xff] %v3932
        %4125 = vst [vmem:[%s315 + $0xe0] sm:$0xff] %v3933
        %4126 = vst [vmem:[%s315 + $0xe8] sm:$0xff] %v3934
        %4127 = vst [vmem:[%s315 + $0xf0] sm:$0xff] %v3935
        %4128 = vst [vmem:[%s315 + $0xf8] sm:$0xff] %v3936
        %4129 = vst [vmem:[%s315 + $0x100] sm:$0xff] %v3937
        %4130 = vst [vmem:[%s315 + $0x108] sm:$0xff] %v3938
        %4131 = vst [vmem:[%s315 + $0x110] sm:$0xff] %v3939
        %4132 = vst [vmem:[%s315 + $0x118] sm:$0xff] %v3940
        %4133 = vst [vmem:[%s315 + $0x120] sm:$0xff] %v3941
        %4134 = vst [vmem:[%s315 + $0x128] sm:$0xff] %v3942
        %4135 = vst [vmem:[%s315 + $0x130] sm:$0xff] %v3943
        %4136 = vst [vmem:[%s315 + $0x138] sm:$0xff] %v3944
        %4137 = vst [vmem:[%s315 + $0x140] sm:$0xff] %v3945
        %4138 = vst [vmem:[%s315 + $0x148] sm:$0xff] %v3946
        %4139 = vst [vmem:[%s315 + $0x150] sm:$0xff] %v3947
        %4140 = vst [vmem:[%s315 + $0x158] sm:$0xff] %v3948
        %4141 = vst [vmem:[%s315 + $0x160] sm:$0xff] %v3949
        %4142 = vst [vmem:[%s315 + $0x168] sm:$0xff] %v3950
        %4143 = vst [vmem:[%s315 + $0x170] sm:$0xff] %v3951
        %4144 = vst [vmem:[%s315 + $0x178] sm:$0xff] %v3952
        %4145 = vst [vmem:[%s315 + $0x180] sm:$0xff] %v3953
        %4146 = vst [vmem:[%s315 + $0x188] sm:$0xff] %v3954
        %4147 = vst [vmem:[%s315 + $0x190] sm:$0xff] %v3955
        %4148 = vst [vmem:[%s315 + $0x198] sm:$0xff] %v3956
        %4149 = vst [vmem:[%s315 + $0x1a0] sm:$0xff] %v3957
        %4150 = vst [vmem:[%s315 + $0x1a8] sm:$0xff] %v3958
        %4151 = vst [vmem:[%s315 + $0x1b0] sm:$0xff] %v3959
        %4152 = vst [vmem:[%s315 + $0x1b8] sm:$0xff] %v3960
        %4153 = vst [vmem:[%s315 + $0x1c0] sm:$0xff] %v3961
        %4154 = vst [vmem:[%s315 + $0x1c8] sm:$0xff] %v3962
        %4155 = vst [vmem:[%s315 + $0x1d0] sm:$0xff] %v3963
        %4156 = vst [vmem:[%s315 + $0x1d8] sm:$0xff] %v3964
        %4157 = vst [vmem:[%s315 + $0x1e0] sm:$0xff] %v3965
        %4158 = vst [vmem:[%s315 + $0x1e8] sm:$0xff] %v3966
        %4159 = vst [vmem:[%s315 + $0x1f0] sm:$0xff] %v3967
        %4160 = vst [vmem:[%s315 + $0x1f8] sm:$0xff] %v3968
        %4161 = vst [vmem:[%s315 + $0x200] sm:$0xff] %v3969
        %4162 = vst [vmem:[%s315 + $0x208] sm:$0xff] %v3970
        %4163 = vst [vmem:[%s315 + $0x210] sm:$0xff] %v3971
        %4164 = vst [vmem:[%s315 + $0x218] sm:$0xff] %v3972
        %4165 = vst [vmem:[%s315 + $0x220] sm:$0xff] %v3973
        %4166 = vst [vmem:[%s315 + $0x228] sm:$0xff] %v3974
        %4167 = vst [vmem:[%s315 + $0x230] sm:$0xff] %v3975
        %4168 = vst [vmem:[%s315 + $0x238] sm:$0xff] %v3976
        %4169 = vst [vmem:[%s315 + $0x240] sm:$0xff] %v3977
        %4170 = vst [vmem:[%s315 + $0x248] sm:$0xff] %v3978
        %4171 = vst [vmem:[%s315 + $0x250] sm:$0xff] %v3979
        %4172 = vst [vmem:[%s315 + $0x258] sm:$0xff] %v3980
        %4173 = vst [vmem:[%s315 + $0x260] sm:$0xff] %v3981
        %4174 = vst [vmem:[%s315 + $0x268] sm:$0xff] %v3982
        %4175 = vst [vmem:[%s315 + $0x270] sm:$0xff] %v3983
        %4176 = vst [vmem:[%s315 + $0x278] sm:$0xff] %v3984
        %4177 = vst [vmem:[%s315 + $0x280] sm:$0xff] %v3985
        %4178 = vst [vmem:[%s315 + $0x288] sm:$0xff] %v3986
        %4179 = vst [vmem:[%s315 + $0x290] sm:$0xff] %v3987
        %4180 = vst [vmem:[%s315 + $0x298] sm:$0xff] %v3988
        %4181 = vst [vmem:[%s315 + $0x2a0] sm:$0xff] %v3989
        %4182 = vst [vmem:[%s315 + $0x2a8] sm:$0xff] %v3990
        %4183 = vst [vmem:[%s315 + $0x2b0] sm:$0xff] %v3991
        %4184 = vst [vmem:[%s315 + $0x2b8] sm:$0xff] %v3992
        %4185 = vst [vmem:[%s315 + $0x2c0] sm:$0xff] %v3993
        %4186 = vst [vmem:[%s315 + $0x2c8] sm:$0xff] %v3994
        %4187 = vst [vmem:[%s315 + $0x2d0] sm:$0xff] %v3995
        %4188 = vst [vmem:[%s315 + $0x2d8] sm:$0xff] %v3996
        %4189 = vst [vmem:[%s315 + $0x2e0] sm:$0xff] %v3997
        %4190 = vst [vmem:[%s315 + $0x2e8] sm:$0xff] %v3998
        %4191 = vst [vmem:[%s315 + $0x2f0] sm:$0xff] %v3999
        %4192 = vst [vmem:[%s315 + $0x2f8] sm:$0xff] %v4000
        %4193 = vst [vmem:[%s315 + $0x300] sm:$0xff] %v4001
        %4194 = vst [vmem:[%s315 + $0x308] sm:$0xff] %v4002
        %4195 = vst [vmem:[%s315 + $0x310] sm:$0xff] %v4003
        %4196 = vst [vmem:[%s315 + $0x318] sm:$0xff] %v4004
        %4197 = vst [vmem:[%s315 + $0x320] sm:$0xff] %v4005
        %4198 = vst [vmem:[%s315 + $0x328] sm:$0xff] %v4006
        %4199 = vst [vmem:[%s315 + $0x330] sm:$0xff] %v4007
        %4200 = vst [vmem:[%s315 + $0x338] sm:$0xff] %v4008
        %4201 = vst [vmem:[%s315 + $0x340] sm:$0xff] %v4009
        %4202 = vst [vmem:[%s315 + $0x348] sm:$0xff] %v4010
        %4203 = vst [vmem:[%s315 + $0x350] sm:$0xff] %v4011
        %4204 = vst [vmem:[%s315 + $0x358] sm:$0xff] %v4012
        %4205 = vst [vmem:[%s315 + $0x360] sm:$0xff] %v4013
        %4206 = vst [vmem:[%s315 + $0x368] sm:$0xff] %v4014
        %4207 = vst [vmem:[%s315 + $0x370] sm:$0xff] %v4015
        %4208 = vst [vmem:[%s315 + $0x378] sm:$0xff] %v4016
        %4209 = vst [vmem:[%s315 + $0x380] sm:$0xff] %v4017
        %4210 = vst [vmem:[%s315 + $0x388] sm:$0xff] %v4018
        %4211 = vst [vmem:[%s315 + $0x390] sm:$0xff] %v4019
        %4212 = vst [vmem:[%s315 + $0x398] sm:$0xff] %v4020
        %4213 = vst [vmem:[%s315 + $0x3a0] sm:$0xff] %v4021
        %4214 = vst [vmem:[%s315 + $0x3a8] sm:$0xff] %v4022
        %4215 = vst [vmem:[%s315 + $0x3b0] sm:$0xff] %v4023
        %4216 = vst [vmem:[%s315 + $0x3b8] sm:$0xff] %v4024
        %4217 = vst [vmem:[%s315 + $0x3c0] sm:$0xff] %v4025
        %4218 = vst [vmem:[%s315 + $0x3c8] sm:$0xff] %v4026
        %4219 = vst [vmem:[%s315 + $0x3d0] sm:$0xff] %v4027
        %4220 = vst [vmem:[%s315 + $0x3d8] sm:$0xff] %v4028
        %4221 = vst [vmem:[%s315 + $0x3e0] sm:$0xff] %v4029
        %4222 = vst [vmem:[%s315 + $0x3e8] sm:$0xff] %v4030
        %4223 = vst [vmem:[%s315 + $0x3f0] sm:$0xff] %v4031
        %4224 = vst [vmem:[%s315 + $0x3f8] sm:$0xff] %v4032
        %4225 = vst [vmem:[%s315 + $0x400] sm:$0xff] %v4033
        %4226 = vst [vmem:[%s315 + $0x408] sm:$0xff] %v4034
        %4227 = vst [vmem:[%s315 + $0x410] sm:$0xff] %v4035
        %4228 = vst [vmem:[%s315 + $0x418] sm:$0xff] %v4036
        %4229 = vst [vmem:[%s315 + $0x420] sm:$0xff] %v4037
        %4230 = vst [vmem:[%s315 + $0x428] sm:$0xff] %v4038
        %4231 = vst [vmem:[%s315 + $0x430] sm:$0xff] %v4039
        %4232 = vst [vmem:[%s315 + $0x438] sm:$0xff] %v4040
        %4233 = vst [vmem:[%s315 + $0x440] sm:$0xff] %v4041
        %4234 = vst [vmem:[%s315 + $0x448] sm:$0xff] %v4042
        %4235 = vst [vmem:[%s315 + $0x450] sm:$0xff] %v4043
        %4236 = vst [vmem:[%s315 + $0x458] sm:$0xff] %v4044
        %4237 = vst [vmem:[%s315 + $0x460] sm:$0xff] %v4045
        %4238 = vst [vmem:[%s315 + $0x468] sm:$0xff] %v4046
        %4239 = vst [vmem:[%s315 + $0x470] sm:$0xff] %v4047
        %4240 = vst [vmem:[%s315 + $0x478] sm:$0xff] %v4048
        %4241 = vst [vmem:[%s315 + $0x480] sm:$0xff] %v4049
        %4242 = vst [vmem:[%s315 + $0x488] sm:$0xff] %v4050
        %4243 = vst [vmem:[%s315 + $0x490] sm:$0xff] %v4051
        %4244 = vst [vmem:[%s315 + $0x498] sm:$0xff] %v4052
        %4245 = vst [vmem:[%s315 + $0x4a0] sm:$0xff] %v4053
        %4246 = vst [vmem:[%s315 + $0x4a8] sm:$0xff] %v4054
        %4247 = vst [vmem:[%s315 + $0x4b0] sm:$0xff] %v4055
        %4248 = vst [vmem:[%s315 + $0x4b8] sm:$0xff] %v4056
        %4249 = vst [vmem:[%s315 + $0x4c0] sm:$0xff] %v4057
        %4250 = vst [vmem:[%s315 + $0x4c8] sm:$0xff] %v4058
        %4251 = vst [vmem:[%s315 + $0x4d0] sm:$0xff] %v4059
        %4252 = vst [vmem:[%s315 + $0x4d8] sm:$0xff] %v4060
        %4253 = vst [vmem:[%s315 + $0x4e0] sm:$0xff] %v4061
        %4254 = vst [vmem:[%s315 + $0x4e8] sm:$0xff] %v4062
        %4255 = vst [vmem:[%s315 + $0x4f0] sm:$0xff] %v4063
        %4256 = vst [vmem:[%s315 + $0x4f8] sm:$0xff] %v4064
        %4257 = vst [vmem:[%s315 + $0x500] sm:$0xff] %v4065
        %4258 = vst [vmem:[%s315 + $0x508] sm:$0xff] %v4066
        %4259 = vst [vmem:[%s315 + $0x510] sm:$0xff] %v4067
        %4260 = vst [vmem:[%s315 + $0x518] sm:$0xff] %v4068
        %4261 = vst [vmem:[%s315 + $0x520] sm:$0xff] %v4069
        %4262 = vst [vmem:[%s315 + $0x528] sm:$0xff] %v4070
        %4263 = vst [vmem:[%s315 + $0x530] sm:$0xff] %v4071
        %4264 = vst [vmem:[%s315 + $0x538] sm:$0xff] %v4072
        %4265 = vst [vmem:[%s315 + $0x540] sm:$0xff] %v4073
        %4266 = vst [vmem:[%s315 + $0x548] sm:$0xff] %v4074
        %4267 = vst [vmem:[%s315 + $0x550] sm:$0xff] %v4075
        %4268 = vst [vmem:[%s315 + $0x558] sm:$0xff] %v4076
        %4269 = vst [vmem:[%s315 + $0x560] sm:$0xff] %v4077
        %4270 = vst [vmem:[%s315 + $0x568] sm:$0xff] %v4078
        %4271 = vst [vmem:[%s315 + $0x570] sm:$0xff] %v4079
        %4272 = vst [vmem:[%s315 + $0x578] sm:$0xff] %v4080
        %4273 = vst [vmem:[%s315 + $0x580] sm:$0xff] %v4081
        %4274 = vst [vmem:[%s315 + $0x588] sm:$0xff] %v4082
        %4275 = vst [vmem:[%s315 + $0x590] sm:$0xff] %v4083
        %4276 = vst [vmem:[%s315 + $0x598] sm:$0xff] %v4084
        %4277 = vst [vmem:[%s315 + $0x5a0] sm:$0xff] %v4085
        %4278 = vst [vmem:[%s315 + $0x5a8] sm:$0xff] %v4086
        %4279 = vst [vmem:[%s315 + $0x5b0] sm:$0xff] %v4087
        %4280 = vst [vmem:[%s315 + $0x5b8] sm:$0xff] %v4088
        %4281 = vst [vmem:[%s315 + $0x5c0] sm:$0xff] %v4089
        %4282 = vst [vmem:[%s315 + $0x5c8] sm:$0xff] %v4090
        %4283 = vst [vmem:[%s315 + $0x5d0] sm:$0xff] %v4091
        %4284 = vst [vmem:[%s315 + $0x5d8] sm:$0xff] %v4092
        %4285 = vst [vmem:[%s315 + $0x5e0] sm:$0xff] %v4093
        %4286 = vst [vmem:[%s315 + $0x5e8] sm:$0xff] %v4094
        %4287 = vst [vmem:[%s315 + $0x5f0] sm:$0xff] %v4095
        %4288 = vst [vmem:[%s315 + $0x5f8] sm:$0xff] %v4096
        %s4289 = sand.u32 %s130, 1
        %s4290 = scalar_lea.sflag [#allocation4], %s4289
        %s4291 = sand.u32 %s130, 1
        %s4292 = smul.addr %s4291, 1536
        %s4293 = scalar_lea.vmem [#allocation8], %s4292
        %s4294 = sand.u32 %s158, 1
        %s4295 = scalar_lea.sflag [#allocation10], %s4294
        %s4296 = sand.u32 %s158, 1
        %s4297 = smul.addr %s4296, 32
        %s4298 = scalar_lea.vmem [#allocation9], %s4297
        // Predicated region
        $region45: #{tpu_custom_call.1} parent=31 // pred_check
          %p4299 = pneg %p140
        $region46: #{tpu_custom_call.1} parent=31 // pred_check_branch
          %4301 = sbr.rel (%p4299) target = $region48
        $region47: #{tpu_custom_call.1} parent=31 // pred_region
          %s4303 = ssub.s32 24576, 24576
          %4304 = vsyncadd %s4290, %s4303
          %s4305 = smul.addr %s32, 576
          %s4306 = sadd.s32 %s33, %s4305
          %s4307 = smul.addr %s4306, 128
          %s4308 = scalar_lea.hbm %s3, %s4307
          %s4309 = sshll.u32 %s4293, 4
          %s4310 = int_to_ptr.vmem [resolvable:$true] %s4309
          %4315 = dma.vmem_to_hbm [thread:$0]  %s4310, 24576, %s4308, %s4290, 128, 384, 8
        $region48: #{tpu_custom_call.1} parent=31 // pred_fallthru
          _
        // Predicated region
        $region49: #{tpu_custom_call.1} parent=31 // pred_check
          %p4316 = pneg %p168
        $region50: #{tpu_custom_call.1} parent=31 // pred_check_branch
          %4318 = sbr.rel (%p4316) target = $region52
        $region51: #{tpu_custom_call.1} parent=31 // pred_region
          %s4320 = ssub.s32 512, 512
          %4321 = vsyncadd %s4295, %s4320
          %s4322 = smul.addr %s32, 12
          %s4323 = sadd.s32 %s33, %s4322
          %s4324 = smul.addr %s4323, 128
          %s4325 = scalar_lea.hbm %s4, %s4324
          %s4326 = sshll.u32 %s4298, 4
          %s4327 = int_to_ptr.vmem [resolvable:$true] %s4326
          %4332 = dma.vmem_to_hbm [thread:$0]  %s4327, 512, %s4325, %s4295, 128, 384, 8
        $region52: #{tpu_custom_call.1} parent=31 // pred_fallthru
          _
      $region32: #{tpu_custom_call.1} parent=5 // pred_fallthru
        _
      %p4333 = scmp.le.s32.totalorder 2, %s23
      // Predicated region
      $region53: #{tpu_custom_call.1} parent=5 // pred_check
        %p4334 = pneg %p4333
      $region54: #{tpu_custom_call.1} parent=5 // pred_check_branch
        %4336 = sbr.rel (%p4334) target = $region56
      $region55: #{tpu_custom_call.1} parent=5 // pred_region
        %s4337 = ssub.s32 %s23, 2
        // Predicated region
        $region57: #{tpu_custom_call.1} parent=55 // pred_check
          %p4338 = pneg %p146
        $region58: #{tpu_custom_call.1} parent=55 // pred_check_branch
          %4340 = sbr.rel (%p4338) target = $region60
        $region59: #{tpu_custom_call.1} parent=55 // pred_region
          %s4341 = sand.u32 %s131, 1
          %s4342 = scalar_lea.sflag [#allocation4], %s4341
          %s4343 = sand.u32 %s131, 1
          %s4344 = smul.addr %s4343, 1536
          %s4345 = scalar_lea.vmem [#allocation8], %s4344
          %4346 = dma.done %s4342, 24576
        $region60: #{tpu_custom_call.1} parent=55 // pred_fallthru
          _
        // Predicated region
        $region61: #{tpu_custom_call.1} parent=55 // pred_check
          %p4347 = pneg %p174
        $region62: #{tpu_custom_call.1} parent=55 // pred_check_branch
          %4349 = sbr.rel (%p4347) target = $region64
        $region63: #{tpu_custom_call.1} parent=55 // pred_region
          %s4350 = sand.u32 %s159, 1
          %s4351 = scalar_lea.sflag [#allocation10], %s4350
          %s4352 = sand.u32 %s159, 1
          %s4353 = smul.addr %s4352, 32
          %s4354 = scalar_lea.vmem [#allocation9], %s4353
          %4355 = dma.done %s4351, 512
        $region64: #{tpu_custom_call.1} parent=55 // pred_fallthru
          _
      $region56: #{tpu_custom_call.1} parent=5 // pred_fallthru
        _
    $region6: #{tpu_custom_call.1} parent=1 // loop_footer
      %s27 = sadd.s32 1, %s23
    $region7: #{tpu_custom_call.1} parent=1 // loop_footer_branch
      %22 = sbr.rel target = $region3
    $region8: #{tpu_custom_call.1} parent=1 // loop_exit
      _
    %4356 = vsyncpa [#allocation3], 1
    %s4357 = scalar_lea.sflag [#allocation3], 1
    %4358 = vsyncpa %s4357, 1
    %4359 = vsyncpa [#allocation6], 1
    %s4360 = scalar_lea.sflag [#allocation6], 1
    %4361 = vsyncpa %s4360, 1
    %4362 = vsyncpa [#allocation4], 1
    %s4363 = scalar_lea.sflag [#allocation4], 1
    %4364 = vsyncpa %s4363, 1
    %4365 = vsyncpa [#allocation10], 1
    %s4366 = scalar_lea.sflag [#allocation10], 1
    %4367 = vsyncpa %s4366, 1

</llo_original>
